<compile_context>
chip_gen: v7x
topology: tpu7x:2x2x1
jax: 0.10.0
libtpu: 0.0.40
codegen_flags: <defaults>
</compile_context>

<pallas_src>
import functools

import jax
import jax.numpy as jnp
from jax.experimental import pallas as pl
from jax.experimental.pallas import tpu as pltpu


def _round_up(x, m):
    return (x + m - 1) // m * m


def _vmem_capacity_bytes():
    try:
        return int(pltpu.get_tpu_info().vmem_capacity_bytes)
    except Exception:
        return 64 * 1024 * 1024          # conservative (v7x-sized) fallback


def _estimate_vmem_bytes(Th, Wp, Cw, Cout, x_itemsize, w_itemsize, w_bufs):
    PA_t = (Th + 3) * Wp                 # tile rows incl. 1 top + 2 bottom halo
    L = Th * Wp
    in_tile = PA_t * Cw * x_itemsize
    out_tile = L * Cout * x_itemsize
    return (2 * in_tile                  # double-buffered input tile
            + 2 * out_tile               # double-buffered output tile
            + w_bufs * 9 * Cw * Cout * w_itemsize + 2 * Cout * 4
            + 2 * in_tile                # in-kernel dx=1 / dx=2 shifted copies
            + L * Cout * 4)              # f32 accumulator / gate


def _pick_tile_rows(H, Wp, Cw, Cout, x_itemsize, w_itemsize, w_bufs, budget):
    # Largest tile that fits the per-generation VMEM budget:
    # ~64 rows on 128 MiB parts (v5e/v6e), ~24-32 rows on 64 MiB parts (v7x).
    for th in sorted({64, 48, 32, 24, 16, 8, H}, reverse=True):
        if th > H:
            continue
        if _estimate_vmem_bytes(th, Wp, Cw, Cout,
                                x_itemsize, w_itemsize, w_bufs) <= budget:
            return th
    return max(1, min(8, H))


def _const_block_spec(shape, index_map):
    """BlockSpec with a constant index_map; single-buffered when supported."""
    if hasattr(pl, "Buffered"):
        try:
            return pl.BlockSpec(shape, index_map, pipeline_mode=pl.Buffered(1))
        except TypeError:
            pass
    return pl.BlockSpec(shape, index_map)


def _fusion_kernel(x_ref, w_ref, b_ref, out_ref, *, Th, Wp):
    """One (batch, row-tile) grid point.

    x_ref:   (1, 1, (Th+3)*Wp, Cw) zero-padded, row-flattened NHWC tile of
             concat(img, radar); Wp (padded row stride) is a multiple of 8 so
             every dy*Wp tap offset below is sublane aligned.
    w_ref:   (3, 3, Cw, Cout) fused conv weight (img head channels first).
    b_ref:   (1, Cout) fused bias (float32).
    out_ref: (1, 1, Th*Wp, Cout); flat row p = y*Wp + x holds the gated value
             for tile pixel (y, x) when x < W (x >= W columns are padding
             artifacts and are dropped by the wrapper).
    """
    L = Th * Wp

    x0 = x_ref[0, 0]                     # ((Th+3)*Wp, Cw), model dtype
    # Pre-materialize the dx=1 / dx=2 shifted views once (2 relayout copies
    # instead of 6 misaligned per-tap slices); every dy-slice below is aligned.
    x1 = x0[1:, :]
    x2 = x0[2:, :]
    taps = (x0, x1, x2)

    # 3x3 "same" conv as 9 shifted matmuls over the flat padded tile:
    #   acc[p, :] = bias + sum_{dy,dx} x[p + dy*Wp + dx, :] @ w[dy, dx]
    # Accumulator initialized from bias + first tap (no zero-fill).
    acc = b_ref[...] + jnp.dot(x0[:L, :], w_ref[0, 0],
                               preferred_element_type=jnp.float32)
    for dy in range(3):
        base = dy * Wp                   # multiple of 8 -> aligned slice start
        for dx in range(3):
            if dy == 0 and dx == 0:
                continue
            acc = acc + jnp.dot(taps[dx][base:base + L, :], w_ref[dy, dx],
                                preferred_element_type=jnp.float32)

    gate = jax.nn.sigmoid(acc)           # (L, Cout), f32

    # Un-padded input value for flat row p is x[p + Wp + 1] == x1[p + Wp];
    # multiply in the model dtype (no f32 up-cast of the center values).
    center = x1[Wp:Wp + L, :]
    out_ref[0, 0] = gate.astype(out_ref.dtype) * center


def bi_direction_weight_fusion_nhwc(img_nhwc, radar_nhwc,
                                    w_img, b_img, w_radar, b_radar):
    """NHWC fast path (no layout transposes). Conv weights in PyTorch OIHW."""
    B, H, W, Ci = img_nhwc.shape
    Cr = radar_nhwc.shape[3]
    Cw = Ci + Cr
    Cout = Ci + Cr                       # == Cw for this module; kept distinct
    dtype = img_nhwc.dtype
    x_itemsize = jnp.dtype(dtype).itemsize

    # Padded row stride rounded to a sublane multiple (alignment of dy*Wp taps).
    Wp = max(_round_up(W + 2, 8), 8)

    use_buffered = hasattr(pl, "Buffered")
    w_bufs = 1 if use_buffered else 2

    vmem_cap = _vmem_capacity_bytes()
    budget = int(0.85 * vmem_cap)        # headroom for compiler-internal scratch
    Th = _pick_tile_rows(H, Wp, Cw, Cout, x_itemsize, x_itemsize, w_bufs, budget)
    Ht = _round_up(H, Th)
    nT = Ht // Th
    PA_t = (Th + 3) * Wp
    L = Th * Wp

    # Channel concat + spatial zero-pad + overlapping row-tile slabs (XLA side).
    # 1 top pad row, (Ht - H + 2) bottom pad rows (conv halo + H round-up +
    # dx-spill row), 1 left / (Wp - W - 1) right pad cols.
    x = jnp.concatenate([img_nhwc, radar_nhwc], axis=-1)           # (B,H,W,Cw)
    x = jnp.pad(x, ((0, 0), (1, Ht - H + 2), (1, Wp - W - 1), (0, 0)))
    # Overlapping Th+3-row windows (2-row halo duplicated; +3/Th extra HBM)
    # because overlapping windows are not expressible with a Blocked index_map.
    x_tiles = jnp.stack([x[:, t * Th: t * Th + Th + 3] for t in range(nT)],
                        axis=1)                                    # (B,nT,Th+3,Wp,Cw)
    x_tiles = x_tiles.reshape(B, nT, PA_t, Cw)

    # Fuse the two conv heads into ONE weight / bias (img head channels first).
    wf = jnp.concatenate([w_img, w_radar], axis=0)                 # (Cout,Cw,3,3) OIHW
    wf = jnp.transpose(wf, (2, 3, 1, 0)).astype(dtype)             # (3,3,Cw,Cout)
    bf = jnp.concatenate([b_img, b_radar]).reshape(1, Cout).astype(jnp.float32)

    est = _estimate_vmem_bytes(Th, Wp, Cw, Cout, x_itemsize, x_itemsize, w_bufs)
    vmem_limit = min(max(est + (8 << 20), 32 << 20), budget)
    vmem_limit = int(max(vmem_limit, est))

    out = pl.pallas_call(
        functools.partial(_fusion_kernel, Th=Th, Wp=Wp),
        out_shape=jax.ShapeDtypeStruct((B, nT, L, Cout), dtype),
        grid_spec=pltpu.PrefetchScalarGridSpec(
            num_scalar_prefetch=0,
            grid=(B, nT),
            in_specs=[
                pl.BlockSpec((1, 1, PA_t, Cw), lambda b, t: (b, t, 0, 0)),
                _const_block_spec((3, 3, Cw, Cout), lambda b, t: (0, 0, 0, 0)),
                _const_block_spec((1, Cout), lambda b, t: (0, 0)),
            ],
            out_specs=pl.BlockSpec((1, 1, L, Cout), lambda b, t: (b, t, 0, 0)),
        ),
        compiler_params=pltpu.CompilerParams(
            dimension_semantics=("parallel", "parallel"),
            vmem_limit_bytes=vmem_limit),
    )(x_tiles, wf, bf)

    # Drop padded rows / columns, split back into the two streams (XLA side).
    gated = out.reshape(B, Ht, Wp, Cout)[:, :H, :W, :]
    return gated[..., :Ci], gated[..., Ci:]


def bi_direction_weight_fusion(img_bev, radar_bev, w_img, b_img, w_radar, b_radar):
    """NCHW interface matching the PyTorch module (thin layout wrapper)."""
    img_nhwc = jnp.transpose(img_bev, (0, 2, 3, 1))
    radar_nhwc = jnp.transpose(radar_bev, (0, 2, 3, 1))
    out_img, out_radar = bi_direction_weight_fusion_nhwc(
        img_nhwc, radar_nhwc, w_img, b_img, w_radar, b_radar)
    return (jnp.transpose(out_img, (0, 3, 1, 2)),
            jnp.transpose(out_radar, (0, 3, 1, 2)))


def _reference(img, radar, w_img, b_img, w_radar, b_radar):
    """Plain-JAX reference mirroring the PyTorch forward (NCHW)."""
    concat = jnp.concatenate([img, radar], axis=1)

    def conv(x, w, b):
        y = jax.lax.conv_general_dilated(
            x, w, window_strides=(1, 1), padding=((1, 1), (1, 1)),
            dimension_numbers=("NCHW", "OIHW", "NCHW"),
            precision=jax.lax.Precision.HIGHEST)
        return y + b[None, :, None, None]

    img_w = jax.nn.sigmoid(conv(concat, w_img, b_img))
    radar_w = jax.nn.sigmoid(conv(concat, w_radar, b_radar))
    return img * img_w, radar * radar_w


if __name__ == "__main__":
    B, Ci, Cr, H, W = 2, 6, 4, 16, 16
    Cw = Ci + Cr

    key = jax.random.PRNGKey(0)
    k_img, k_rad, k_wi, k_bi, k_wr, k_br = jax.random.split(key, 6)

    img_bev = jax.random.normal(k_img, (B, Ci, H, W), dtype=jnp.float32)
    radar_bev = jax.random.normal(k_rad, (B, Cr, H, W), dtype=jnp.float32)

    # Synthetic Conv2d(Cw, Ci, 3) / Conv2d(Cw, Cr, 3) parameters in PyTorch OIHW.
    w_img = 0.1 * jax.random.normal(k_wi, (Ci, Cw, 3, 3), dtype=jnp.float32)
    b_img = 0.1 * jax.random.normal(k_bi, (Ci,), dtype=jnp.float32)
    w_radar = 0.1 * jax.random.normal(k_wr, (Cr, Cw, 3, 3), dtype=jnp.float32)
    b_radar = 0.1 * jax.random.normal(k_br, (Cr,), dtype=jnp.float32)

    out_img, out_radar = bi_direction_weight_fusion(
        img_bev, radar_bev, w_img, b_img, w_radar, b_radar)
    jax.block_until_ready(out_img)
    jax.block_until_ready(out_radar)

    ref_img, ref_radar = _reference(
        img_bev, radar_bev, w_img, b_img, w_radar, b_radar)

    assert out_img.shape == (B, Ci, H, W) and out_radar.shape == (B, Cr, H, W)
    assert jnp.allclose(out_img, ref_img, atol=1e-2, rtol=1e-2)
    assert jnp.allclose(out_radar, ref_radar, atol=1e-2, rtol=1e-2)

    print("KERNEL_OK")
</pallas_src>

<mosaic_0001>
module attributes {stable_mosaic.version = 11 : i64} {
  func.func @_fusion_kernel(%arg0: i32, %arg1: i32, %arg2: memref<1x1x456x10xf32, #tpu.memory_space<vmem>>, %arg3: memref<3x3x10x10xf32, #tpu.memory_space<vmem>>, %arg4: memref<1x10xf32, #tpu.memory_space<vmem>>, %arg5: memref<1x1x384x10xf32, #tpu.memory_space<vmem>>) attributes {dimension_semantics = [#tpu.dimension_semantics<parallel>, #tpu.dimension_semantics<parallel>], iteration_bounds = array<i64: 2, 1>, scalar_prefetch = 0 : i64, scratch_operands = 0 : i64, tpu.core_type = #tpu.core_type<tc>, window_params = [{transform_indices = @transform_0, window_bounds = array<i64: 1, 1, 456, 10>}, {pipeline_mode = #tpu.pipeline_mode<synchronous>, transform_indices = @transform_1, window_bounds = array<i64: 3, 3, 10, 10>}, {pipeline_mode = #tpu.pipeline_mode<synchronous>, transform_indices = @transform_2, window_bounds = array<i64: 1, 10>}, {transform_indices = @transform_3, window_bounds = array<i64: 1, 1, 384, 10>}]} {
    %c0 = arith.constant 0 : index
    %c0_0 = arith.constant 0 : index
    %c0_1 = arith.constant 0 : index
    %c0_2 = arith.constant 0 : index
    %0 = vector.load %arg2[%c0, %c0_0, %c0_1, %c0_2] : memref<1x1x456x10xf32, #tpu.memory_space<vmem>>, vector<1x1x456x10xf32>
    %1 = vector.shape_cast %0 : vector<1x1x456x10xf32> to vector<456x10xf32>
    %2 = vector.extract_strided_slice %1 {offsets = [1, 0], sizes = [455, 10], strides = [1, 1]} : vector<456x10xf32> to vector<455x10xf32>
    %3 = vector.extract_strided_slice %1 {offsets = [2, 0], sizes = [454, 10], strides = [1, 1]} : vector<456x10xf32> to vector<454x10xf32>
    %c0_3 = arith.constant 0 : index
    %c0_4 = arith.constant 0 : index
    %4 = vector.load %arg4[%c0_3, %c0_4] : memref<1x10xf32, #tpu.memory_space<vmem>>, vector<1x10xf32>
    %5 = vector.extract_strided_slice %1 {offsets = [0, 0], sizes = [384, 10], strides = [1, 1]} : vector<456x10xf32> to vector<384x10xf32>
    %c0_5 = arith.constant 0 : index
    %c0_6 = arith.constant 0 : index
    %c0_7 = arith.constant 0 : index
    %c0_8 = arith.constant 0 : index
    %6 = vector.load %arg3[%c0_5, %c0_6, %c0_7, %c0_8] : memref<3x3x10x10xf32, #tpu.memory_space<vmem>>, vector<1x1x10x10xf32>
    %7 = vector.shape_cast %6 : vector<1x1x10x10xf32> to vector<10x10xf32>
    %cst = arith.constant dense<0.000000e+00> : vector<384x10xf32>
    %8 = tpu.matmul %5, %7, %cst {dimension_numbers = #tpu.dot_dimension_numbers<[1], [0], [0], [1], [0, 0, 1, 1], [], []>} : vector<384x10xf32>, vector<10x10xf32>, vector<384x10xf32> -> vector<384x10xf32>
    %9 = vector.broadcast %4 : vector<1x10xf32> to vector<384x10xf32>
    %10 = arith.addf %9, %8 : vector<384x10xf32>
    %11 = vector.extract_strided_slice %2 {offsets = [0, 0], sizes = [384, 10], strides = [1, 1]} : vector<455x10xf32> to vector<384x10xf32>
    %c0_9 = arith.constant 0 : index
    %c1 = arith.constant 1 : index
    %c0_10 = arith.constant 0 : index
    %c0_11 = arith.constant 0 : index
    %12 = vector.load %arg3[%c0_9, %c1, %c0_10, %c0_11] : memref<3x3x10x10xf32, #tpu.memory_space<vmem>>, vector<1x1x10x10xf32>
    %13 = vector.shape_cast %12 : vector<1x1x10x10xf32> to vector<10x10xf32>
    %cst_12 = arith.constant dense<0.000000e+00> : vector<384x10xf32>
    %14 = tpu.matmul %11, %13, %cst_12 {dimension_numbers = #tpu.dot_dimension_numbers<[1], [0], [0], [1], [0, 0, 1, 1], [], []>} : vector<384x10xf32>, vector<10x10xf32>, vector<384x10xf32> -> vector<384x10xf32>
    %15 = arith.addf %10, %14 : vector<384x10xf32>
    %16 = vector.extract_strided_slice %3 {offsets = [0, 0], sizes = [384, 10], strides = [1, 1]} : vector<454x10xf32> to vector<384x10xf32>
    %c0_13 = arith.constant 0 : index
    %c2 = arith.constant 2 : index
    %c0_14 = arith.constant 0 : index
    %c0_15 = arith.constant 0 : index
    %17 = vector.load %arg3[%c0_13, %c2, %c0_14, %c0_15] : memref<3x3x10x10xf32, #tpu.memory_space<vmem>>, vector<1x1x10x10xf32>
    %18 = vector.shape_cast %17 : vector<1x1x10x10xf32> to vector<10x10xf32>
    %cst_16 = arith.constant dense<0.000000e+00> : vector<384x10xf32>
    %19 = tpu.matmul %16, %18, %cst_16 {dimension_numbers = #tpu.dot_dimension_numbers<[1], [0], [0], [1], [0, 0, 1, 1], [], []>} : vector<384x10xf32>, vector<10x10xf32>, vector<384x10xf32> -> vector<384x10xf32>
    %20 = arith.addf %15, %19 : vector<384x10xf32>
    %21 = vector.extract_strided_slice %1 {offsets = [24, 0], sizes = [384, 10], strides = [1, 1]} : vector<456x10xf32> to vector<384x10xf32>
    %c1_17 = arith.constant 1 : index
    %c0_18 = arith.constant 0 : index
    %c0_19 = arith.constant 0 : index
    %c0_20 = arith.constant 0 : index
    %22 = vector.load %arg3[%c1_17, %c0_18, %c0_19, %c0_20] : memref<3x3x10x10xf32, #tpu.memory_space<vmem>>, vector<1x1x10x10xf32>
    %23 = vector.shape_cast %22 : vector<1x1x10x10xf32> to vector<10x10xf32>
    %cst_21 = arith.constant dense<0.000000e+00> : vector<384x10xf32>
    %24 = tpu.matmul %21, %23, %cst_21 {dimension_numbers = #tpu.dot_dimension_numbers<[1], [0], [0], [1], [0, 0, 1, 1], [], []>} : vector<384x10xf32>, vector<10x10xf32>, vector<384x10xf32> -> vector<384x10xf32>
    %25 = arith.addf %20, %24 : vector<384x10xf32>
    %26 = vector.extract_strided_slice %2 {offsets = [24, 0], sizes = [384, 10], strides = [1, 1]} : vector<455x10xf32> to vector<384x10xf32>
    %c1_22 = arith.constant 1 : index
    %c1_23 = arith.constant 1 : index
    %c0_24 = arith.constant 0 : index
    %c0_25 = arith.constant 0 : index
    %27 = vector.load %arg3[%c1_22, %c1_23, %c0_24, %c0_25] : memref<3x3x10x10xf32, #tpu.memory_space<vmem>>, vector<1x1x10x10xf32>
    %28 = vector.shape_cast %27 : vector<1x1x10x10xf32> to vector<10x10xf32>
    %cst_26 = arith.constant dense<0.000000e+00> : vector<384x10xf32>
    %29 = tpu.matmul %26, %28, %cst_26 {dimension_numbers = #tpu.dot_dimension_numbers<[1], [0], [0], [1], [0, 0, 1, 1], [], []>} : vector<384x10xf32>, vector<10x10xf32>, vector<384x10xf32> -> vector<384x10xf32>
    %30 = arith.addf %25, %29 : vector<384x10xf32>
    %31 = vector.extract_strided_slice %3 {offsets = [24, 0], sizes = [384, 10], strides = [1, 1]} : vector<454x10xf32> to vector<384x10xf32>
    %c1_27 = arith.constant 1 : index
    %c2_28 = arith.constant 2 : index
    %c0_29 = arith.constant 0 : index
    %c0_30 = arith.constant 0 : index
    %32 = vector.load %arg3[%c1_27, %c2_28, %c0_29, %c0_30] : memref<3x3x10x10xf32, #tpu.memory_space<vmem>>, vector<1x1x10x10xf32>
    %33 = vector.shape_cast %32 : vector<1x1x10x10xf32> to vector<10x10xf32>
    %cst_31 = arith.constant dense<0.000000e+00> : vector<384x10xf32>
    %34 = tpu.matmul %31, %33, %cst_31 {dimension_numbers = #tpu.dot_dimension_numbers<[1], [0], [0], [1], [0, 0, 1, 1], [], []>} : vector<384x10xf32>, vector<10x10xf32>, vector<384x10xf32> -> vector<384x10xf32>
    %35 = arith.addf %30, %34 : vector<384x10xf32>
    %36 = vector.extract_strided_slice %1 {offsets = [48, 0], sizes = [384, 10], strides = [1, 1]} : vector<456x10xf32> to vector<384x10xf32>
    %c2_32 = arith.constant 2 : index
    %c0_33 = arith.constant 0 : index
    %c0_34 = arith.constant 0 : index
    %c0_35 = arith.constant 0 : index
    %37 = vector.load %arg3[%c2_32, %c0_33, %c0_34, %c0_35] : memref<3x3x10x10xf32, #tpu.memory_space<vmem>>, vector<1x1x10x10xf32>
    %38 = vector.shape_cast %37 : vector<1x1x10x10xf32> to vector<10x10xf32>
    %cst_36 = arith.constant dense<0.000000e+00> : vector<384x10xf32>
    %39 = tpu.matmul %36, %38, %cst_36 {dimension_numbers = #tpu.dot_dimension_numbers<[1], [0], [0], [1], [0, 0, 1, 1], [], []>} : vector<384x10xf32>, vector<10x10xf32>, vector<384x10xf32> -> vector<384x10xf32>
    %40 = arith.addf %35, %39 : vector<384x10xf32>
    %41 = vector.extract_strided_slice %2 {offsets = [48, 0], sizes = [384, 10], strides = [1, 1]} : vector<455x10xf32> to vector<384x10xf32>
    %c2_37 = arith.constant 2 : index
    %c1_38 = arith.constant 1 : index
    %c0_39 = arith.constant 0 : index
    %c0_40 = arith.constant 0 : index
    %42 = vector.load %arg3[%c2_37, %c1_38, %c0_39, %c0_40] : memref<3x3x10x10xf32, #tpu.memory_space<vmem>>, vector<1x1x10x10xf32>
    %43 = vector.shape_cast %42 : vector<1x1x10x10xf32> to vector<10x10xf32>
    %cst_41 = arith.constant dense<0.000000e+00> : vector<384x10xf32>
    %44 = tpu.matmul %41, %43, %cst_41 {dimension_numbers = #tpu.dot_dimension_numbers<[1], [0], [0], [1], [0, 0, 1, 1], [], []>} : vector<384x10xf32>, vector<10x10xf32>, vector<384x10xf32> -> vector<384x10xf32>
    %45 = arith.addf %40, %44 : vector<384x10xf32>
    %46 = vector.extract_strided_slice %3 {offsets = [48, 0], sizes = [384, 10], strides = [1, 1]} : vector<454x10xf32> to vector<384x10xf32>
    %c2_42 = arith.constant 2 : index
    %c2_43 = arith.constant 2 : index
    %c0_44 = arith.constant 0 : index
    %c0_45 = arith.constant 0 : index
    %47 = vector.load %arg3[%c2_42, %c2_43, %c0_44, %c0_45] : memref<3x3x10x10xf32, #tpu.memory_space<vmem>>, vector<1x1x10x10xf32>
    %48 = vector.shape_cast %47 : vector<1x1x10x10xf32> to vector<10x10xf32>
    %cst_46 = arith.constant dense<0.000000e+00> : vector<384x10xf32>
    %49 = tpu.matmul %46, %48, %cst_46 {dimension_numbers = #tpu.dot_dimension_numbers<[1], [0], [0], [1], [0, 0, 1, 1], [], []>} : vector<384x10xf32>, vector<10x10xf32>, vector<384x10xf32> -> vector<384x10xf32>
    %50 = arith.addf %45, %49 : vector<384x10xf32>
    %51 = arith.negf %50 : vector<384x10xf32>
    %52 = math.exp %51 : vector<384x10xf32>
    %cst_47 = arith.constant 1.000000e+00 : f32
    %53 = vector.broadcast %cst_47 : f32 to vector<384x10xf32>
    %54 = arith.addf %53, %52 : vector<384x10xf32>
    %55 = arith.divf %53, %54 : vector<384x10xf32>
    %56 = vector.extract_strided_slice %2 {offsets = [24, 0], sizes = [384, 10], strides = [1, 1]} : vector<455x10xf32> to vector<384x10xf32>
    %57 = arith.mulf %55, %56 : vector<384x10xf32>
    %c0_48 = arith.constant 0 : index
    %c0_49 = arith.constant 0 : index
    %c0_50 = arith.constant 0 : index
    %c0_51 = arith.constant 0 : index
    %58 = vector.load %arg5[%c0_48, %c0_49, %c0_50, %c0_51] : memref<1x1x384x10xf32, #tpu.memory_space<vmem>>, vector<1x1x384x10xf32>
    %59 = vector.shape_cast %58 : vector<1x1x384x10xf32> to vector<384x10xf32>
    %60 = vector.shape_cast %57 : vector<384x10xf32> to vector<1x1x384x10xf32>
    tpu.vector_store %arg5[%c0_48, %c0_49, %c0_50, %c0_51], %60 {strides = array<i32>} : memref<1x1x384x10xf32, #tpu.memory_space<vmem>>, vector<1x1x384x10xf32>,
    return
  }
  func.func @transform_0(%arg0: i32, %arg1: i32) -> (i32, i32, i32, i32) {
    %c0_i32 = arith.constant 0 : i32
    %c0_i32_0 = arith.constant 0 : i32
    %c0_i32_1 = arith.constant 0 : i32
    return %arg0, %arg1, %c0_i32, %c0_i32_0 : i32, i32, i32, i32
  }
  func.func @transform_1(%arg0: i32, %arg1: i32) -> (i32, i32, i32, i32) {
    %c0_i32 = arith.constant 0 : i32
    %c0_i32_0 = arith.constant 0 : i32
    %c0_i32_1 = arith.constant 0 : i32
    %c0_i32_2 = arith.constant 0 : i32
    %c0_i32_3 = arith.constant 0 : i32
    return %c0_i32, %c0_i32_0, %c0_i32_1, %c0_i32_2 : i32, i32, i32, i32
  }
  func.func @transform_2(%arg0: i32, %arg1: i32) -> (i32, i32) {
    %c0_i32 = arith.constant 0 : i32
    %c0_i32_0 = arith.constant 0 : i32
    %c0_i32_1 = arith.constant 0 : i32
    return %c0_i32, %c0_i32_0 : i32, i32
  }
  func.func @transform_3(%arg0: i32, %arg1: i32) -> (i32, i32, i32, i32) {
    %c0_i32 = arith.constant 0 : i32
    %c0_i32_0 = arith.constant 0 : i32
    %c0_i32_1 = arith.constant 0 : i32
    return %arg0, %arg1, %c0_i32, %c0_i32_0 : i32, i32, i32, i32
  }
}

</mosaic_0001>

<llo_original>
// kernel: tpu_custom_call.1
$region0: #{tpu_custom_call.1}
  #allocation0 [shape = 'u32[]', space=smem, size = 0x4, offset = 0x4, fixed_abs, tag = 'smem constant byte address 0x4 - core index']
  #allocation1 [shape = 'u32[144,128]{1,0:T(1,128)}', space=vmem, size = 0x12000, scoped, tag = 'internal scratch']
  %s0 = inlined_call_operand.vmem [shape: f32[2,1,456,10], index: 0, kind: input, shape index: {}]
  %s1 = inlined_call_operand.vmem [shape: f32[3,3,10,10], index: 1, kind: input, shape index: {}]
  %s2 = inlined_call_operand.vmem [shape: f32[1,10], index: 2, kind: input, shape index: {}]
  %s3 = inlined_call_operand.vmem [shape: f32[2,1,384,10], index: 3, kind: output, shape index: {}]
  %s4 = sld [smem:[#allocation0]]
  $region45: #{tpu_custom_call.1} parent=0
    _
  %s6 = ssub.s32 1, %s4
  %s7 = scalar_select 0, %s6, %s4
  loop: start=0, step=1, limit=4
  $region2: #{tpu_custom_call.1} parent=0 // loop_pre_header
    _
  $region3: #{tpu_custom_call.1} parent=0 // loop_header
    %s9 = sphi 0, %s13
    %p10 = scmp.ge.s32.totalorder %s9, 4
    %s16 = sphi 0, %s28
    %s17 = sphi 0, %s24
    %s18 = sphi 0, %s16
    %s19 = sphi 0, %s17
    %s20 = sphi 0, %s18
    %s21 = sphi 0, %s19
    %s33 = sphi 0, %s35
    %s36 = sphi 0, %s33
    %s37 = sphi 0, %s36
    %s53 = sphi 0, %s37
    %s57 = sphi 0, %s57
    %s59 = sphi 0, %s57
    %s60 = sphi 0, %s59
    %s74 = sphi 0, %s60
    %s78 = sphi 0, %s78
    %s80 = sphi 0, %s78
    %s81 = sphi 0, %s80
    %s95 = sphi 0, %s81
    %s103 = sphi 0, %s105
    %s106 = sphi 0, %s103
    %s107 = sphi 0, %s106
    %s123 = sphi 0, %s107
  $region4: #{tpu_custom_call.1} parent=0 // loop_header_branch
    %12 = sbr.rel (%p10) target = $region8
  $region5: #{tpu_custom_call.1} parent=0 // loop_body
    %s14 = ssub.s32 %s9, 1
    %s15 = ssub.s32 %s9, 2
    %s22 = sadd.s32 1, %s17
    %p23 = scmp.ge.s32.totalorder %s22, 1
    %s24 = scalar_select %p23, 0, %s22
    %s25 = sadd.s32 1, %s16
    %s26 = scalar_select %p23, %s25, %s16
    %p27 = scmp.ge.s32.totalorder %s26, 2
    %s28 = scalar_select %p27, 0, %s26
    %s29 = ssub.s32 %s16, %s28
    %s30 = ssub.s32 %s17, %s24
    %s31 = sor.u32 %s29, %s30
    %p32 = scmp.eq.s32.totalorder %s31, 0
    %s34 = sadd.s32 %s33, 1
    %s35 = scalar_select %p32, %s33, %s34
    %p38 = pneg %p32
    %p39 = scmp.eq.s32.totalorder %s9, 1
    %p40 = por %p38, %p39
    %p41 = scmp.ne.s32.totalorder %s33, %s36
    %p42 = scmp.eq.s32.totalorder %s9, 0
    %p43 = por %p41, %p42
    %p44 = scmp.ne.s32.totalorder %s33, %s36
    %p45 = scmp.eq.s32.totalorder %s14, 1
    %p46 = por %p44, %p45
    %p47 = scmp.ne.s32.totalorder %s36, %s37
    %p48 = scmp.eq.s32.totalorder %s14, 0
    %p49 = por %p47, %p48
    %p50 = scmp.ne.s32.totalorder %s36, %s37
    %p51 = scmp.eq.s32.totalorder %s15, 1
    %p52 = por %p50, %p51
    %p54 = scmp.ne.s32.totalorder %s37, %s53
    %p55 = scmp.eq.s32.totalorder %s15, 0
    %p56 = por %p54, %p55
    %s58 = sadd.s32 %s57, 1
    %p61 = scmp.eq.s32.totalorder %s9, 1
    %p62 = scmp.ne.s32.totalorder %s57, %s59
    %p63 = scmp.eq.s32.totalorder %s9, 0
    %p64 = por %p62, %p63
    %p65 = scmp.ne.s32.totalorder %s57, %s59
    %p66 = scmp.eq.s32.totalorder %s14, 1
    %p67 = por %p65, %p66
    %p68 = scmp.ne.s32.totalorder %s59, %s60
    %p69 = scmp.eq.s32.totalorder %s14, 0
    %p70 = por %p68, %p69
    %p71 = scmp.ne.s32.totalorder %s59, %s60
    %p72 = scmp.eq.s32.totalorder %s15, 1
    %p73 = por %p71, %p72
    %p75 = scmp.ne.s32.totalorder %s60, %s74
    %p76 = scmp.eq.s32.totalorder %s15, 0
    %p77 = por %p75, %p76
    %s79 = sadd.s32 %s78, 1
    %p82 = scmp.eq.s32.totalorder %s9, 1
    %p83 = scmp.ne.s32.totalorder %s78, %s80
    %p84 = scmp.eq.s32.totalorder %s9, 0
    %p85 = por %p83, %p84
    %p86 = scmp.ne.s32.totalorder %s78, %s80
    %p87 = scmp.eq.s32.totalorder %s14, 1
    %p88 = por %p86, %p87
    %p89 = scmp.ne.s32.totalorder %s80, %s81
    %p90 = scmp.eq.s32.totalorder %s14, 0
    %p91 = por %p89, %p90
    %p92 = scmp.ne.s32.totalorder %s80, %s81
    %p93 = scmp.eq.s32.totalorder %s15, 1
    %p94 = por %p92, %p93
    %p96 = scmp.ne.s32.totalorder %s81, %s95
    %p97 = scmp.eq.s32.totalorder %s15, 0
    %p98 = por %p96, %p97
    %s99 = ssub.s32 %s16, %s28
    %s100 = ssub.s32 %s17, %s24
    %s101 = sor.u32 %s99, %s100
    %p102 = scmp.eq.s32.totalorder %s101, 0
    %s104 = sadd.s32 %s103, 1
    %s105 = scalar_select %p102, %s103, %s104
    %p108 = pneg %p102
    %p109 = scmp.eq.s32.totalorder %s9, 1
    %p110 = por %p108, %p109
    %p111 = scmp.ne.s32.totalorder %s103, %s106
    %p112 = scmp.eq.s32.totalorder %s9, 0
    %p113 = por %p111, %p112
    %p114 = scmp.ne.s32.totalorder %s103, %s106
    %p115 = scmp.eq.s32.totalorder %s14, 1
    %p116 = por %p114, %p115
    %p117 = scmp.ne.s32.totalorder %s106, %s107
    %p118 = scmp.eq.s32.totalorder %s14, 0
    %p119 = por %p117, %p118
    %p120 = scmp.ne.s32.totalorder %s106, %s107
    %p121 = scmp.eq.s32.totalorder %s15, 1
    %p122 = por %p120, %p121
    %p124 = scmp.ne.s32.totalorder %s107, %s123
    %p125 = scmp.eq.s32.totalorder %s15, 0
    %p126 = por %p124, %p125
    %p127 = scmp.le.s32.totalorder 1, %s9
    %p128 = scmp.lt.s32.totalorder %s9, 3
    %p129 = pnand %p127, %p128
    %p130 = pneg %p129
    // Predicated region
    $region9: #{tpu_custom_call.1} parent=5 // pred_check
      _
    $region10: #{tpu_custom_call.1} parent=5 // pred_check_branch
      %132 = sbr.rel (%p129) target = $region12
    $region11: #{tpu_custom_call.1} parent=5 // pred_region
      %s133 = ssub.s32 %s9, 1
      // Predicated region
      $region13: #{tpu_custom_call.1} parent=11 // pred_check
        %p134 = pneg %p70
      $region14: #{tpu_custom_call.1} parent=11 // pred_check_branch
        %136 = sbr.rel (%p134) target = $region16
      $region15: #{tpu_custom_call.1} parent=11 // pred_region
        _
      $region16: #{tpu_custom_call.1} parent=11 // pred_fallthru
        _
      // Predicated region
      $region17: #{tpu_custom_call.1} parent=11 // pred_check
        %p137 = pneg %p91
      $region18: #{tpu_custom_call.1} parent=11 // pred_check_branch
        %139 = sbr.rel (%p137) target = $region20
      $region19: #{tpu_custom_call.1} parent=11 // pred_region
        _
      $region20: #{tpu_custom_call.1} parent=11 // pred_fallthru
        _
    $region12: #{tpu_custom_call.1} parent=5 // pred_fallthru
      _
    %p140 = scmp.lt.s32.totalorder %s9, 2
    // Predicated region
    $region21: #{tpu_custom_call.1} parent=5 // pred_check
      %p141 = pneg %p140
    $region22: #{tpu_custom_call.1} parent=5 // pred_check_branch
      %143 = sbr.rel (%p141) target = $region24
    $region23: #{tpu_custom_call.1} parent=5 // pred_region
      // Predicated region
      $region25: #{tpu_custom_call.1} parent=23 // pred_check
        %p144 = pneg %p43
      $region26: #{tpu_custom_call.1} parent=23 // pred_check_branch
        %146 = sbr.rel (%p144) target = $region28
      $region27: #{tpu_custom_call.1} parent=23 // pred_region
        %p147 = scmp.lt.s32.totalorder %s16, 1
        %s148 = scalar_select %p147, %s16, 1
        %p149 = scmp.lt.s32.totalorder %s17, 0
        %s150 = scalar_select %p149, %s17, 0
        %s151 = smul.addr %s150, 57
        %s152 = smul.addr %s148, 57
        %s153 = sadd.s32 %s151, %s152
        %s154 = smul.addr %s153, 8
        %s155 = scalar_lea.vmem %s0, %s154
      $region28: #{tpu_custom_call.1} parent=23 // pred_fallthru
        _
    $region24: #{tpu_custom_call.1} parent=5 // pred_fallthru
      _
    %p156 = scmp.le.s32.totalorder 1, %s9
    %p157 = scmp.lt.s32.totalorder %s9, 3
    %p158 = pnand %p156, %p157
    %p159 = pneg %p158
    // Predicated region
    $region29: #{tpu_custom_call.1} parent=5 // pred_check
      _
    $region30: #{tpu_custom_call.1} parent=5 // pred_check_branch
      %161 = sbr.rel (%p158) target = $region32
    $region31: #{tpu_custom_call.1} parent=5 // pred_region
      %s162 = ssub.s32 %s9, 1
      %p163 = scmp.lt.s32.totalorder %s18, 1
      %s164 = scalar_select %p163, %s18, 1
      %p165 = scmp.lt.s32.totalorder %s19, 0
      %s166 = scalar_select %p165, %s19, 0
      %s167 = smul.addr %s166, 57
      %s168 = smul.addr %s164, 57
      %s169 = sadd.s32 %s167, %s168
      %s170 = smul.addr %s169, 8
      %s171 = scalar_lea.vmem %s0, %s170
      %p172 = pneg %p49
      %p173 = pneg %p46
      %p174 = pneg %p70
      %p175 = pneg %p67
      %p176 = pneg %p91
      %p177 = pneg %p88
      %p178 = pneg %p119
      %p179 = pneg %p116
      %p180 = scmp.lt.s32.totalorder %s18, 1
      %s181 = scalar_select %p180, %s18, 1
      %p182 = scmp.lt.s32.totalorder %s19, 0
      %s183 = scalar_select %p182, %s19, 0
      %s184 = smul.addr %s183, 48
      %s185 = smul.addr %s181, 48
      %s186 = sadd.s32 %s184, %s185
      %s187 = smul.addr %s186, 8
      %s188 = scalar_lea.vmem %s3, %s187
      %p189 = scmp.lt.s32.totalorder %s18, 1
      %s190 = scalar_select %p189, %s18, 1
      %p191 = scmp.lt.s32.totalorder %s19, 0
      %s192 = scalar_select %p191, %s19, 0
      %s193 = smul.addr %s192, 57
      %s194 = smul.addr %s190, 57
      %s195 = sadd.s32 %s193, %s194
      %s196 = smul.addr %s195, 8
      %s197 = scalar_lea.vmem %s0, %s196
      %p198 = scmp.lt.s32.totalorder %s18, 1
      %s199 = scalar_select %p198, %s18, 1
      %p200 = scmp.lt.s32.totalorder %s19, 0
      %s201 = scalar_select %p200, %s19, 0
      %s202 = smul.addr %s201, 48
      %s203 = smul.addr %s199, 48
      %s204 = sadd.s32 %s202, %s203
      %s205 = smul.addr %s204, 8
      %s206 = scalar_lea.vmem %s3, %s205
      %v207 = vld [vmem:[%s197] sm:$0xff]
      %v208 = vld [vmem:[%s197 + $0x8] sm:$0xff]
      %v209 = vld [vmem:[%s197 + $0x10] sm:$0xff]
      %v210 = vld [vmem:[%s197 + $0x18] sm:$0xff]
      %v211 = vld [vmem:[%s197 + $0x20] sm:$0xff]
      %v212 = vld [vmem:[%s197 + $0x28] sm:$0xff]
      %v213 = vld [vmem:[%s197 + $0x30] sm:$0xff]
      %v214 = vld [vmem:[%s197 + $0x38] sm:$0xff]
      %v215 = vld [vmem:[%s197 + $0x40] sm:$0xff]
      %v216 = vld [vmem:[%s197 + $0x48] sm:$0xff]
      %v217 = vld [vmem:[%s197 + $0x50] sm:$0xff]
      %v218 = vld [vmem:[%s197 + $0x58] sm:$0xff]
      %v219 = vld [vmem:[%s197 + $0x60] sm:$0xff]
      %v220 = vld [vmem:[%s197 + $0x68] sm:$0xff]
      %v221 = vld [vmem:[%s197 + $0x70] sm:$0xff]
      %v222 = vld [vmem:[%s197 + $0x78] sm:$0xff]
      %v223 = vld [vmem:[%s197 + $0x80] sm:$0xff]
      %v224 = vld [vmem:[%s197 + $0x88] sm:$0xff]
      %v225 = vld [vmem:[%s197 + $0x90] sm:$0xff]
      %v226 = vld [vmem:[%s197 + $0x98] sm:$0xff]
      %v227 = vld [vmem:[%s197 + $0xa0] sm:$0xff]
      %v228 = vld [vmem:[%s197 + $0xa8] sm:$0xff]
      %v229 = vld [vmem:[%s197 + $0xb0] sm:$0xff]
      %v230 = vld [vmem:[%s197 + $0xb8] sm:$0xff]
      %v231 = vld [vmem:[%s197 + $0xc0] sm:$0xff]
      %v232 = vld [vmem:[%s197 + $0xc8] sm:$0xff]
      %v233 = vld [vmem:[%s197 + $0xd0] sm:$0xff]
      %v234 = vld [vmem:[%s197 + $0xd8] sm:$0xff]
      %v235 = vld [vmem:[%s197 + $0xe0] sm:$0xff]
      %v236 = vld [vmem:[%s197 + $0xe8] sm:$0xff]
      %v237 = vld [vmem:[%s197 + $0xf0] sm:$0xff]
      %v238 = vld [vmem:[%s197 + $0xf8] sm:$0xff]
      %v239 = vld [vmem:[%s197 + $0x100] sm:$0xff]
      %v240 = vld [vmem:[%s197 + $0x108] sm:$0xff]
      %v241 = vld [vmem:[%s197 + $0x110] sm:$0xff]
      %v242 = vld [vmem:[%s197 + $0x118] sm:$0xff]
      %v243 = vld [vmem:[%s197 + $0x120] sm:$0xff]
      %v244 = vld [vmem:[%s197 + $0x128] sm:$0xff]
      %v245 = vld [vmem:[%s197 + $0x130] sm:$0xff]
      %v246 = vld [vmem:[%s197 + $0x138] sm:$0xff]
      %v247 = vld [vmem:[%s197 + $0x140] sm:$0xff]
      %v248 = vld [vmem:[%s197 + $0x148] sm:$0xff]
      %v249 = vld [vmem:[%s197 + $0x150] sm:$0xff]
      %v250 = vld [vmem:[%s197 + $0x158] sm:$0xff]
      %v251 = vld [vmem:[%s197 + $0x160] sm:$0xff]
      %v252 = vld [vmem:[%s197 + $0x168] sm:$0xff]
      %v253 = vld [vmem:[%s197 + $0x170] sm:$0xff]
      %v254 = vld [vmem:[%s197 + $0x178] sm:$0xff]
      %v255 = vld [vmem:[%s197 + $0x180] sm:$0xff]
      %v256 = vld [vmem:[%s197 + $0x188] sm:$0xff]
      %v257 = vld [vmem:[%s197 + $0x190] sm:$0xff]
      %v258 = vld [vmem:[%s197 + $0x198] sm:$0xff]
      %v259 = vld [vmem:[%s197 + $0x1a0] sm:$0xff]
      %v260 = vld [vmem:[%s197 + $0x1a8] sm:$0xff]
      %v261 = vld [vmem:[%s197 + $0x1b0] sm:$0xff]
      %v262 = vld [vmem:[%s2] sm:$0x1]
      %v263 = vld [vmem:[%s1] sm:$0xff]
      %v264 = vld [vmem:[%s1 + $0x8] sm:$0x3]
      %vm265 = vcmask 80896
      %v267 = vsel %vm265, %v207, 0
      %v270 = vsel %vm265, %v208, 0
      %v273 = vsel %vm265, %v209, 0
      %v276 = vsel %vm265, %v210, 0
      %v279 = vsel %vm265, %v211, 0
      %v282 = vsel %vm265, %v212, 0
      %v285 = vsel %vm265, %v213, 0
      %v288 = vsel %vm265, %v214, 0
      %v291 = vsel %vm265, %v215, 0
      %v294 = vsel %vm265, %v216, 0
      %v297 = vsel %vm265, %v217, 0
      %v300 = vsel %vm265, %v218, 0
      %v303 = vsel %vm265, %v219, 0
      %v306 = vsel %vm265, %v220, 0
      %v309 = vsel %vm265, %v221, 0
      %v312 = vsel %vm265, %v222, 0
      %v315 = vsel %vm265, %v223, 0
      %v318 = vsel %vm265, %v224, 0
      %v321 = vsel %vm265, %v225, 0
      %v324 = vsel %vm265, %v226, 0
      %v327 = vsel %vm265, %v227, 0
      %v330 = vsel %vm265, %v228, 0
      %v333 = vsel %vm265, %v229, 0
      %v336 = vsel %vm265, %v230, 0
      %v339 = vsel %vm265, %v231, 0
      %v342 = vsel %vm265, %v232, 0
      %v345 = vsel %vm265, %v233, 0
      %v348 = vsel %vm265, %v234, 0
      %v351 = vsel %vm265, %v235, 0
      %v354 = vsel %vm265, %v236, 0
      %v357 = vsel %vm265, %v237, 0
      %v360 = vsel %vm265, %v238, 0
      %v363 = vsel %vm265, %v239, 0
      %v366 = vsel %vm265, %v240, 0
      %v369 = vsel %vm265, %v241, 0
      %v372 = vsel %vm265, %v242, 0
      %v375 = vsel %vm265, %v243, 0
      %v378 = vsel %vm265, %v244, 0
      %v381 = vsel %vm265, %v245, 0
      %v384 = vsel %vm265, %v246, 0
      %v387 = vsel %vm265, %v247, 0
      %v390 = vsel %vm265, %v248, 0
      %v393 = vsel %vm265, %v249, 0
      %v396 = vsel %vm265, %v250, 0
      %v399 = vsel %vm265, %v251, 0
      %v402 = vsel %vm265, %v252, 0
      %v405 = vsel %vm265, %v253, 0
      %v408 = vsel %vm265, %v254, 0
      %vm410 = vcmask 1041408
      %v412 = vsel %vm410, %v264, 0
      %414 = vmatprep.subr.mxu0 0.0
      %415 = vmatpush1.msra.mxu0 %v263
      %416 = vmatprep.subr.mxu0 0.0
      %417 = vmatpush1.msra.mxu0 %v412
      %418 = vmatprep.subr.mxu0 0.0
      %419 = vmatpush1.msra.mxu0 0.0
      %420 = vmatprep.subr.mxu0 0.0
      %421 = vmatpush1.msra.mxu0 0.0
      %422 = vmatprep.subr.mxu0 0.0
      %423 = vmatpush1.msra.mxu0 0.0
      %424 = vmatprep.subr.mxu0 0.0
      %425 = vmatpush1.msra.mxu0 0.0
      %426 = vmatprep.subr.mxu0 0.0
      %427 = vmatpush1.msra.mxu0 0.0
      %428 = vmatprep.subr.mxu0 0.0
      %429 = vmatpush1.msra.mxu0 0.0
      %430 = vmatprep.subr.mxu0 0.0
      %431 = vmatpush1.msra.mxu0 0.0
      %432 = vmatprep.subr.mxu0 0.0
      %433 = vmatpush1.msra.mxu0 0.0
      %434 = vmatprep.subr.mxu0 0.0
      %435 = vmatpush1.msra.mxu0 0.0
      %436 = vmatprep.subr.mxu0 0.0
      %437 = vmatpush1.msra.mxu0 0.0
      %438 = vmatprep.subr.mxu0 0.0
      %439 = vmatpush1.msra.mxu0 0.0
      %440 = vmatprep.subr.mxu0 0.0
      %441 = vmatpush1.msra.mxu0 0.0
      %442 = vmatprep.subr.mxu0 0.0
      %443 = vmatpush1.msra.mxu0 0.0
      %444 = vmatprep.subr.mxu0 0.0
      %445 = vmatpush1.msra.mxu0 0.0
      %446 = vmatprep.subr.mxu0 0.0
      %447 = vmatpush1.msra.mxu0 0.0
      %448 = vmatprep.subr.mxu0 0.0
      %449 = vmatpush1.msra.mxu0 0.0
      %450 = vmatprep.subr.mxu0 0.0
      %451 = vmatpush1.msra.mxu0 0.0
      %452 = vmatprep.subr.mxu0 0.0
      %453 = vmatpush1.msra.mxu0 0.0
      %454 = vmatprep.subr.mxu0 0.0
      %455 = vmatpush1.msra.mxu0 0.0
      %456 = vmatprep.subr.mxu0 0.0
      %457 = vmatpush1.msra.mxu0 0.0
      %458 = vmatprep.subr.mxu0 0.0
      %459 = vmatpush1.msra.mxu0 0.0
      %460 = vmatprep.subr.mxu0 0.0
      %461 = vmatpush1.msra.mxu0 0.0
      %462 = vmatprep.subr.mxu0 0.0
      %463 = vmatpush1.msra.mxu0 0.0
      %464 = vmatprep.subr.mxu0 0.0
      %465 = vmatpush1.msra.mxu0 0.0
      %466 = vmatprep.subr.mxu0 0.0
      %467 = vmatpush1.msra.mxu0 0.0
      %468 = vmatprep.subr.mxu0 0.0
      %469 = vmatpush1.msra.mxu0 0.0
      %470 = vmatprep.subr.mxu0 0.0
      %471 = vmatpush1.msra.mxu0 0.0
      %472 = vmatprep.subr.mxu0 0.0
      %473 = vmatpush1.msra.mxu0 0.0
      %474 = vmatprep.subr.mxu0 0.0
      %475 = vmatpush1.msra.mxu0 0.0
      %476 = vmatprep.subr.mxu0 0.0
      %477 = vmatpush1.msra.mxu0 0.0
      %478 = vmatprep.mubr.f32.mxu0 0.0
      %479 = vmatmul.mubr.f32.gmra.mrb[0].mxu0 %v267
      %v480 = vpop.f32.mrb[0].mxu0
      %v481 = vadd.f32 0.0, %v480
      %v482 = vpop.f32.mrb[0].mxu0
      %483 = vmatprep.mubr.f32.mxu0 0.0
      %484 = vmatmul.mubr.f32.gmra.mrb[0].mxu0 %v270
      %v485 = vpop.f32.mrb[0].mxu0
      %v486 = vadd.f32 0.0, %v485
      %v487 = vpop.f32.mrb[0].mxu0
      %488 = vmatprep.mubr.f32.mxu0 0.0
      %489 = vmatmul.mubr.f32.gmra.mrb[0].mxu0 %v273
      %v490 = vpop.f32.mrb[0].mxu0
      %v491 = vadd.f32 0.0, %v490
      %v492 = vpop.f32.mrb[0].mxu0
      %493 = vmatprep.mubr.f32.mxu0 0.0
      %494 = vmatmul.mubr.f32.gmra.mrb[0].mxu0 %v276
      %v495 = vpop.f32.mrb[0].mxu0
      %v496 = vadd.f32 0.0, %v495
      %v497 = vpop.f32.mrb[0].mxu0
      %498 = vmatprep.mubr.f32.mxu0 0.0
      %499 = vmatmul.mubr.f32.gmra.mrb[0].mxu0 %v279
      %v500 = vpop.f32.mrb[0].mxu0
      %v501 = vadd.f32 0.0, %v500
      %v502 = vpop.f32.mrb[0].mxu0
      %503 = vmatprep.mubr.f32.mxu0 0.0
      %504 = vmatmul.mubr.f32.gmra.mrb[0].mxu0 %v282
      %v505 = vpop.f32.mrb[0].mxu0
      %v506 = vadd.f32 0.0, %v505
      %v507 = vpop.f32.mrb[0].mxu0
      %508 = vmatprep.mubr.f32.mxu0 0.0
      %509 = vmatmul.mubr.f32.gmra.mrb[0].mxu0 %v285
      %v510 = vpop.f32.mrb[0].mxu0
      %v511 = vadd.f32 0.0, %v510
      %v512 = vpop.f32.mrb[0].mxu0
      %513 = vmatprep.mubr.f32.mxu0 0.0
      %514 = vmatmul.mubr.f32.gmra.mrb[0].mxu0 %v288
      %v515 = vpop.f32.mrb[0].mxu0
      %v516 = vadd.f32 0.0, %v515
      %v517 = vpop.f32.mrb[0].mxu0
      %518 = vmatprep.mubr.f32.mxu0 0.0
      %519 = vmatmul.mubr.f32.gmra.mrb[0].mxu0 %v291
      %v520 = vpop.f32.mrb[0].mxu0
      %v521 = vadd.f32 0.0, %v520
      %v522 = vpop.f32.mrb[0].mxu0
      %523 = vmatprep.mubr.f32.mxu0 0.0
      %524 = vmatmul.mubr.f32.gmra.mrb[0].mxu0 %v294
      %v525 = vpop.f32.mrb[0].mxu0
      %v526 = vadd.f32 0.0, %v525
      %v527 = vpop.f32.mrb[0].mxu0
      %528 = vmatprep.mubr.f32.mxu0 0.0
      %529 = vmatmul.mubr.f32.gmra.mrb[0].mxu0 %v297
      %v530 = vpop.f32.mrb[0].mxu0
      %v531 = vadd.f32 0.0, %v530
      %v532 = vpop.f32.mrb[0].mxu0
      %533 = vmatprep.mubr.f32.mxu0 0.0
      %534 = vmatmul.mubr.f32.gmra.mrb[0].mxu0 %v300
      %v535 = vpop.f32.mrb[0].mxu0
      %v536 = vadd.f32 0.0, %v535
      %v537 = vpop.f32.mrb[0].mxu0
      %538 = vmatprep.mubr.f32.mxu0 0.0
      %539 = vmatmul.mubr.f32.gmra.mrb[0].mxu0 %v303
      %v540 = vpop.f32.mrb[0].mxu0
      %v541 = vadd.f32 0.0, %v540
      %v542 = vpop.f32.mrb[0].mxu0
      %543 = vmatprep.mubr.f32.mxu0 0.0
      %544 = vmatmul.mubr.f32.gmra.mrb[0].mxu0 %v306
      %v545 = vpop.f32.mrb[0].mxu0
      %v546 = vadd.f32 0.0, %v545
      %v547 = vpop.f32.mrb[0].mxu0
      %548 = vmatprep.mubr.f32.mxu0 0.0
      %549 = vmatmul.mubr.f32.gmra.mrb[0].mxu0 %v309
      %v550 = vpop.f32.mrb[0].mxu0
      %v551 = vadd.f32 0.0, %v550
      %v552 = vpop.f32.mrb[0].mxu0
      %553 = vmatprep.mubr.f32.mxu0 0.0
      %554 = vmatmul.mubr.f32.gmra.mrb[0].mxu0 %v312
      %v555 = vpop.f32.mrb[0].mxu0
      %v556 = vadd.f32 0.0, %v555
      %v557 = vpop.f32.mrb[0].mxu0
      %558 = vmatprep.mubr.f32.mxu0 0.0
      %559 = vmatmul.mubr.f32.gmra.mrb[0].mxu0 %v315
      %v560 = vpop.f32.mrb[0].mxu0
      %v561 = vadd.f32 0.0, %v560
      %v562 = vpop.f32.mrb[0].mxu0
      %563 = vmatprep.mubr.f32.mxu0 0.0
      %564 = vmatmul.mubr.f32.gmra.mrb[0].mxu0 %v318
      %v565 = vpop.f32.mrb[0].mxu0
      %v566 = vadd.f32 0.0, %v565
      %v567 = vpop.f32.mrb[0].mxu0
      %568 = vmatprep.mubr.f32.mxu0 0.0
      %569 = vmatmul.mubr.f32.gmra.mrb[0].mxu0 %v321
      %v570 = vpop.f32.mrb[0].mxu0
      %v571 = vadd.f32 0.0, %v570
      %v572 = vpop.f32.mrb[0].mxu0
      %573 = vmatprep.mubr.f32.mxu0 0.0
      %574 = vmatmul.mubr.f32.gmra.mrb[0].mxu0 %v324
      %v575 = vpop.f32.mrb[0].mxu0
      %v576 = vadd.f32 0.0, %v575
      %v577 = vpop.f32.mrb[0].mxu0
      %578 = vmatprep.mubr.f32.mxu0 0.0
      %579 = vmatmul.mubr.f32.gmra.mrb[0].mxu0 %v327
      %v580 = vpop.f32.mrb[0].mxu0
      %v581 = vadd.f32 0.0, %v580
      %v582 = vpop.f32.mrb[0].mxu0
      %583 = vmatprep.mubr.f32.mxu0 0.0
      %584 = vmatmul.mubr.f32.gmra.mrb[0].mxu0 %v330
      %v585 = vpop.f32.mrb[0].mxu0
      %v586 = vadd.f32 0.0, %v585
      %v587 = vpop.f32.mrb[0].mxu0
      %588 = vmatprep.mubr.f32.mxu0 0.0
      %589 = vmatmul.mubr.f32.gmra.mrb[0].mxu0 %v333
      %v590 = vpop.f32.mrb[0].mxu0
      %v591 = vadd.f32 0.0, %v590
      %v592 = vpop.f32.mrb[0].mxu0
      %593 = vmatprep.mubr.f32.mxu0 0.0
      %594 = vmatmul.mubr.f32.gmra.mrb[0].mxu0 %v336
      %v595 = vpop.f32.mrb[0].mxu0
      %v596 = vadd.f32 0.0, %v595
      %v597 = vpop.f32.mrb[0].mxu0
      %598 = vmatprep.mubr.f32.mxu0 0.0
      %599 = vmatmul.mubr.f32.gmra.mrb[0].mxu0 %v339
      %v600 = vpop.f32.mrb[0].mxu0
      %v601 = vadd.f32 0.0, %v600
      %v602 = vpop.f32.mrb[0].mxu0
      %603 = vmatprep.mubr.f32.mxu0 0.0
      %604 = vmatmul.mubr.f32.gmra.mrb[0].mxu0 %v342
      %v605 = vpop.f32.mrb[0].mxu0
      %v606 = vadd.f32 0.0, %v605
      %v607 = vpop.f32.mrb[0].mxu0
      %608 = vmatprep.mubr.f32.mxu0 0.0
      %609 = vmatmul.mubr.f32.gmra.mrb[0].mxu0 %v345
      %v610 = vpop.f32.mrb[0].mxu0
      %v611 = vadd.f32 0.0, %v610
      %v612 = vpop.f32.mrb[0].mxu0
      %613 = vmatprep.mubr.f32.mxu0 0.0
      %614 = vmatmul.mubr.f32.gmra.mrb[0].mxu0 %v348
      %v615 = vpop.f32.mrb[0].mxu0
      %v616 = vadd.f32 0.0, %v615
      %v617 = vpop.f32.mrb[0].mxu0
      %618 = vmatprep.mubr.f32.mxu0 0.0
      %619 = vmatmul.mubr.f32.gmra.mrb[0].mxu0 %v351
      %v620 = vpop.f32.mrb[0].mxu0
      %v621 = vadd.f32 0.0, %v620
      %v622 = vpop.f32.mrb[0].mxu0
      %623 = vmatprep.mubr.f32.mxu0 0.0
      %624 = vmatmul.mubr.f32.gmra.mrb[0].mxu0 %v354
      %v625 = vpop.f32.mrb[0].mxu0
      %v626 = vadd.f32 0.0, %v625
      %v627 = vpop.f32.mrb[0].mxu0
      %628 = vmatprep.mubr.f32.mxu0 0.0
      %629 = vmatmul.mubr.f32.gmra.mrb[0].mxu0 %v357
      %v630 = vpop.f32.mrb[0].mxu0
      %v631 = vadd.f32 0.0, %v630
      %v632 = vpop.f32.mrb[0].mxu0
      %633 = vmatprep.mubr.f32.mxu0 0.0
      %634 = vmatmul.mubr.f32.gmra.mrb[0].mxu0 %v360
      %v635 = vpop.f32.mrb[0].mxu0
      %v636 = vadd.f32 0.0, %v635
      %v637 = vpop.f32.mrb[0].mxu0
      %638 = vmatprep.mubr.f32.mxu0 0.0
      %639 = vmatmul.mubr.f32.gmra.mrb[0].mxu0 %v363
      %v640 = vpop.f32.mrb[0].mxu0
      %v641 = vadd.f32 0.0, %v640
      %v642 = vpop.f32.mrb[0].mxu0
      %643 = vmatprep.mubr.f32.mxu0 0.0
      %644 = vmatmul.mubr.f32.gmra.mrb[0].mxu0 %v366
      %v645 = vpop.f32.mrb[0].mxu0
      %v646 = vadd.f32 0.0, %v645
      %v647 = vpop.f32.mrb[0].mxu0
      %648 = vmatprep.mubr.f32.mxu0 0.0
      %649 = vmatmul.mubr.f32.gmra.mrb[0].mxu0 %v369
      %v650 = vpop.f32.mrb[0].mxu0
      %v651 = vadd.f32 0.0, %v650
      %v652 = vpop.f32.mrb[0].mxu0
      %653 = vmatprep.mubr.f32.mxu0 0.0
      %654 = vmatmul.mubr.f32.gmra.mrb[0].mxu0 %v372
      %v655 = vpop.f32.mrb[0].mxu0
      %v656 = vadd.f32 0.0, %v655
      %v657 = vpop.f32.mrb[0].mxu0
      %658 = vmatprep.mubr.f32.mxu0 0.0
      %659 = vmatmul.mubr.f32.gmra.mrb[0].mxu0 %v375
      %v660 = vpop.f32.mrb[0].mxu0
      %v661 = vadd.f32 0.0, %v660
      %v662 = vpop.f32.mrb[0].mxu0
      %663 = vmatprep.mubr.f32.mxu0 0.0
      %664 = vmatmul.mubr.f32.gmra.mrb[0].mxu0 %v378
      %v665 = vpop.f32.mrb[0].mxu0
      %v666 = vadd.f32 0.0, %v665
      %v667 = vpop.f32.mrb[0].mxu0
      %668 = vmatprep.mubr.f32.mxu0 0.0
      %669 = vmatmul.mubr.f32.gmra.mrb[0].mxu0 %v381
      %v670 = vpop.f32.mrb[0].mxu0
      %v671 = vadd.f32 0.0, %v670
      %v672 = vpop.f32.mrb[0].mxu0
      %673 = vmatprep.mubr.f32.mxu0 0.0
      %674 = vmatmul.mubr.f32.gmra.mrb[0].mxu0 %v384
      %v675 = vpop.f32.mrb[0].mxu0
      %v676 = vadd.f32 0.0, %v675
      %v677 = vpop.f32.mrb[0].mxu0
      %678 = vmatprep.mubr.f32.mxu0 0.0
      %679 = vmatmul.mubr.f32.gmra.mrb[0].mxu0 %v387
      %v680 = vpop.f32.mrb[0].mxu0
      %v681 = vadd.f32 0.0, %v680
      %v682 = vpop.f32.mrb[0].mxu0
      %683 = vmatprep.mubr.f32.mxu0 0.0
      %684 = vmatmul.mubr.f32.gmra.mrb[0].mxu0 %v390
      %v685 = vpop.f32.mrb[0].mxu0
      %v686 = vadd.f32 0.0, %v685
      %v687 = vpop.f32.mrb[0].mxu0
      %688 = vmatprep.mubr.f32.mxu0 0.0
      %689 = vmatmul.mubr.f32.gmra.mrb[0].mxu0 %v393
      %v690 = vpop.f32.mrb[0].mxu0
      %v691 = vadd.f32 0.0, %v690
      %v692 = vpop.f32.mrb[0].mxu0
      %693 = vmatprep.mubr.f32.mxu0 0.0
      %694 = vmatmul.mubr.f32.gmra.mrb[0].mxu0 %v396
      %v695 = vpop.f32.mrb[0].mxu0
      %v696 = vadd.f32 0.0, %v695
      %v697 = vpop.f32.mrb[0].mxu0
      %698 = vmatprep.mubr.f32.mxu0 0.0
      %699 = vmatmul.mubr.f32.gmra.mrb[0].mxu0 %v399
      %v700 = vpop.f32.mrb[0].mxu0
      %v701 = vadd.f32 0.0, %v700
      %v702 = vpop.f32.mrb[0].mxu0
      %703 = vmatprep.mubr.f32.mxu0 0.0
      %704 = vmatmul.mubr.f32.gmra.mrb[0].mxu0 %v402
      %v705 = vpop.f32.mrb[0].mxu0
      %v706 = vadd.f32 0.0, %v705
      %v707 = vpop.f32.mrb[0].mxu0
      %708 = vmatprep.mubr.f32.mxu0 0.0
      %709 = vmatmul.mubr.f32.gmra.mrb[0].mxu0 %v405
      %v710 = vpop.f32.mrb[0].mxu0
      %v711 = vadd.f32 0.0, %v710
      %v712 = vpop.f32.mrb[0].mxu0
      %713 = vmatprep.mubr.f32.mxu0 0.0
      %714 = vmatmul.mubr.f32.gmra.mrb[0].mxu0 %v408
      %v715 = vpop.f32.mrb[0].mxu0
      %v716 = vadd.f32 0.0, %v715
      %v717 = vpop.f32.mrb[0].mxu0
      %718 = vdwg.mxu0
      %v720 = vlaneseq
      %v721 = vshrl.u32 %v720, 7
      %v722 = vsub.s32 0, %v721
      %v723 = vrot.slane %v262, %v722
      %v725 = vadd.f32 %v723, %v481
      %v726 = vadd.f32 %v723, %v486
      %v727 = vadd.f32 %v723, %v491
      %v728 = vadd.f32 %v723, %v496
      %v729 = vadd.f32 %v723, %v501
      %v730 = vadd.f32 %v723, %v506
      %v731 = vadd.f32 %v723, %v511
      %v732 = vadd.f32 %v723, %v516
      %v733 = vadd.f32 %v723, %v521
      %v734 = vadd.f32 %v723, %v526
      %v735 = vadd.f32 %v723, %v531
      %v736 = vadd.f32 %v723, %v536
      %v737 = vadd.f32 %v723, %v541
      %v738 = vadd.f32 %v723, %v546
      %v739 = vadd.f32 %v723, %v551
      %v740 = vadd.f32 %v723, %v556
      %v741 = vadd.f32 %v723, %v561
      %v742 = vadd.f32 %v723, %v566
      %v743 = vadd.f32 %v723, %v571
      %v744 = vadd.f32 %v723, %v576
      %v745 = vadd.f32 %v723, %v581
      %v746 = vadd.f32 %v723, %v586
      %v747 = vadd.f32 %v723, %v591
      %v748 = vadd.f32 %v723, %v596
      %v749 = vadd.f32 %v723, %v601
      %v750 = vadd.f32 %v723, %v606
      %v751 = vadd.f32 %v723, %v611
      %v752 = vadd.f32 %v723, %v616
      %v753 = vadd.f32 %v723, %v621
      %v754 = vadd.f32 %v723, %v626
      %v755 = vadd.f32 %v723, %v631
      %v756 = vadd.f32 %v723, %v636
      %v757 = vadd.f32 %v723, %v641
      %v758 = vadd.f32 %v723, %v646
      %v759 = vadd.f32 %v723, %v651
      %v760 = vadd.f32 %v723, %v656
      %v761 = vadd.f32 %v723, %v661
      %v762 = vadd.f32 %v723, %v666
      %v763 = vadd.f32 %v723, %v671
      %v764 = vadd.f32 %v723, %v676
      %v765 = vadd.f32 %v723, %v681
      %v766 = vadd.f32 %v723, %v686
      %v767 = vadd.f32 %v723, %v691
      %v768 = vadd.f32 %v723, %v696
      %v769 = vadd.f32 %v723, %v701
      %v770 = vadd.f32 %v723, %v706
      %v771 = vadd.f32 %v723, %v711
      %v772 = vadd.f32 %v723, %v716
      %s773 = scalar_lea.vmem %s1, 16
      %v774 = vld [vmem:[%s773] sm:$0xff]
      %v775 = vld [vmem:[%s773 + $0x8] sm:$0x3]
      %vm777 = vcmask 1046528
      %v778 = vrot.slane %v207, 1
      %v779 = vrot.slane %v208, 1
      %v780 = vsel %vm777, %v778, %v779
      %v781 = vrot.slane %v209, 1
      %v782 = vsel %vm777, %v779, %v781
      %v783 = vrot.slane %v210, 1
      %v784 = vsel %vm777, %v781, %v783
      %v785 = vrot.slane %v211, 1
      %v786 = vsel %vm777, %v783, %v785
      %v787 = vrot.slane %v212, 1
      %v788 = vsel %vm777, %v785, %v787
      %v789 = vrot.slane %v213, 1
      %v790 = vsel %vm777, %v787, %v789
      %v791 = vrot.slane %v214, 1
      %v792 = vsel %vm777, %v789, %v791
      %v793 = vrot.slane %v215, 1
      %v794 = vsel %vm777, %v791, %v793
      %v795 = vrot.slane %v216, 1
      %v796 = vsel %vm777, %v793, %v795
      %v797 = vrot.slane %v217, 1
      %v798 = vsel %vm777, %v795, %v797
      %v799 = vrot.slane %v218, 1
      %v800 = vsel %vm777, %v797, %v799
      %v801 = vrot.slane %v219, 1
      %v802 = vsel %vm777, %v799, %v801
      %v803 = vrot.slane %v220, 1
      %v804 = vsel %vm777, %v801, %v803
      %v805 = vrot.slane %v221, 1
      %v806 = vsel %vm777, %v803, %v805
      %v807 = vrot.slane %v222, 1
      %v808 = vsel %vm777, %v805, %v807
      %v809 = vrot.slane %v223, 1
      %v810 = vsel %vm777, %v807, %v809
      %v811 = vrot.slane %v224, 1
      %v812 = vsel %vm777, %v809, %v811
      %v813 = vrot.slane %v225, 1
      %v814 = vsel %vm777, %v811, %v813
      %v815 = vrot.slane %v226, 1
      %v816 = vsel %vm777, %v813, %v815
      %v817 = vrot.slane %v227, 1
      %v818 = vsel %vm777, %v815, %v817
      %v819 = vrot.slane %v228, 1
      %v820 = vsel %vm777, %v817, %v819
      %v821 = vrot.slane %v229, 1
      %v822 = vsel %vm777, %v819, %v821
      %v823 = vrot.slane %v230, 1
      %v824 = vsel %vm777, %v821, %v823
      %v825 = vrot.slane %v231, 1
      %v826 = vsel %vm777, %v823, %v825
      %v827 = vrot.slane %v232, 1
      %v828 = vsel %vm777, %v825, %v827
      %v829 = vrot.slane %v233, 1
      %v830 = vsel %vm777, %v827, %v829
      %v831 = vrot.slane %v234, 1
      %v832 = vsel %vm777, %v829, %v831
      %v833 = vrot.slane %v235, 1
      %v834 = vsel %vm777, %v831, %v833
      %v835 = vrot.slane %v236, 1
      %v836 = vsel %vm777, %v833, %v835
      %v837 = vrot.slane %v237, 1
      %v838 = vsel %vm777, %v835, %v837
      %v839 = vrot.slane %v238, 1
      %v840 = vsel %vm777, %v837, %v839
      %v841 = vrot.slane %v239, 1
      %v842 = vsel %vm777, %v839, %v841
      %v843 = vrot.slane %v240, 1
      %v844 = vsel %vm777, %v841, %v843
      %v845 = vrot.slane %v241, 1
      %v846 = vsel %vm777, %v843, %v845
      %v847 = vrot.slane %v242, 1
      %v848 = vsel %vm777, %v845, %v847
      %v849 = vrot.slane %v243, 1
      %v850 = vsel %vm777, %v847, %v849
      %v851 = vrot.slane %v244, 1
      %v852 = vsel %vm777, %v849, %v851
      %v853 = vrot.slane %v245, 1
      %v854 = vsel %vm777, %v851, %v853
      %v855 = vrot.slane %v246, 1
      %v856 = vsel %vm777, %v853, %v855
      %v857 = vrot.slane %v247, 1
      %v858 = vsel %vm777, %v855, %v857
      %v859 = vrot.slane %v248, 1
      %v860 = vsel %vm777, %v857, %v859
      %v861 = vrot.slane %v249, 1
      %v862 = vsel %vm777, %v859, %v861
      %v863 = vrot.slane %v250, 1
      %v864 = vsel %vm777, %v861, %v863
      %v865 = vrot.slane %v251, 1
      %v866 = vsel %vm777, %v863, %v865
      %v867 = vrot.slane %v252, 1
      %v868 = vsel %vm777, %v865, %v867
      %v869 = vrot.slane %v253, 1
      %v870 = vsel %vm777, %v867, %v869
      %v871 = vrot.slane %v254, 1
      %v872 = vsel %vm777, %v869, %v871
      %v873 = vrot.slane %v255, 1
      %v874 = vsel %vm777, %v871, %v873
      %v875 = vsel %vm265, %v780, 0
      %v877 = vsel %vm265, %v782, 0
      %v879 = vsel %vm265, %v784, 0
      %v881 = vsel %vm265, %v786, 0
      %v883 = vsel %vm265, %v788, 0
      %v885 = vsel %vm265, %v790, 0
      %v887 = vsel %vm265, %v792, 0
      %v889 = vsel %vm265, %v794, 0
      %v891 = vsel %vm265, %v796, 0
      %v893 = vsel %vm265, %v798, 0
      %v895 = vsel %vm265, %v800, 0
      %v897 = vsel %vm265, %v802, 0
      %v899 = vsel %vm265, %v804, 0
      %v901 = vsel %vm265, %v806, 0
      %v903 = vsel %vm265, %v808, 0
      %v905 = vsel %vm265, %v810, 0
      %v907 = vsel %vm265, %v812, 0
      %v909 = vsel %vm265, %v814, 0
      %v911 = vsel %vm265, %v816, 0
      %v913 = vsel %vm265, %v818, 0
      %v915 = vsel %vm265, %v820, 0
      %v917 = vsel %vm265, %v822, 0
      %v919 = vsel %vm265, %v824, 0
      %v921 = vsel %vm265, %v826, 0
      %v923 = vsel %vm265, %v828, 0
      %v925 = vsel %vm265, %v830, 0
      %v927 = vsel %vm265, %v832, 0
      %v929 = vsel %vm265, %v834, 0
      %v931 = vsel %vm265, %v836, 0
      %v933 = vsel %vm265, %v838, 0
      %v935 = vsel %vm265, %v840, 0
      %v937 = vsel %vm265, %v842, 0
      %v939 = vsel %vm265, %v844, 0
      %v941 = vsel %vm265, %v846, 0
      %v943 = vsel %vm265, %v848, 0
      %v945 = vsel %vm265, %v850, 0
      %v947 = vsel %vm265, %v852, 0
      %v949 = vsel %vm265, %v854, 0
      %v951 = vsel %vm265, %v856, 0
      %v953 = vsel %vm265, %v858, 0
      %v955 = vsel %vm265, %v860, 0
      %v957 = vsel %vm265, %v862, 0
      %v959 = vsel %vm265, %v864, 0
      %v961 = vsel %vm265, %v866, 0
      %v963 = vsel %vm265, %v868, 0
      %v965 = vsel %vm265, %v870, 0
      %v967 = vsel %vm265, %v872, 0
      %v969 = vsel %vm265, %v874, 0
      %v972 = vsel %vm410, %v775, 0
      %974 = vmatprep.subr.mxu0 0.0
      %975 = vmatpush1.msra.mxu0 %v774
      %976 = vmatprep.subr.mxu0 0.0
      %977 = vmatpush1.msra.mxu0 %v972
      %978 = vmatprep.subr.mxu0 0.0
      %979 = vmatpush1.msra.mxu0 0.0
      %980 = vmatprep.subr.mxu0 0.0
      %981 = vmatpush1.msra.mxu0 0.0
      %982 = vmatprep.subr.mxu0 0.0
      %983 = vmatpush1.msra.mxu0 0.0
      %984 = vmatprep.subr.mxu0 0.0
      %985 = vmatpush1.msra.mxu0 0.0
      %986 = vmatprep.subr.mxu0 0.0
      %987 = vmatpush1.msra.mxu0 0.0
      %988 = vmatprep.subr.mxu0 0.0
      %989 = vmatpush1.msra.mxu0 0.0
      %990 = vmatprep.subr.mxu0 0.0
      %991 = vmatpush1.msra.mxu0 0.0
      %992 = vmatprep.subr.mxu0 0.0
      %993 = vmatpush1.msra.mxu0 0.0
      %994 = vmatprep.subr.mxu0 0.0
      %995 = vmatpush1.msra.mxu0 0.0
      %996 = vmatprep.subr.mxu0 0.0
      %997 = vmatpush1.msra.mxu0 0.0
      %998 = vmatprep.subr.mxu0 0.0
      %999 = vmatpush1.msra.mxu0 0.0
      %1000 = vmatprep.subr.mxu0 0.0
      %1001 = vmatpush1.msra.mxu0 0.0
      %1002 = vmatprep.subr.mxu0 0.0
      %1003 = vmatpush1.msra.mxu0 0.0
      %1004 = vmatprep.subr.mxu0 0.0
      %1005 = vmatpush1.msra.mxu0 0.0
      %1006 = vmatprep.subr.mxu0 0.0
      %1007 = vmatpush1.msra.mxu0 0.0
      %1008 = vmatprep.subr.mxu0 0.0
      %1009 = vmatpush1.msra.mxu0 0.0
      %1010 = vmatprep.subr.mxu0 0.0
      %1011 = vmatpush1.msra.mxu0 0.0
      %1012 = vmatprep.subr.mxu0 0.0
      %1013 = vmatpush1.msra.mxu0 0.0
      %1014 = vmatprep.subr.mxu0 0.0
      %1015 = vmatpush1.msra.mxu0 0.0
      %1016 = vmatprep.subr.mxu0 0.0
      %1017 = vmatpush1.msra.mxu0 0.0
      %1018 = vmatprep.subr.mxu0 0.0
      %1019 = vmatpush1.msra.mxu0 0.0
      %1020 = vmatprep.subr.mxu0 0.0
      %1021 = vmatpush1.msra.mxu0 0.0
      %1022 = vmatprep.subr.mxu0 0.0
      %1023 = vmatpush1.msra.mxu0 0.0
      %1024 = vmatprep.subr.mxu0 0.0
      %1025 = vmatpush1.msra.mxu0 0.0
      %1026 = vmatprep.subr.mxu0 0.0
      %1027 = vmatpush1.msra.mxu0 0.0
      %1028 = vmatprep.subr.mxu0 0.0
      %1029 = vmatpush1.msra.mxu0 0.0
      %1030 = vmatprep.subr.mxu0 0.0
      %1031 = vmatpush1.msra.mxu0 0.0
      %1032 = vmatprep.subr.mxu0 0.0
      %1033 = vmatpush1.msra.mxu0 0.0
      %1034 = vmatprep.subr.mxu0 0.0
      %1035 = vmatpush1.msra.mxu0 0.0
      %1036 = vmatprep.subr.mxu0 0.0
      %1037 = vmatpush1.msra.mxu0 0.0
      %1038 = vmatprep.mubr.f32.mxu0 0.0
      %1039 = vmatmul.mubr.f32.gmra.mrb[0].mxu0 %v875
      %v1040 = vpop.f32.mrb[0].mxu0
      %v1041 = vadd.f32 0.0, %v1040
      %v1042 = vpop.f32.mrb[0].mxu0
      %1043 = vmatprep.mubr.f32.mxu0 0.0
      %1044 = vmatmul.mubr.f32.gmra.mrb[0].mxu0 %v877
      %v1045 = vpop.f32.mrb[0].mxu0
      %v1046 = vadd.f32 0.0, %v1045
      %v1047 = vpop.f32.mrb[0].mxu0
      %1048 = vmatprep.mubr.f32.mxu0 0.0
      %1049 = vmatmul.mubr.f32.gmra.mrb[0].mxu0 %v879
      %v1050 = vpop.f32.mrb[0].mxu0
      %v1051 = vadd.f32 0.0, %v1050
      %v1052 = vpop.f32.mrb[0].mxu0
      %1053 = vmatprep.mubr.f32.mxu0 0.0
      %1054 = vmatmul.mubr.f32.gmra.mrb[0].mxu0 %v881
      %v1055 = vpop.f32.mrb[0].mxu0
      %v1056 = vadd.f32 0.0, %v1055
      %v1057 = vpop.f32.mrb[0].mxu0
      %1058 = vmatprep.mubr.f32.mxu0 0.0
      %1059 = vmatmul.mubr.f32.gmra.mrb[0].mxu0 %v883
      %v1060 = vpop.f32.mrb[0].mxu0
      %v1061 = vadd.f32 0.0, %v1060
      %v1062 = vpop.f32.mrb[0].mxu0
      %1063 = vmatprep.mubr.f32.mxu0 0.0
      %1064 = vmatmul.mubr.f32.gmra.mrb[0].mxu0 %v885
      %v1065 = vpop.f32.mrb[0].mxu0
      %v1066 = vadd.f32 0.0, %v1065
      %v1067 = vpop.f32.mrb[0].mxu0
      %1068 = vmatprep.mubr.f32.mxu0 0.0
      %1069 = vmatmul.mubr.f32.gmra.mrb[0].mxu0 %v887
      %v1070 = vpop.f32.mrb[0].mxu0
      %v1071 = vadd.f32 0.0, %v1070
      %v1072 = vpop.f32.mrb[0].mxu0
      %1073 = vmatprep.mubr.f32.mxu0 0.0
      %1074 = vmatmul.mubr.f32.gmra.mrb[0].mxu0 %v889
      %v1075 = vpop.f32.mrb[0].mxu0
      %v1076 = vadd.f32 0.0, %v1075
      %v1077 = vpop.f32.mrb[0].mxu0
      %1078 = vmatprep.mubr.f32.mxu0 0.0
      %1079 = vmatmul.mubr.f32.gmra.mrb[0].mxu0 %v891
      %v1080 = vpop.f32.mrb[0].mxu0
      %v1081 = vadd.f32 0.0, %v1080
      %v1082 = vpop.f32.mrb[0].mxu0
      %1083 = vmatprep.mubr.f32.mxu0 0.0
      %1084 = vmatmul.mubr.f32.gmra.mrb[0].mxu0 %v893
      %v1085 = vpop.f32.mrb[0].mxu0
      %v1086 = vadd.f32 0.0, %v1085
      %v1087 = vpop.f32.mrb[0].mxu0
      %1088 = vmatprep.mubr.f32.mxu0 0.0
      %1089 = vmatmul.mubr.f32.gmra.mrb[0].mxu0 %v895
      %v1090 = vpop.f32.mrb[0].mxu0
      %v1091 = vadd.f32 0.0, %v1090
      %v1092 = vpop.f32.mrb[0].mxu0
      %1093 = vmatprep.mubr.f32.mxu0 0.0
      %1094 = vmatmul.mubr.f32.gmra.mrb[0].mxu0 %v897
      %v1095 = vpop.f32.mrb[0].mxu0
      %v1096 = vadd.f32 0.0, %v1095
      %v1097 = vpop.f32.mrb[0].mxu0
      %1098 = vmatprep.mubr.f32.mxu0 0.0
      %1099 = vmatmul.mubr.f32.gmra.mrb[0].mxu0 %v899
      %v1100 = vpop.f32.mrb[0].mxu0
      %v1101 = vadd.f32 0.0, %v1100
      %v1102 = vpop.f32.mrb[0].mxu0
      %1103 = vmatprep.mubr.f32.mxu0 0.0
      %1104 = vmatmul.mubr.f32.gmra.mrb[0].mxu0 %v901
      %v1105 = vpop.f32.mrb[0].mxu0
      %v1106 = vadd.f32 0.0, %v1105
      %v1107 = vpop.f32.mrb[0].mxu0
      %1108 = vmatprep.mubr.f32.mxu0 0.0
      %1109 = vmatmul.mubr.f32.gmra.mrb[0].mxu0 %v903
      %v1110 = vpop.f32.mrb[0].mxu0
      %v1111 = vadd.f32 0.0, %v1110
      %v1112 = vpop.f32.mrb[0].mxu0
      %1113 = vmatprep.mubr.f32.mxu0 0.0
      %1114 = vmatmul.mubr.f32.gmra.mrb[0].mxu0 %v905
      %v1115 = vpop.f32.mrb[0].mxu0
      %v1116 = vadd.f32 0.0, %v1115
      %v1117 = vpop.f32.mrb[0].mxu0
      %1118 = vmatprep.mubr.f32.mxu0 0.0
      %1119 = vmatmul.mubr.f32.gmra.mrb[0].mxu0 %v907
      %v1120 = vpop.f32.mrb[0].mxu0
      %v1121 = vadd.f32 0.0, %v1120
      %v1122 = vpop.f32.mrb[0].mxu0
      %1123 = vmatprep.mubr.f32.mxu0 0.0
      %1124 = vmatmul.mubr.f32.gmra.mrb[0].mxu0 %v909
      %v1125 = vpop.f32.mrb[0].mxu0
      %v1126 = vadd.f32 0.0, %v1125
      %v1127 = vpop.f32.mrb[0].mxu0
      %1128 = vmatprep.mubr.f32.mxu0 0.0
      %1129 = vmatmul.mubr.f32.gmra.mrb[0].mxu0 %v911
      %v1130 = vpop.f32.mrb[0].mxu0
      %v1131 = vadd.f32 0.0, %v1130
      %v1132 = vpop.f32.mrb[0].mxu0
      %1133 = vmatprep.mubr.f32.mxu0 0.0
      %1134 = vmatmul.mubr.f32.gmra.mrb[0].mxu0 %v913
      %v1135 = vpop.f32.mrb[0].mxu0
      %v1136 = vadd.f32 0.0, %v1135
      %v1137 = vpop.f32.mrb[0].mxu0
      %1138 = vmatprep.mubr.f32.mxu0 0.0
      %1139 = vmatmul.mubr.f32.gmra.mrb[0].mxu0 %v915
      %v1140 = vpop.f32.mrb[0].mxu0
      %v1141 = vadd.f32 0.0, %v1140
      %v1142 = vpop.f32.mrb[0].mxu0
      %1143 = vmatprep.mubr.f32.mxu0 0.0
      %1144 = vmatmul.mubr.f32.gmra.mrb[0].mxu0 %v917
      %v1145 = vpop.f32.mrb[0].mxu0
      %v1146 = vadd.f32 0.0, %v1145
      %v1147 = vpop.f32.mrb[0].mxu0
      %1148 = vmatprep.mubr.f32.mxu0 0.0
      %1149 = vmatmul.mubr.f32.gmra.mrb[0].mxu0 %v919
      %v1150 = vpop.f32.mrb[0].mxu0
      %v1151 = vadd.f32 0.0, %v1150
      %v1152 = vpop.f32.mrb[0].mxu0
      %1153 = vmatprep.mubr.f32.mxu0 0.0
      %1154 = vmatmul.mubr.f32.gmra.mrb[0].mxu0 %v921
      %v1155 = vpop.f32.mrb[0].mxu0
      %v1156 = vadd.f32 0.0, %v1155
      %v1157 = vpop.f32.mrb[0].mxu0
      %1158 = vmatprep.mubr.f32.mxu0 0.0
      %1159 = vmatmul.mubr.f32.gmra.mrb[0].mxu0 %v923
      %v1160 = vpop.f32.mrb[0].mxu0
      %v1161 = vadd.f32 0.0, %v1160
      %v1162 = vpop.f32.mrb[0].mxu0
      %1163 = vmatprep.mubr.f32.mxu0 0.0
      %1164 = vmatmul.mubr.f32.gmra.mrb[0].mxu0 %v925
      %v1165 = vpop.f32.mrb[0].mxu0
      %v1166 = vadd.f32 0.0, %v1165
      %v1167 = vpop.f32.mrb[0].mxu0
      %1168 = vmatprep.mubr.f32.mxu0 0.0
      %1169 = vmatmul.mubr.f32.gmra.mrb[0].mxu0 %v927
      %v1170 = vpop.f32.mrb[0].mxu0
      %v1171 = vadd.f32 0.0, %v1170
      %v1172 = vpop.f32.mrb[0].mxu0
      %1173 = vmatprep.mubr.f32.mxu0 0.0
      %1174 = vmatmul.mubr.f32.gmra.mrb[0].mxu0 %v929
      %v1175 = vpop.f32.mrb[0].mxu0
      %v1176 = vadd.f32 0.0, %v1175
      %v1177 = vpop.f32.mrb[0].mxu0
      %1178 = vmatprep.mubr.f32.mxu0 0.0
      %1179 = vmatmul.mubr.f32.gmra.mrb[0].mxu0 %v931
      %v1180 = vpop.f32.mrb[0].mxu0
      %v1181 = vadd.f32 0.0, %v1180
      %v1182 = vpop.f32.mrb[0].mxu0
      %1183 = vmatprep.mubr.f32.mxu0 0.0
      %1184 = vmatmul.mubr.f32.gmra.mrb[0].mxu0 %v933
      %v1185 = vpop.f32.mrb[0].mxu0
      %v1186 = vadd.f32 0.0, %v1185
      %v1187 = vpop.f32.mrb[0].mxu0
      %1188 = vmatprep.mubr.f32.mxu0 0.0
      %1189 = vmatmul.mubr.f32.gmra.mrb[0].mxu0 %v935
      %v1190 = vpop.f32.mrb[0].mxu0
      %v1191 = vadd.f32 0.0, %v1190
      %v1192 = vpop.f32.mrb[0].mxu0
      %1193 = vmatprep.mubr.f32.mxu0 0.0
      %1194 = vmatmul.mubr.f32.gmra.mrb[0].mxu0 %v937
      %v1195 = vpop.f32.mrb[0].mxu0
      %v1196 = vadd.f32 0.0, %v1195
      %v1197 = vpop.f32.mrb[0].mxu0
      %1198 = vmatprep.mubr.f32.mxu0 0.0
      %1199 = vmatmul.mubr.f32.gmra.mrb[0].mxu0 %v939
      %v1200 = vpop.f32.mrb[0].mxu0
      %v1201 = vadd.f32 0.0, %v1200
      %v1202 = vpop.f32.mrb[0].mxu0
      %1203 = vmatprep.mubr.f32.mxu0 0.0
      %1204 = vmatmul.mubr.f32.gmra.mrb[0].mxu0 %v941
      %v1205 = vpop.f32.mrb[0].mxu0
      %v1206 = vadd.f32 0.0, %v1205
      %v1207 = vpop.f32.mrb[0].mxu0
      %1208 = vmatprep.mubr.f32.mxu0 0.0
      %1209 = vmatmul.mubr.f32.gmra.mrb[0].mxu0 %v943
      %v1210 = vpop.f32.mrb[0].mxu0
      %v1211 = vadd.f32 0.0, %v1210
      %v1212 = vpop.f32.mrb[0].mxu0
      %1213 = vmatprep.mubr.f32.mxu0 0.0
      %1214 = vmatmul.mubr.f32.gmra.mrb[0].mxu0 %v945
      %v1215 = vpop.f32.mrb[0].mxu0
      %v1216 = vadd.f32 0.0, %v1215
      %v1217 = vpop.f32.mrb[0].mxu0
      %1218 = vmatprep.mubr.f32.mxu0 0.0
      %1219 = vmatmul.mubr.f32.gmra.mrb[0].mxu0 %v947
      %v1220 = vpop.f32.mrb[0].mxu0
      %v1221 = vadd.f32 0.0, %v1220
      %v1222 = vpop.f32.mrb[0].mxu0
      %1223 = vmatprep.mubr.f32.mxu0 0.0
      %1224 = vmatmul.mubr.f32.gmra.mrb[0].mxu0 %v949
      %v1225 = vpop.f32.mrb[0].mxu0
      %v1226 = vadd.f32 0.0, %v1225
      %v1227 = vpop.f32.mrb[0].mxu0
      %1228 = vmatprep.mubr.f32.mxu0 0.0
      %1229 = vmatmul.mubr.f32.gmra.mrb[0].mxu0 %v951
      %v1230 = vpop.f32.mrb[0].mxu0
      %v1231 = vadd.f32 0.0, %v1230
      %v1232 = vpop.f32.mrb[0].mxu0
      %1233 = vmatprep.mubr.f32.mxu0 0.0
      %1234 = vmatmul.mubr.f32.gmra.mrb[0].mxu0 %v953
      %v1235 = vpop.f32.mrb[0].mxu0
      %v1236 = vadd.f32 0.0, %v1235
      %v1237 = vpop.f32.mrb[0].mxu0
      %1238 = vmatprep.mubr.f32.mxu0 0.0
      %1239 = vmatmul.mubr.f32.gmra.mrb[0].mxu0 %v955
      %v1240 = vpop.f32.mrb[0].mxu0
      %v1241 = vadd.f32 0.0, %v1240
      %v1242 = vpop.f32.mrb[0].mxu0
      %1243 = vmatprep.mubr.f32.mxu0 0.0
      %1244 = vmatmul.mubr.f32.gmra.mrb[0].mxu0 %v957
      %v1245 = vpop.f32.mrb[0].mxu0
      %v1246 = vadd.f32 0.0, %v1245
      %v1247 = vpop.f32.mrb[0].mxu0
      %1248 = vmatprep.mubr.f32.mxu0 0.0
      %1249 = vmatmul.mubr.f32.gmra.mrb[0].mxu0 %v959
      %v1250 = vpop.f32.mrb[0].mxu0
      %v1251 = vadd.f32 0.0, %v1250
      %v1252 = vpop.f32.mrb[0].mxu0
      %1253 = vmatprep.mubr.f32.mxu0 0.0
      %1254 = vmatmul.mubr.f32.gmra.mrb[0].mxu0 %v961
      %v1255 = vpop.f32.mrb[0].mxu0
      %v1256 = vadd.f32 0.0, %v1255
      %v1257 = vpop.f32.mrb[0].mxu0
      %1258 = vmatprep.mubr.f32.mxu0 0.0
      %1259 = vmatmul.mubr.f32.gmra.mrb[0].mxu0 %v963
      %v1260 = vpop.f32.mrb[0].mxu0
      %v1261 = vadd.f32 0.0, %v1260
      %v1262 = vpop.f32.mrb[0].mxu0
      %1263 = vmatprep.mubr.f32.mxu0 0.0
      %1264 = vmatmul.mubr.f32.gmra.mrb[0].mxu0 %v965
      %v1265 = vpop.f32.mrb[0].mxu0
      %v1266 = vadd.f32 0.0, %v1265
      %v1267 = vpop.f32.mrb[0].mxu0
      %1268 = vmatprep.mubr.f32.mxu0 0.0
      %1269 = vmatmul.mubr.f32.gmra.mrb[0].mxu0 %v967
      %v1270 = vpop.f32.mrb[0].mxu0
      %v1271 = vadd.f32 0.0, %v1270
      %v1272 = vpop.f32.mrb[0].mxu0
      %1273 = vmatprep.mubr.f32.mxu0 0.0
      %1274 = vmatmul.mubr.f32.gmra.mrb[0].mxu0 %v969
      %v1275 = vpop.f32.mrb[0].mxu0
      %v1276 = vadd.f32 0.0, %v1275
      %v1277 = vpop.f32.mrb[0].mxu0
      %1278 = vdwg.mxu0
      %v1279 = vadd.f32 %v725, %v1041
      %v1280 = vadd.f32 %v726, %v1046
      %v1281 = vadd.f32 %v727, %v1051
      %v1282 = vadd.f32 %v728, %v1056
      %v1283 = vadd.f32 %v729, %v1061
      %v1284 = vadd.f32 %v730, %v1066
      %v1285 = vadd.f32 %v731, %v1071
      %v1286 = vadd.f32 %v732, %v1076
      %v1287 = vadd.f32 %v733, %v1081
      %v1288 = vadd.f32 %v734, %v1086
      %v1289 = vadd.f32 %v735, %v1091
      %v1290 = vadd.f32 %v736, %v1096
      %v1291 = vadd.f32 %v737, %v1101
      %v1292 = vadd.f32 %v738, %v1106
      %v1293 = vadd.f32 %v739, %v1111
      %v1294 = vadd.f32 %v740, %v1116
      %v1295 = vadd.f32 %v741, %v1121
      %v1296 = vadd.f32 %v742, %v1126
      %v1297 = vadd.f32 %v743, %v1131
      %v1298 = vadd.f32 %v744, %v1136
      %v1299 = vadd.f32 %v745, %v1141
      %v1300 = vadd.f32 %v746, %v1146
      %v1301 = vadd.f32 %v747, %v1151
      %v1302 = vadd.f32 %v748, %v1156
      %v1303 = vadd.f32 %v749, %v1161
      %v1304 = vadd.f32 %v750, %v1166
      %v1305 = vadd.f32 %v751, %v1171
      %v1306 = vadd.f32 %v752, %v1176
      %v1307 = vadd.f32 %v753, %v1181
      %v1308 = vadd.f32 %v754, %v1186
      %v1309 = vadd.f32 %v755, %v1191
      %v1310 = vadd.f32 %v756, %v1196
      %v1311 = vadd.f32 %v757, %v1201
      %v1312 = vadd.f32 %v758, %v1206
      %v1313 = vadd.f32 %v759, %v1211
      %v1314 = vadd.f32 %v760, %v1216
      %v1315 = vadd.f32 %v761, %v1221
      %v1316 = vadd.f32 %v762, %v1226
      %v1317 = vadd.f32 %v763, %v1231
      %v1318 = vadd.f32 %v764, %v1236
      %v1319 = vadd.f32 %v765, %v1241
      %v1320 = vadd.f32 %v766, %v1246
      %v1321 = vadd.f32 %v767, %v1251
      %v1322 = vadd.f32 %v768, %v1256
      %v1323 = vadd.f32 %v769, %v1261
      %v1324 = vadd.f32 %v770, %v1266
      %v1325 = vadd.f32 %v771, %v1271
      %v1326 = vadd.f32 %v772, %v1276
      %s1327 = scalar_lea.vmem %s1, 32
      %v1328 = vld [vmem:[%s1327] sm:$0xff]
      %v1329 = vld [vmem:[%s1327 + $0x8] sm:$0x3]
      %vm1330 = vcmask 1045504
      %v1331 = vrot.slane %v207, 2
      %v1332 = vrot.slane %v208, 2
      %v1333 = vsel %vm1330, %v1331, %v1332
      %v1334 = vrot.slane %v209, 2
      %v1335 = vsel %vm1330, %v1332, %v1334
      %v1336 = vrot.slane %v210, 2
      %v1337 = vsel %vm1330, %v1334, %v1336
      %v1338 = vrot.slane %v211, 2
      %v1339 = vsel %vm1330, %v1336, %v1338
      %v1340 = vrot.slane %v212, 2
      %v1341 = vsel %vm1330, %v1338, %v1340
      %v1342 = vrot.slane %v213, 2
      %v1343 = vsel %vm1330, %v1340, %v1342
      %v1344 = vrot.slane %v214, 2
      %v1345 = vsel %vm1330, %v1342, %v1344
      %v1346 = vrot.slane %v215, 2
      %v1347 = vsel %vm1330, %v1344, %v1346
      %v1348 = vrot.slane %v216, 2
      %v1349 = vsel %vm1330, %v1346, %v1348
      %v1350 = vrot.slane %v217, 2
      %v1351 = vsel %vm1330, %v1348, %v1350
      %v1352 = vrot.slane %v218, 2
      %v1353 = vsel %vm1330, %v1350, %v1352
      %v1354 = vrot.slane %v219, 2
      %v1355 = vsel %vm1330, %v1352, %v1354
      %v1356 = vrot.slane %v220, 2
      %v1357 = vsel %vm1330, %v1354, %v1356
      %v1358 = vrot.slane %v221, 2
      %v1359 = vsel %vm1330, %v1356, %v1358
      %v1360 = vrot.slane %v222, 2
      %v1361 = vsel %vm1330, %v1358, %v1360
      %v1362 = vrot.slane %v223, 2
      %v1363 = vsel %vm1330, %v1360, %v1362
      %v1364 = vrot.slane %v224, 2
      %v1365 = vsel %vm1330, %v1362, %v1364
      %v1366 = vrot.slane %v225, 2
      %v1367 = vsel %vm1330, %v1364, %v1366
      %v1368 = vrot.slane %v226, 2
      %v1369 = vsel %vm1330, %v1366, %v1368
      %v1370 = vrot.slane %v227, 2
      %v1371 = vsel %vm1330, %v1368, %v1370
      %v1372 = vrot.slane %v228, 2
      %v1373 = vsel %vm1330, %v1370, %v1372
      %v1374 = vrot.slane %v229, 2
      %v1375 = vsel %vm1330, %v1372, %v1374
      %v1376 = vrot.slane %v230, 2
      %v1377 = vsel %vm1330, %v1374, %v1376
      %v1378 = vrot.slane %v231, 2
      %v1379 = vsel %vm1330, %v1376, %v1378
      %v1380 = vrot.slane %v232, 2
      %v1381 = vsel %vm1330, %v1378, %v1380
      %v1382 = vrot.slane %v233, 2
      %v1383 = vsel %vm1330, %v1380, %v1382
      %v1384 = vrot.slane %v234, 2
      %v1385 = vsel %vm1330, %v1382, %v1384
      %v1386 = vrot.slane %v235, 2
      %v1387 = vsel %vm1330, %v1384, %v1386
      %v1388 = vrot.slane %v236, 2
      %v1389 = vsel %vm1330, %v1386, %v1388
      %v1390 = vrot.slane %v237, 2
      %v1391 = vsel %vm1330, %v1388, %v1390
      %v1392 = vrot.slane %v238, 2
      %v1393 = vsel %vm1330, %v1390, %v1392
      %v1394 = vrot.slane %v239, 2
      %v1395 = vsel %vm1330, %v1392, %v1394
      %v1396 = vrot.slane %v240, 2
      %v1397 = vsel %vm1330, %v1394, %v1396
      %v1398 = vrot.slane %v241, 2
      %v1399 = vsel %vm1330, %v1396, %v1398
      %v1400 = vrot.slane %v242, 2
      %v1401 = vsel %vm1330, %v1398, %v1400
      %v1402 = vrot.slane %v243, 2
      %v1403 = vsel %vm1330, %v1400, %v1402
      %v1404 = vrot.slane %v244, 2
      %v1405 = vsel %vm1330, %v1402, %v1404
      %v1406 = vrot.slane %v245, 2
      %v1407 = vsel %vm1330, %v1404, %v1406
      %v1408 = vrot.slane %v246, 2
      %v1409 = vsel %vm1330, %v1406, %v1408
      %v1410 = vrot.slane %v247, 2
      %v1411 = vsel %vm1330, %v1408, %v1410
      %v1412 = vrot.slane %v248, 2
      %v1413 = vsel %vm1330, %v1410, %v1412
      %v1414 = vrot.slane %v249, 2
      %v1415 = vsel %vm1330, %v1412, %v1414
      %v1416 = vrot.slane %v250, 2
      %v1417 = vsel %vm1330, %v1414, %v1416
      %v1418 = vrot.slane %v251, 2
      %v1419 = vsel %vm1330, %v1416, %v1418
      %v1420 = vrot.slane %v252, 2
      %v1421 = vsel %vm1330, %v1418, %v1420
      %v1422 = vrot.slane %v253, 2
      %v1423 = vsel %vm1330, %v1420, %v1422
      %v1424 = vrot.slane %v254, 2
      %v1425 = vsel %vm1330, %v1422, %v1424
      %v1426 = vrot.slane %v255, 2
      %v1427 = vsel %vm1330, %v1424, %v1426
      %v1428 = vsel %vm265, %v1333, 0
      %v1430 = vsel %vm265, %v1335, 0
      %v1432 = vsel %vm265, %v1337, 0
      %v1434 = vsel %vm265, %v1339, 0
      %v1436 = vsel %vm265, %v1341, 0
      %v1438 = vsel %vm265, %v1343, 0
      %v1440 = vsel %vm265, %v1345, 0
      %v1442 = vsel %vm265, %v1347, 0
      %v1444 = vsel %vm265, %v1349, 0
      %v1446 = vsel %vm265, %v1351, 0
      %v1448 = vsel %vm265, %v1353, 0
      %v1450 = vsel %vm265, %v1355, 0
      %v1452 = vsel %vm265, %v1357, 0
      %v1454 = vsel %vm265, %v1359, 0
      %v1456 = vsel %vm265, %v1361, 0
      %v1458 = vsel %vm265, %v1363, 0
      %v1460 = vsel %vm265, %v1365, 0
      %v1462 = vsel %vm265, %v1367, 0
      %v1464 = vsel %vm265, %v1369, 0
      %v1466 = vsel %vm265, %v1371, 0
      %v1468 = vsel %vm265, %v1373, 0
      %v1470 = vsel %vm265, %v1375, 0
      %v1472 = vsel %vm265, %v1377, 0
      %v1474 = vsel %vm265, %v1379, 0
      %v1476 = vsel %vm265, %v1381, 0
      %v1478 = vsel %vm265, %v1383, 0
      %v1480 = vsel %vm265, %v1385, 0
      %v1482 = vsel %vm265, %v1387, 0
      %v1484 = vsel %vm265, %v1389, 0
      %v1486 = vsel %vm265, %v1391, 0
      %v1488 = vsel %vm265, %v1393, 0
      %v1490 = vsel %vm265, %v1395, 0
      %v1492 = vsel %vm265, %v1397, 0
      %v1494 = vsel %vm265, %v1399, 0
      %v1496 = vsel %vm265, %v1401, 0
      %v1498 = vsel %vm265, %v1403, 0
      %v1500 = vsel %vm265, %v1405, 0
      %v1502 = vsel %vm265, %v1407, 0
      %v1504 = vsel %vm265, %v1409, 0
      %v1506 = vsel %vm265, %v1411, 0
      %v1508 = vsel %vm265, %v1413, 0
      %v1510 = vsel %vm265, %v1415, 0
      %v1512 = vsel %vm265, %v1417, 0
      %v1514 = vsel %vm265, %v1419, 0
      %v1516 = vsel %vm265, %v1421, 0
      %v1518 = vsel %vm265, %v1423, 0
      %v1520 = vsel %vm265, %v1425, 0
      %v1522 = vsel %vm265, %v1427, 0
      %v1525 = vsel %vm410, %v1329, 0
      %1527 = vmatprep.subr.mxu0 0.0
      %1528 = vmatpush1.msra.mxu0 %v1328
      %1529 = vmatprep.subr.mxu0 0.0
      %1530 = vmatpush1.msra.mxu0 %v1525
      %1531 = vmatprep.subr.mxu0 0.0
      %1532 = vmatpush1.msra.mxu0 0.0
      %1533 = vmatprep.subr.mxu0 0.0
      %1534 = vmatpush1.msra.mxu0 0.0
      %1535 = vmatprep.subr.mxu0 0.0
      %1536 = vmatpush1.msra.mxu0 0.0
      %1537 = vmatprep.subr.mxu0 0.0
      %1538 = vmatpush1.msra.mxu0 0.0
      %1539 = vmatprep.subr.mxu0 0.0
      %1540 = vmatpush1.msra.mxu0 0.0
      %1541 = vmatprep.subr.mxu0 0.0
      %1542 = vmatpush1.msra.mxu0 0.0
      %1543 = vmatprep.subr.mxu0 0.0
      %1544 = vmatpush1.msra.mxu0 0.0
      %1545 = vmatprep.subr.mxu0 0.0
      %1546 = vmatpush1.msra.mxu0 0.0
      %1547 = vmatprep.subr.mxu0 0.0
      %1548 = vmatpush1.msra.mxu0 0.0
      %1549 = vmatprep.subr.mxu0 0.0
      %1550 = vmatpush1.msra.mxu0 0.0
      %1551 = vmatprep.subr.mxu0 0.0
      %1552 = vmatpush1.msra.mxu0 0.0
      %1553 = vmatprep.subr.mxu0 0.0
      %1554 = vmatpush1.msra.mxu0 0.0
      %1555 = vmatprep.subr.mxu0 0.0
      %1556 = vmatpush1.msra.mxu0 0.0
      %1557 = vmatprep.subr.mxu0 0.0
      %1558 = vmatpush1.msra.mxu0 0.0
      %1559 = vmatprep.subr.mxu0 0.0
      %1560 = vmatpush1.msra.mxu0 0.0
      %1561 = vmatprep.subr.mxu0 0.0
      %1562 = vmatpush1.msra.mxu0 0.0
      %1563 = vmatprep.subr.mxu0 0.0
      %1564 = vmatpush1.msra.mxu0 0.0
      %1565 = vmatprep.subr.mxu0 0.0
      %1566 = vmatpush1.msra.mxu0 0.0
      %1567 = vmatprep.subr.mxu0 0.0
      %1568 = vmatpush1.msra.mxu0 0.0
      %1569 = vmatprep.subr.mxu0 0.0
      %1570 = vmatpush1.msra.mxu0 0.0
      %1571 = vmatprep.subr.mxu0 0.0
      %1572 = vmatpush1.msra.mxu0 0.0
      %1573 = vmatprep.subr.mxu0 0.0
      %1574 = vmatpush1.msra.mxu0 0.0
      %1575 = vmatprep.subr.mxu0 0.0
      %1576 = vmatpush1.msra.mxu0 0.0
      %1577 = vmatprep.subr.mxu0 0.0
      %1578 = vmatpush1.msra.mxu0 0.0
      %1579 = vmatprep.subr.mxu0 0.0
      %1580 = vmatpush1.msra.mxu0 0.0
      %1581 = vmatprep.subr.mxu0 0.0
      %1582 = vmatpush1.msra.mxu0 0.0
      %1583 = vmatprep.subr.mxu0 0.0
      %1584 = vmatpush1.msra.mxu0 0.0
      %1585 = vmatprep.subr.mxu0 0.0
      %1586 = vmatpush1.msra.mxu0 0.0
      %1587 = vmatprep.subr.mxu0 0.0
      %1588 = vmatpush1.msra.mxu0 0.0
      %1589 = vmatprep.subr.mxu0 0.0
      %1590 = vmatpush1.msra.mxu0 0.0
      %1591 = vmatprep.mubr.f32.mxu0 0.0
      %1592 = vmatmul.mubr.f32.gmra.mrb[0].mxu0 %v1428
      %v1593 = vpop.f32.mrb[0].mxu0
      %v1594 = vadd.f32 0.0, %v1593
      %v1595 = vpop.f32.mrb[0].mxu0
      %1596 = vmatprep.mubr.f32.mxu0 0.0
      %1597 = vmatmul.mubr.f32.gmra.mrb[0].mxu0 %v1430
      %v1598 = vpop.f32.mrb[0].mxu0
      %v1599 = vadd.f32 0.0, %v1598
      %v1600 = vpop.f32.mrb[0].mxu0
      %1601 = vmatprep.mubr.f32.mxu0 0.0
      %1602 = vmatmul.mubr.f32.gmra.mrb[0].mxu0 %v1432
      %v1603 = vpop.f32.mrb[0].mxu0
      %v1604 = vadd.f32 0.0, %v1603
      %v1605 = vpop.f32.mrb[0].mxu0
      %1606 = vmatprep.mubr.f32.mxu0 0.0
      %1607 = vmatmul.mubr.f32.gmra.mrb[0].mxu0 %v1434
      %v1608 = vpop.f32.mrb[0].mxu0
      %v1609 = vadd.f32 0.0, %v1608
      %v1610 = vpop.f32.mrb[0].mxu0
      %1611 = vmatprep.mubr.f32.mxu0 0.0
      %1612 = vmatmul.mubr.f32.gmra.mrb[0].mxu0 %v1436
      %v1613 = vpop.f32.mrb[0].mxu0
      %v1614 = vadd.f32 0.0, %v1613
      %v1615 = vpop.f32.mrb[0].mxu0
      %1616 = vmatprep.mubr.f32.mxu0 0.0
      %1617 = vmatmul.mubr.f32.gmra.mrb[0].mxu0 %v1438
      %v1618 = vpop.f32.mrb[0].mxu0
      %v1619 = vadd.f32 0.0, %v1618
      %v1620 = vpop.f32.mrb[0].mxu0
      %1621 = vmatprep.mubr.f32.mxu0 0.0
      %1622 = vmatmul.mubr.f32.gmra.mrb[0].mxu0 %v1440
      %v1623 = vpop.f32.mrb[0].mxu0
      %v1624 = vadd.f32 0.0, %v1623
      %v1625 = vpop.f32.mrb[0].mxu0
      %1626 = vmatprep.mubr.f32.mxu0 0.0
      %1627 = vmatmul.mubr.f32.gmra.mrb[0].mxu0 %v1442
      %v1628 = vpop.f32.mrb[0].mxu0
      %v1629 = vadd.f32 0.0, %v1628
      %v1630 = vpop.f32.mrb[0].mxu0
      %1631 = vmatprep.mubr.f32.mxu0 0.0
      %1632 = vmatmul.mubr.f32.gmra.mrb[0].mxu0 %v1444
      %v1633 = vpop.f32.mrb[0].mxu0
      %v1634 = vadd.f32 0.0, %v1633
      %v1635 = vpop.f32.mrb[0].mxu0
      %1636 = vmatprep.mubr.f32.mxu0 0.0
      %1637 = vmatmul.mubr.f32.gmra.mrb[0].mxu0 %v1446
      %v1638 = vpop.f32.mrb[0].mxu0
      %v1639 = vadd.f32 0.0, %v1638
      %v1640 = vpop.f32.mrb[0].mxu0
      %1641 = vmatprep.mubr.f32.mxu0 0.0
      %1642 = vmatmul.mubr.f32.gmra.mrb[0].mxu0 %v1448
      %v1643 = vpop.f32.mrb[0].mxu0
      %v1644 = vadd.f32 0.0, %v1643
      %v1645 = vpop.f32.mrb[0].mxu0
      %1646 = vmatprep.mubr.f32.mxu0 0.0
      %1647 = vmatmul.mubr.f32.gmra.mrb[0].mxu0 %v1450
      %v1648 = vpop.f32.mrb[0].mxu0
      %v1649 = vadd.f32 0.0, %v1648
      %v1650 = vpop.f32.mrb[0].mxu0
      %1651 = vmatprep.mubr.f32.mxu0 0.0
      %1652 = vmatmul.mubr.f32.gmra.mrb[0].mxu0 %v1452
      %v1653 = vpop.f32.mrb[0].mxu0
      %v1654 = vadd.f32 0.0, %v1653
      %v1655 = vpop.f32.mrb[0].mxu0
      %1656 = vmatprep.mubr.f32.mxu0 0.0
      %1657 = vmatmul.mubr.f32.gmra.mrb[0].mxu0 %v1454
      %v1658 = vpop.f32.mrb[0].mxu0
      %v1659 = vadd.f32 0.0, %v1658
      %v1660 = vpop.f32.mrb[0].mxu0
      %1661 = vmatprep.mubr.f32.mxu0 0.0
      %1662 = vmatmul.mubr.f32.gmra.mrb[0].mxu0 %v1456
      %v1663 = vpop.f32.mrb[0].mxu0
      %v1664 = vadd.f32 0.0, %v1663
      %v1665 = vpop.f32.mrb[0].mxu0
      %1666 = vmatprep.mubr.f32.mxu0 0.0
      %1667 = vmatmul.mubr.f32.gmra.mrb[0].mxu0 %v1458
      %v1668 = vpop.f32.mrb[0].mxu0
      %v1669 = vadd.f32 0.0, %v1668
      %v1670 = vpop.f32.mrb[0].mxu0
      %1671 = vmatprep.mubr.f32.mxu0 0.0
      %1672 = vmatmul.mubr.f32.gmra.mrb[0].mxu0 %v1460
      %v1673 = vpop.f32.mrb[0].mxu0
      %v1674 = vadd.f32 0.0, %v1673
      %v1675 = vpop.f32.mrb[0].mxu0
      %1676 = vmatprep.mubr.f32.mxu0 0.0
      %1677 = vmatmul.mubr.f32.gmra.mrb[0].mxu0 %v1462
      %v1678 = vpop.f32.mrb[0].mxu0
      %v1679 = vadd.f32 0.0, %v1678
      %v1680 = vpop.f32.mrb[0].mxu0
      %1681 = vmatprep.mubr.f32.mxu0 0.0
      %1682 = vmatmul.mubr.f32.gmra.mrb[0].mxu0 %v1464
      %v1683 = vpop.f32.mrb[0].mxu0
      %v1684 = vadd.f32 0.0, %v1683
      %v1685 = vpop.f32.mrb[0].mxu0
      %1686 = vmatprep.mubr.f32.mxu0 0.0
      %1687 = vmatmul.mubr.f32.gmra.mrb[0].mxu0 %v1466
      %v1688 = vpop.f32.mrb[0].mxu0
      %v1689 = vadd.f32 0.0, %v1688
      %v1690 = vpop.f32.mrb[0].mxu0
      %1691 = vmatprep.mubr.f32.mxu0 0.0
      %1692 = vmatmul.mubr.f32.gmra.mrb[0].mxu0 %v1468
      %v1693 = vpop.f32.mrb[0].mxu0
      %v1694 = vadd.f32 0.0, %v1693
      %v1695 = vpop.f32.mrb[0].mxu0
      %1696 = vmatprep.mubr.f32.mxu0 0.0
      %1697 = vmatmul.mubr.f32.gmra.mrb[0].mxu0 %v1470
      %v1698 = vpop.f32.mrb[0].mxu0
      %v1699 = vadd.f32 0.0, %v1698
      %v1700 = vpop.f32.mrb[0].mxu0
      %1701 = vmatprep.mubr.f32.mxu0 0.0
      %1702 = vmatmul.mubr.f32.gmra.mrb[0].mxu0 %v1472
      %v1703 = vpop.f32.mrb[0].mxu0
      %v1704 = vadd.f32 0.0, %v1703
      %v1705 = vpop.f32.mrb[0].mxu0
      %1706 = vmatprep.mubr.f32.mxu0 0.0
      %1707 = vmatmul.mubr.f32.gmra.mrb[0].mxu0 %v1474
      %v1708 = vpop.f32.mrb[0].mxu0
      %v1709 = vadd.f32 0.0, %v1708
      %v1710 = vpop.f32.mrb[0].mxu0
      %1711 = vmatprep.mubr.f32.mxu0 0.0
      %1712 = vmatmul.mubr.f32.gmra.mrb[0].mxu0 %v1476
      %v1713 = vpop.f32.mrb[0].mxu0
      %v1714 = vadd.f32 0.0, %v1713
      %v1715 = vpop.f32.mrb[0].mxu0
      %1716 = vmatprep.mubr.f32.mxu0 0.0
      %1717 = vmatmul.mubr.f32.gmra.mrb[0].mxu0 %v1478
      %v1718 = vpop.f32.mrb[0].mxu0
      %v1719 = vadd.f32 0.0, %v1718
      %v1720 = vpop.f32.mrb[0].mxu0
      %1721 = vmatprep.mubr.f32.mxu0 0.0
      %1722 = vmatmul.mubr.f32.gmra.mrb[0].mxu0 %v1480
      %v1723 = vpop.f32.mrb[0].mxu0
      %v1724 = vadd.f32 0.0, %v1723
      %v1725 = vpop.f32.mrb[0].mxu0
      %1726 = vmatprep.mubr.f32.mxu0 0.0
      %1727 = vmatmul.mubr.f32.gmra.mrb[0].mxu0 %v1482
      %v1728 = vpop.f32.mrb[0].mxu0
      %v1729 = vadd.f32 0.0, %v1728
      %v1730 = vpop.f32.mrb[0].mxu0
      %1731 = vmatprep.mubr.f32.mxu0 0.0
      %1732 = vmatmul.mubr.f32.gmra.mrb[0].mxu0 %v1484
      %v1733 = vpop.f32.mrb[0].mxu0
      %v1734 = vadd.f32 0.0, %v1733
      %v1735 = vpop.f32.mrb[0].mxu0
      %1736 = vmatprep.mubr.f32.mxu0 0.0
      %1737 = vmatmul.mubr.f32.gmra.mrb[0].mxu0 %v1486
      %v1738 = vpop.f32.mrb[0].mxu0
      %v1739 = vadd.f32 0.0, %v1738
      %v1740 = vpop.f32.mrb[0].mxu0
      %1741 = vmatprep.mubr.f32.mxu0 0.0
      %1742 = vmatmul.mubr.f32.gmra.mrb[0].mxu0 %v1488
      %v1743 = vpop.f32.mrb[0].mxu0
      %v1744 = vadd.f32 0.0, %v1743
      %v1745 = vpop.f32.mrb[0].mxu0
      %1746 = vmatprep.mubr.f32.mxu0 0.0
      %1747 = vmatmul.mubr.f32.gmra.mrb[0].mxu0 %v1490
      %v1748 = vpop.f32.mrb[0].mxu0
      %v1749 = vadd.f32 0.0, %v1748
      %v1750 = vpop.f32.mrb[0].mxu0
      %1751 = vmatprep.mubr.f32.mxu0 0.0
      %1752 = vmatmul.mubr.f32.gmra.mrb[0].mxu0 %v1492
      %v1753 = vpop.f32.mrb[0].mxu0
      %v1754 = vadd.f32 0.0, %v1753
      %v1755 = vpop.f32.mrb[0].mxu0
      %1756 = vmatprep.mubr.f32.mxu0 0.0
      %1757 = vmatmul.mubr.f32.gmra.mrb[0].mxu0 %v1494
      %v1758 = vpop.f32.mrb[0].mxu0
      %v1759 = vadd.f32 0.0, %v1758
      %v1760 = vpop.f32.mrb[0].mxu0
      %1761 = vmatprep.mubr.f32.mxu0 0.0
      %1762 = vmatmul.mubr.f32.gmra.mrb[0].mxu0 %v1496
      %v1763 = vpop.f32.mrb[0].mxu0
      %v1764 = vadd.f32 0.0, %v1763
      %v1765 = vpop.f32.mrb[0].mxu0
      %1766 = vmatprep.mubr.f32.mxu0 0.0
      %1767 = vmatmul.mubr.f32.gmra.mrb[0].mxu0 %v1498
      %v1768 = vpop.f32.mrb[0].mxu0
      %v1769 = vadd.f32 0.0, %v1768
      %v1770 = vpop.f32.mrb[0].mxu0
      %1771 = vmatprep.mubr.f32.mxu0 0.0
      %1772 = vmatmul.mubr.f32.gmra.mrb[0].mxu0 %v1500
      %v1773 = vpop.f32.mrb[0].mxu0
      %v1774 = vadd.f32 0.0, %v1773
      %v1775 = vpop.f32.mrb[0].mxu0
      %1776 = vmatprep.mubr.f32.mxu0 0.0
      %1777 = vmatmul.mubr.f32.gmra.mrb[0].mxu0 %v1502
      %v1778 = vpop.f32.mrb[0].mxu0
      %v1779 = vadd.f32 0.0, %v1778
      %v1780 = vpop.f32.mrb[0].mxu0
      %1781 = vmatprep.mubr.f32.mxu0 0.0
      %1782 = vmatmul.mubr.f32.gmra.mrb[0].mxu0 %v1504
      %v1783 = vpop.f32.mrb[0].mxu0
      %v1784 = vadd.f32 0.0, %v1783
      %v1785 = vpop.f32.mrb[0].mxu0
      %1786 = vmatprep.mubr.f32.mxu0 0.0
      %1787 = vmatmul.mubr.f32.gmra.mrb[0].mxu0 %v1506
      %v1788 = vpop.f32.mrb[0].mxu0
      %v1789 = vadd.f32 0.0, %v1788
      %v1790 = vpop.f32.mrb[0].mxu0
      %1791 = vmatprep.mubr.f32.mxu0 0.0
      %1792 = vmatmul.mubr.f32.gmra.mrb[0].mxu0 %v1508
      %v1793 = vpop.f32.mrb[0].mxu0
      %v1794 = vadd.f32 0.0, %v1793
      %v1795 = vpop.f32.mrb[0].mxu0
      %1796 = vmatprep.mubr.f32.mxu0 0.0
      %1797 = vmatmul.mubr.f32.gmra.mrb[0].mxu0 %v1510
      %v1798 = vpop.f32.mrb[0].mxu0
      %v1799 = vadd.f32 0.0, %v1798
      %v1800 = vpop.f32.mrb[0].mxu0
      %1801 = vmatprep.mubr.f32.mxu0 0.0
      %1802 = vmatmul.mubr.f32.gmra.mrb[0].mxu0 %v1512
      %v1803 = vpop.f32.mrb[0].mxu0
      %v1804 = vadd.f32 0.0, %v1803
      %v1805 = vpop.f32.mrb[0].mxu0
      %1806 = vmatprep.mubr.f32.mxu0 0.0
      %1807 = vmatmul.mubr.f32.gmra.mrb[0].mxu0 %v1514
      %v1808 = vpop.f32.mrb[0].mxu0
      %v1809 = vadd.f32 0.0, %v1808
      %v1810 = vpop.f32.mrb[0].mxu0
      %1811 = vmatprep.mubr.f32.mxu0 0.0
      %1812 = vmatmul.mubr.f32.gmra.mrb[0].mxu0 %v1516
      %v1813 = vpop.f32.mrb[0].mxu0
      %v1814 = vadd.f32 0.0, %v1813
      %v1815 = vpop.f32.mrb[0].mxu0
      %1816 = vmatprep.mubr.f32.mxu0 0.0
      %1817 = vmatmul.mubr.f32.gmra.mrb[0].mxu0 %v1518
      %v1818 = vpop.f32.mrb[0].mxu0
      %v1819 = vadd.f32 0.0, %v1818
      %v1820 = vpop.f32.mrb[0].mxu0
      %1821 = vmatprep.mubr.f32.mxu0 0.0
      %1822 = vmatmul.mubr.f32.gmra.mrb[0].mxu0 %v1520
      %v1823 = vpop.f32.mrb[0].mxu0
      %v1824 = vadd.f32 0.0, %v1823
      %v1825 = vpop.f32.mrb[0].mxu0
      %1826 = vmatprep.mubr.f32.mxu0 0.0
      %1827 = vmatmul.mubr.f32.gmra.mrb[0].mxu0 %v1522
      %v1828 = vpop.f32.mrb[0].mxu0
      %v1829 = vadd.f32 0.0, %v1828
      %v1830 = vpop.f32.mrb[0].mxu0
      %1831 = vdwg.mxu0
      %v1832 = vadd.f32 %v1279, %v1594
      %v1833 = vadd.f32 %v1280, %v1599
      %v1834 = vadd.f32 %v1281, %v1604
      %v1835 = vadd.f32 %v1282, %v1609
      %v1836 = vadd.f32 %v1283, %v1614
      %v1837 = vadd.f32 %v1284, %v1619
      %v1838 = vadd.f32 %v1285, %v1624
      %v1839 = vadd.f32 %v1286, %v1629
      %v1840 = vadd.f32 %v1287, %v1634
      %v1841 = vadd.f32 %v1288, %v1639
      %v1842 = vadd.f32 %v1289, %v1644
      %v1843 = vadd.f32 %v1290, %v1649
      %v1844 = vadd.f32 %v1291, %v1654
      %v1845 = vadd.f32 %v1292, %v1659
      %v1846 = vadd.f32 %v1293, %v1664
      %v1847 = vadd.f32 %v1294, %v1669
      %v1848 = vadd.f32 %v1295, %v1674
      %v1849 = vadd.f32 %v1296, %v1679
      %v1850 = vadd.f32 %v1297, %v1684
      %v1851 = vadd.f32 %v1298, %v1689
      %v1852 = vadd.f32 %v1299, %v1694
      %v1853 = vadd.f32 %v1300, %v1699
      %v1854 = vadd.f32 %v1301, %v1704
      %v1855 = vadd.f32 %v1302, %v1709
      %v1856 = vadd.f32 %v1303, %v1714
      %v1857 = vadd.f32 %v1304, %v1719
      %v1858 = vadd.f32 %v1305, %v1724
      %v1859 = vadd.f32 %v1306, %v1729
      %v1860 = vadd.f32 %v1307, %v1734
      %v1861 = vadd.f32 %v1308, %v1739
      %v1862 = vadd.f32 %v1309, %v1744
      %v1863 = vadd.f32 %v1310, %v1749
      %v1864 = vadd.f32 %v1311, %v1754
      %v1865 = vadd.f32 %v1312, %v1759
      %v1866 = vadd.f32 %v1313, %v1764
      %v1867 = vadd.f32 %v1314, %v1769
      %v1868 = vadd.f32 %v1315, %v1774
      %v1869 = vadd.f32 %v1316, %v1779
      %v1870 = vadd.f32 %v1317, %v1784
      %v1871 = vadd.f32 %v1318, %v1789
      %v1872 = vadd.f32 %v1319, %v1794
      %v1873 = vadd.f32 %v1320, %v1799
      %v1874 = vadd.f32 %v1321, %v1804
      %v1875 = vadd.f32 %v1322, %v1809
      %v1876 = vadd.f32 %v1323, %v1814
      %v1877 = vadd.f32 %v1324, %v1819
      %v1878 = vadd.f32 %v1325, %v1824
      %v1879 = vadd.f32 %v1326, %v1829
      %s1880 = scalar_lea.vmem %s1, 48
      %v1881 = vld [vmem:[%s1880] sm:$0xff]
      %v1882 = vld [vmem:[%s1880 + $0x8] sm:$0x3]
      %v1883 = vsel %vm265, %v255, 0
      %v1886 = vsel %vm265, %v256, 0
      %v1889 = vsel %vm265, %v257, 0
      %v1892 = vsel %vm410, %v1882, 0
      %1894 = vmatprep.subr.mxu0 0.0
      %1895 = vmatpush1.msra.mxu0 %v1881
      %1896 = vmatprep.subr.mxu0 0.0
      %1897 = vmatpush1.msra.mxu0 %v1892
      %1898 = vmatprep.subr.mxu0 0.0
      %1899 = vmatpush1.msra.mxu0 0.0
      %1900 = vmatprep.subr.mxu0 0.0
      %1901 = vmatpush1.msra.mxu0 0.0
      %1902 = vmatprep.subr.mxu0 0.0
      %1903 = vmatpush1.msra.mxu0 0.0
      %1904 = vmatprep.subr.mxu0 0.0
      %1905 = vmatpush1.msra.mxu0 0.0
      %1906 = vmatprep.subr.mxu0 0.0
      %1907 = vmatpush1.msra.mxu0 0.0
      %1908 = vmatprep.subr.mxu0 0.0
      %1909 = vmatpush1.msra.mxu0 0.0
      %1910 = vmatprep.subr.mxu0 0.0
      %1911 = vmatpush1.msra.mxu0 0.0
      %1912 = vmatprep.subr.mxu0 0.0
      %1913 = vmatpush1.msra.mxu0 0.0
      %1914 = vmatprep.subr.mxu0 0.0
      %1915 = vmatpush1.msra.mxu0 0.0
      %1916 = vmatprep.subr.mxu0 0.0
      %1917 = vmatpush1.msra.mxu0 0.0
      %1918 = vmatprep.subr.mxu0 0.0
      %1919 = vmatpush1.msra.mxu0 0.0
      %1920 = vmatprep.subr.mxu0 0.0
      %1921 = vmatpush1.msra.mxu0 0.0
      %1922 = vmatprep.subr.mxu0 0.0
      %1923 = vmatpush1.msra.mxu0 0.0
      %1924 = vmatprep.subr.mxu0 0.0
      %1925 = vmatpush1.msra.mxu0 0.0
      %1926 = vmatprep.subr.mxu0 0.0
      %1927 = vmatpush1.msra.mxu0 0.0
      %1928 = vmatprep.subr.mxu0 0.0
      %1929 = vmatpush1.msra.mxu0 0.0
      %1930 = vmatprep.subr.mxu0 0.0
      %1931 = vmatpush1.msra.mxu0 0.0
      %1932 = vmatprep.subr.mxu0 0.0
      %1933 = vmatpush1.msra.mxu0 0.0
      %1934 = vmatprep.subr.mxu0 0.0
      %1935 = vmatpush1.msra.mxu0 0.0
      %1936 = vmatprep.subr.mxu0 0.0
      %1937 = vmatpush1.msra.mxu0 0.0
      %1938 = vmatprep.subr.mxu0 0.0
      %1939 = vmatpush1.msra.mxu0 0.0
      %1940 = vmatprep.subr.mxu0 0.0
      %1941 = vmatpush1.msra.mxu0 0.0
      %1942 = vmatprep.subr.mxu0 0.0
      %1943 = vmatpush1.msra.mxu0 0.0
      %1944 = vmatprep.subr.mxu0 0.0
      %1945 = vmatpush1.msra.mxu0 0.0
      %1946 = vmatprep.subr.mxu0 0.0
      %1947 = vmatpush1.msra.mxu0 0.0
      %1948 = vmatprep.subr.mxu0 0.0
      %1949 = vmatpush1.msra.mxu0 0.0
      %1950 = vmatprep.subr.mxu0 0.0
      %1951 = vmatpush1.msra.mxu0 0.0
      %1952 = vmatprep.subr.mxu0 0.0
      %1953 = vmatpush1.msra.mxu0 0.0
      %1954 = vmatprep.subr.mxu0 0.0
      %1955 = vmatpush1.msra.mxu0 0.0
      %1956 = vmatprep.subr.mxu0 0.0
      %1957 = vmatpush1.msra.mxu0 0.0
      %1958 = vmatprep.mubr.f32.mxu0 0.0
      %1959 = vmatmul.mubr.f32.gmra.mrb[0].mxu0 %v276
      %v1960 = vpop.f32.mrb[0].mxu0
      %v1961 = vadd.f32 0.0, %v1960
      %v1962 = vpop.f32.mrb[0].mxu0
      %1963 = vmatprep.mubr.f32.mxu0 0.0
      %1964 = vmatmul.mubr.f32.gmra.mrb[0].mxu0 %v279
      %v1965 = vpop.f32.mrb[0].mxu0
      %v1966 = vadd.f32 0.0, %v1965
      %v1967 = vpop.f32.mrb[0].mxu0
      %1968 = vmatprep.mubr.f32.mxu0 0.0
      %1969 = vmatmul.mubr.f32.gmra.mrb[0].mxu0 %v282
      %v1970 = vpop.f32.mrb[0].mxu0
      %v1971 = vadd.f32 0.0, %v1970
      %v1972 = vpop.f32.mrb[0].mxu0
      %1973 = vmatprep.mubr.f32.mxu0 0.0
      %1974 = vmatmul.mubr.f32.gmra.mrb[0].mxu0 %v285
      %v1975 = vpop.f32.mrb[0].mxu0
      %v1976 = vadd.f32 0.0, %v1975
      %v1977 = vpop.f32.mrb[0].mxu0
      %1978 = vmatprep.mubr.f32.mxu0 0.0
      %1979 = vmatmul.mubr.f32.gmra.mrb[0].mxu0 %v288
      %v1980 = vpop.f32.mrb[0].mxu0
      %v1981 = vadd.f32 0.0, %v1980
      %v1982 = vpop.f32.mrb[0].mxu0
      %1983 = vmatprep.mubr.f32.mxu0 0.0
      %1984 = vmatmul.mubr.f32.gmra.mrb[0].mxu0 %v291
      %v1985 = vpop.f32.mrb[0].mxu0
      %v1986 = vadd.f32 0.0, %v1985
      %v1987 = vpop.f32.mrb[0].mxu0
      %1988 = vmatprep.mubr.f32.mxu0 0.0
      %1989 = vmatmul.mubr.f32.gmra.mrb[0].mxu0 %v294
      %v1990 = vpop.f32.mrb[0].mxu0
      %v1991 = vadd.f32 0.0, %v1990
      %v1992 = vpop.f32.mrb[0].mxu0
      %1993 = vmatprep.mubr.f32.mxu0 0.0
      %1994 = vmatmul.mubr.f32.gmra.mrb[0].mxu0 %v297
      %v1995 = vpop.f32.mrb[0].mxu0
      %v1996 = vadd.f32 0.0, %v1995
      %v1997 = vpop.f32.mrb[0].mxu0
      %1998 = vmatprep.mubr.f32.mxu0 0.0
      %1999 = vmatmul.mubr.f32.gmra.mrb[0].mxu0 %v300
      %v2000 = vpop.f32.mrb[0].mxu0
      %v2001 = vadd.f32 0.0, %v2000
      %v2002 = vpop.f32.mrb[0].mxu0
      %2003 = vmatprep.mubr.f32.mxu0 0.0
      %2004 = vmatmul.mubr.f32.gmra.mrb[0].mxu0 %v303
      %v2005 = vpop.f32.mrb[0].mxu0
      %v2006 = vadd.f32 0.0, %v2005
      %v2007 = vpop.f32.mrb[0].mxu0
      %2008 = vmatprep.mubr.f32.mxu0 0.0
      %2009 = vmatmul.mubr.f32.gmra.mrb[0].mxu0 %v306
      %v2010 = vpop.f32.mrb[0].mxu0
      %v2011 = vadd.f32 0.0, %v2010
      %v2012 = vpop.f32.mrb[0].mxu0
      %2013 = vmatprep.mubr.f32.mxu0 0.0
      %2014 = vmatmul.mubr.f32.gmra.mrb[0].mxu0 %v309
      %v2015 = vpop.f32.mrb[0].mxu0
      %v2016 = vadd.f32 0.0, %v2015
      %v2017 = vpop.f32.mrb[0].mxu0
      %2018 = vmatprep.mubr.f32.mxu0 0.0
      %2019 = vmatmul.mubr.f32.gmra.mrb[0].mxu0 %v312
      %v2020 = vpop.f32.mrb[0].mxu0
      %v2021 = vadd.f32 0.0, %v2020
      %v2022 = vpop.f32.mrb[0].mxu0
      %2023 = vmatprep.mubr.f32.mxu0 0.0
      %2024 = vmatmul.mubr.f32.gmra.mrb[0].mxu0 %v315
      %v2025 = vpop.f32.mrb[0].mxu0
      %v2026 = vadd.f32 0.0, %v2025
      %v2027 = vpop.f32.mrb[0].mxu0
      %2028 = vmatprep.mubr.f32.mxu0 0.0
      %2029 = vmatmul.mubr.f32.gmra.mrb[0].mxu0 %v318
      %v2030 = vpop.f32.mrb[0].mxu0
      %v2031 = vadd.f32 0.0, %v2030
      %v2032 = vpop.f32.mrb[0].mxu0
      %2033 = vmatprep.mubr.f32.mxu0 0.0
      %2034 = vmatmul.mubr.f32.gmra.mrb[0].mxu0 %v321
      %v2035 = vpop.f32.mrb[0].mxu0
      %v2036 = vadd.f32 0.0, %v2035
      %v2037 = vpop.f32.mrb[0].mxu0
      %2038 = vmatprep.mubr.f32.mxu0 0.0
      %2039 = vmatmul.mubr.f32.gmra.mrb[0].mxu0 %v324
      %v2040 = vpop.f32.mrb[0].mxu0
      %v2041 = vadd.f32 0.0, %v2040
      %v2042 = vpop.f32.mrb[0].mxu0
      %2043 = vmatprep.mubr.f32.mxu0 0.0
      %2044 = vmatmul.mubr.f32.gmra.mrb[0].mxu0 %v327
      %v2045 = vpop.f32.mrb[0].mxu0
      %v2046 = vadd.f32 0.0, %v2045
      %v2047 = vpop.f32.mrb[0].mxu0
      %2048 = vmatprep.mubr.f32.mxu0 0.0
      %2049 = vmatmul.mubr.f32.gmra.mrb[0].mxu0 %v330
      %v2050 = vpop.f32.mrb[0].mxu0
      %v2051 = vadd.f32 0.0, %v2050
      %v2052 = vpop.f32.mrb[0].mxu0
      %2053 = vmatprep.mubr.f32.mxu0 0.0
      %2054 = vmatmul.mubr.f32.gmra.mrb[0].mxu0 %v333
      %v2055 = vpop.f32.mrb[0].mxu0
      %v2056 = vadd.f32 0.0, %v2055
      %v2057 = vpop.f32.mrb[0].mxu0
      %2058 = vmatprep.mubr.f32.mxu0 0.0
      %2059 = vmatmul.mubr.f32.gmra.mrb[0].mxu0 %v336
      %v2060 = vpop.f32.mrb[0].mxu0
      %v2061 = vadd.f32 0.0, %v2060
      %v2062 = vpop.f32.mrb[0].mxu0
      %2063 = vmatprep.mubr.f32.mxu0 0.0
      %2064 = vmatmul.mubr.f32.gmra.mrb[0].mxu0 %v339
      %v2065 = vpop.f32.mrb[0].mxu0
      %v2066 = vadd.f32 0.0, %v2065
      %v2067 = vpop.f32.mrb[0].mxu0
      %2068 = vmatprep.mubr.f32.mxu0 0.0
      %2069 = vmatmul.mubr.f32.gmra.mrb[0].mxu0 %v342
      %v2070 = vpop.f32.mrb[0].mxu0
      %v2071 = vadd.f32 0.0, %v2070
      %v2072 = vpop.f32.mrb[0].mxu0
      %2073 = vmatprep.mubr.f32.mxu0 0.0
      %2074 = vmatmul.mubr.f32.gmra.mrb[0].mxu0 %v345
      %v2075 = vpop.f32.mrb[0].mxu0
      %v2076 = vadd.f32 0.0, %v2075
      %v2077 = vpop.f32.mrb[0].mxu0
      %2078 = vmatprep.mubr.f32.mxu0 0.0
      %2079 = vmatmul.mubr.f32.gmra.mrb[0].mxu0 %v348
      %v2080 = vpop.f32.mrb[0].mxu0
      %v2081 = vadd.f32 0.0, %v2080
      %v2082 = vpop.f32.mrb[0].mxu0
      %2083 = vmatprep.mubr.f32.mxu0 0.0
      %2084 = vmatmul.mubr.f32.gmra.mrb[0].mxu0 %v351
      %v2085 = vpop.f32.mrb[0].mxu0
      %v2086 = vadd.f32 0.0, %v2085
      %v2087 = vpop.f32.mrb[0].mxu0
      %2088 = vmatprep.mubr.f32.mxu0 0.0
      %2089 = vmatmul.mubr.f32.gmra.mrb[0].mxu0 %v354
      %v2090 = vpop.f32.mrb[0].mxu0
      %v2091 = vadd.f32 0.0, %v2090
      %v2092 = vpop.f32.mrb[0].mxu0
      %2093 = vmatprep.mubr.f32.mxu0 0.0
      %2094 = vmatmul.mubr.f32.gmra.mrb[0].mxu0 %v357
      %v2095 = vpop.f32.mrb[0].mxu0
      %v2096 = vadd.f32 0.0, %v2095
      %v2097 = vpop.f32.mrb[0].mxu0
      %2098 = vmatprep.mubr.f32.mxu0 0.0
      %2099 = vmatmul.mubr.f32.gmra.mrb[0].mxu0 %v360
      %v2100 = vpop.f32.mrb[0].mxu0
      %v2101 = vadd.f32 0.0, %v2100
      %v2102 = vpop.f32.mrb[0].mxu0
      %2103 = vmatprep.mubr.f32.mxu0 0.0
      %2104 = vmatmul.mubr.f32.gmra.mrb[0].mxu0 %v363
      %v2105 = vpop.f32.mrb[0].mxu0
      %v2106 = vadd.f32 0.0, %v2105
      %v2107 = vpop.f32.mrb[0].mxu0
      %2108 = vmatprep.mubr.f32.mxu0 0.0
      %2109 = vmatmul.mubr.f32.gmra.mrb[0].mxu0 %v366
      %v2110 = vpop.f32.mrb[0].mxu0
      %v2111 = vadd.f32 0.0, %v2110
      %v2112 = vpop.f32.mrb[0].mxu0
      %2113 = vmatprep.mubr.f32.mxu0 0.0
      %2114 = vmatmul.mubr.f32.gmra.mrb[0].mxu0 %v369
      %v2115 = vpop.f32.mrb[0].mxu0
      %v2116 = vadd.f32 0.0, %v2115
      %v2117 = vpop.f32.mrb[0].mxu0
      %2118 = vmatprep.mubr.f32.mxu0 0.0
      %2119 = vmatmul.mubr.f32.gmra.mrb[0].mxu0 %v372
      %v2120 = vpop.f32.mrb[0].mxu0
      %v2121 = vadd.f32 0.0, %v2120
      %v2122 = vpop.f32.mrb[0].mxu0
      %2123 = vmatprep.mubr.f32.mxu0 0.0
      %2124 = vmatmul.mubr.f32.gmra.mrb[0].mxu0 %v375
      %v2125 = vpop.f32.mrb[0].mxu0
      %v2126 = vadd.f32 0.0, %v2125
      %v2127 = vpop.f32.mrb[0].mxu0
      %2128 = vmatprep.mubr.f32.mxu0 0.0
      %2129 = vmatmul.mubr.f32.gmra.mrb[0].mxu0 %v378
      %v2130 = vpop.f32.mrb[0].mxu0
      %v2131 = vadd.f32 0.0, %v2130
      %v2132 = vpop.f32.mrb[0].mxu0
      %2133 = vmatprep.mubr.f32.mxu0 0.0
      %2134 = vmatmul.mubr.f32.gmra.mrb[0].mxu0 %v381
      %v2135 = vpop.f32.mrb[0].mxu0
      %v2136 = vadd.f32 0.0, %v2135
      %v2137 = vpop.f32.mrb[0].mxu0
      %2138 = vmatprep.mubr.f32.mxu0 0.0
      %2139 = vmatmul.mubr.f32.gmra.mrb[0].mxu0 %v384
      %v2140 = vpop.f32.mrb[0].mxu0
      %v2141 = vadd.f32 0.0, %v2140
      %v2142 = vpop.f32.mrb[0].mxu0
      %2143 = vmatprep.mubr.f32.mxu0 0.0
      %2144 = vmatmul.mubr.f32.gmra.mrb[0].mxu0 %v387
      %v2145 = vpop.f32.mrb[0].mxu0
      %v2146 = vadd.f32 0.0, %v2145
      %v2147 = vpop.f32.mrb[0].mxu0
      %2148 = vmatprep.mubr.f32.mxu0 0.0
      %2149 = vmatmul.mubr.f32.gmra.mrb[0].mxu0 %v390
      %v2150 = vpop.f32.mrb[0].mxu0
      %v2151 = vadd.f32 0.0, %v2150
      %v2152 = vpop.f32.mrb[0].mxu0
      %2153 = vmatprep.mubr.f32.mxu0 0.0
      %2154 = vmatmul.mubr.f32.gmra.mrb[0].mxu0 %v393
      %v2155 = vpop.f32.mrb[0].mxu0
      %v2156 = vadd.f32 0.0, %v2155
      %v2157 = vpop.f32.mrb[0].mxu0
      %2158 = vmatprep.mubr.f32.mxu0 0.0
      %2159 = vmatmul.mubr.f32.gmra.mrb[0].mxu0 %v396
      %v2160 = vpop.f32.mrb[0].mxu0
      %v2161 = vadd.f32 0.0, %v2160
      %v2162 = vpop.f32.mrb[0].mxu0
      %2163 = vmatprep.mubr.f32.mxu0 0.0
      %2164 = vmatmul.mubr.f32.gmra.mrb[0].mxu0 %v399
      %v2165 = vpop.f32.mrb[0].mxu0
      %v2166 = vadd.f32 0.0, %v2165
      %v2167 = vpop.f32.mrb[0].mxu0
      %2168 = vmatprep.mubr.f32.mxu0 0.0
      %2169 = vmatmul.mubr.f32.gmra.mrb[0].mxu0 %v402
      %v2170 = vpop.f32.mrb[0].mxu0
      %v2171 = vadd.f32 0.0, %v2170
      %v2172 = vpop.f32.mrb[0].mxu0
      %2173 = vmatprep.mubr.f32.mxu0 0.0
      %2174 = vmatmul.mubr.f32.gmra.mrb[0].mxu0 %v405
      %v2175 = vpop.f32.mrb[0].mxu0
      %v2176 = vadd.f32 0.0, %v2175
      %v2177 = vpop.f32.mrb[0].mxu0
      %2178 = vmatprep.mubr.f32.mxu0 0.0
      %2179 = vmatmul.mubr.f32.gmra.mrb[0].mxu0 %v408
      %v2180 = vpop.f32.mrb[0].mxu0
      %v2181 = vadd.f32 0.0, %v2180
      %v2182 = vpop.f32.mrb[0].mxu0
      %2183 = vmatprep.mubr.f32.mxu0 0.0
      %2184 = vmatmul.mubr.f32.gmra.mrb[0].mxu0 %v1883
      %v2185 = vpop.f32.mrb[0].mxu0
      %v2186 = vadd.f32 0.0, %v2185
      %v2187 = vpop.f32.mrb[0].mxu0
      %2188 = vmatprep.mubr.f32.mxu0 0.0
      %2189 = vmatmul.mubr.f32.gmra.mrb[0].mxu0 %v1886
      %v2190 = vpop.f32.mrb[0].mxu0
      %v2191 = vadd.f32 0.0, %v2190
      %v2192 = vpop.f32.mrb[0].mxu0
      %2193 = vmatprep.mubr.f32.mxu0 0.0
      %2194 = vmatmul.mubr.f32.gmra.mrb[0].mxu0 %v1889
      %v2195 = vpop.f32.mrb[0].mxu0
      %v2196 = vadd.f32 0.0, %v2195
      %v2197 = vpop.f32.mrb[0].mxu0
      %2198 = vdwg.mxu0
      %v2199 = vadd.f32 %v1832, %v1961
      %v2200 = vadd.f32 %v1833, %v1966
      %v2201 = vadd.f32 %v1834, %v1971
      %v2202 = vadd.f32 %v1835, %v1976
      %v2203 = vadd.f32 %v1836, %v1981
      %v2204 = vadd.f32 %v1837, %v1986
      %v2205 = vadd.f32 %v1838, %v1991
      %v2206 = vadd.f32 %v1839, %v1996
      %v2207 = vadd.f32 %v1840, %v2001
      %v2208 = vadd.f32 %v1841, %v2006
      %v2209 = vadd.f32 %v1842, %v2011
      %v2210 = vadd.f32 %v1843, %v2016
      %v2211 = vadd.f32 %v1844, %v2021
      %v2212 = vadd.f32 %v1845, %v2026
      %v2213 = vadd.f32 %v1846, %v2031
      %v2214 = vadd.f32 %v1847, %v2036
      %v2215 = vadd.f32 %v1848, %v2041
      %v2216 = vadd.f32 %v1849, %v2046
      %v2217 = vadd.f32 %v1850, %v2051
      %v2218 = vadd.f32 %v1851, %v2056
      %v2219 = vadd.f32 %v1852, %v2061
      %v2220 = vadd.f32 %v1853, %v2066
      %v2221 = vadd.f32 %v1854, %v2071
      %v2222 = vadd.f32 %v1855, %v2076
      %v2223 = vadd.f32 %v1856, %v2081
      %v2224 = vadd.f32 %v1857, %v2086
      %v2225 = vadd.f32 %v1858, %v2091
      %v2226 = vadd.f32 %v1859, %v2096
      %v2227 = vadd.f32 %v1860, %v2101
      %v2228 = vadd.f32 %v1861, %v2106
      %v2229 = vadd.f32 %v1862, %v2111
      %v2230 = vadd.f32 %v1863, %v2116
      %v2231 = vadd.f32 %v1864, %v2121
      %v2232 = vadd.f32 %v1865, %v2126
      %v2233 = vadd.f32 %v1866, %v2131
      %v2234 = vadd.f32 %v1867, %v2136
      %v2235 = vadd.f32 %v1868, %v2141
      %v2236 = vadd.f32 %v1869, %v2146
      %v2237 = vadd.f32 %v1870, %v2151
      %v2238 = vadd.f32 %v1871, %v2156
      %v2239 = vadd.f32 %v1872, %v2161
      %v2240 = vadd.f32 %v1873, %v2166
      %v2241 = vadd.f32 %v1874, %v2171
      %v2242 = vadd.f32 %v1875, %v2176
      %v2243 = vadd.f32 %v1876, %v2181
      %v2244 = vadd.f32 %v1877, %v2186
      %v2245 = vadd.f32 %v1878, %v2191
      %v2246 = vadd.f32 %v1879, %v2196
      %s2247 = scalar_lea.vmem %s1, 64
      %v2248 = vld [vmem:[%s2247] sm:$0xff]
      %v2249 = vld [vmem:[%s2247 + $0x8] sm:$0x3]
      %v2251 = vrot.slane %v256, 1
      %v2252 = vsel %vm777, %v873, %v2251
      %v2253 = vrot.slane %v257, 1
      %v2254 = vsel %vm777, %v2251, %v2253
      %v2255 = vrot.slane %v258, 1
      %v2256 = vsel %vm777, %v2253, %v2255
      %v2257 = vsel %vm265, %v2252, 0
      %v2259 = vsel %vm265, %v2254, 0
      %v2261 = vsel %vm265, %v2256, 0
      %v2264 = vsel %vm410, %v2249, 0
      %2266 = vmatprep.subr.mxu0 0.0
      %2267 = vmatpush1.msra.mxu0 %v2248
      %2268 = vmatprep.subr.mxu0 0.0
      %2269 = vmatpush1.msra.mxu0 %v2264
      %2270 = vmatprep.subr.mxu0 0.0
      %2271 = vmatpush1.msra.mxu0 0.0
      %2272 = vmatprep.subr.mxu0 0.0
      %2273 = vmatpush1.msra.mxu0 0.0
      %2274 = vmatprep.subr.mxu0 0.0
      %2275 = vmatpush1.msra.mxu0 0.0
      %2276 = vmatprep.subr.mxu0 0.0
      %2277 = vmatpush1.msra.mxu0 0.0
      %2278 = vmatprep.subr.mxu0 0.0
      %2279 = vmatpush1.msra.mxu0 0.0
      %2280 = vmatprep.subr.mxu0 0.0
      %2281 = vmatpush1.msra.mxu0 0.0
      %2282 = vmatprep.subr.mxu0 0.0
      %2283 = vmatpush1.msra.mxu0 0.0
      %2284 = vmatprep.subr.mxu0 0.0
      %2285 = vmatpush1.msra.mxu0 0.0
      %2286 = vmatprep.subr.mxu0 0.0
      %2287 = vmatpush1.msra.mxu0 0.0
      %2288 = vmatprep.subr.mxu0 0.0
      %2289 = vmatpush1.msra.mxu0 0.0
      %2290 = vmatprep.subr.mxu0 0.0
      %2291 = vmatpush1.msra.mxu0 0.0
      %2292 = vmatprep.subr.mxu0 0.0
      %2293 = vmatpush1.msra.mxu0 0.0
      %2294 = vmatprep.subr.mxu0 0.0
      %2295 = vmatpush1.msra.mxu0 0.0
      %2296 = vmatprep.subr.mxu0 0.0
      %2297 = vmatpush1.msra.mxu0 0.0
      %2298 = vmatprep.subr.mxu0 0.0
      %2299 = vmatpush1.msra.mxu0 0.0
      %2300 = vmatprep.subr.mxu0 0.0
      %2301 = vmatpush1.msra.mxu0 0.0
      %2302 = vmatprep.subr.mxu0 0.0
      %2303 = vmatpush1.msra.mxu0 0.0
      %2304 = vmatprep.subr.mxu0 0.0
      %2305 = vmatpush1.msra.mxu0 0.0
      %2306 = vmatprep.subr.mxu0 0.0
      %2307 = vmatpush1.msra.mxu0 0.0
      %2308 = vmatprep.subr.mxu0 0.0
      %2309 = vmatpush1.msra.mxu0 0.0
      %2310 = vmatprep.subr.mxu0 0.0
      %2311 = vmatpush1.msra.mxu0 0.0
      %2312 = vmatprep.subr.mxu0 0.0
      %2313 = vmatpush1.msra.mxu0 0.0
      %2314 = vmatprep.subr.mxu0 0.0
      %2315 = vmatpush1.msra.mxu0 0.0
      %2316 = vmatprep.subr.mxu0 0.0
      %2317 = vmatpush1.msra.mxu0 0.0
      %2318 = vmatprep.subr.mxu0 0.0
      %2319 = vmatpush1.msra.mxu0 0.0
      %2320 = vmatprep.subr.mxu0 0.0
      %2321 = vmatpush1.msra.mxu0 0.0
      %2322 = vmatprep.subr.mxu0 0.0
      %2323 = vmatpush1.msra.mxu0 0.0
      %2324 = vmatprep.subr.mxu0 0.0
      %2325 = vmatpush1.msra.mxu0 0.0
      %2326 = vmatprep.subr.mxu0 0.0
      %2327 = vmatpush1.msra.mxu0 0.0
      %2328 = vmatprep.subr.mxu0 0.0
      %2329 = vmatpush1.msra.mxu0 0.0
      %2330 = vmatprep.mubr.f32.mxu0 0.0
      %2331 = vmatmul.mubr.f32.gmra.mrb[0].mxu0 %v881
      %v2332 = vpop.f32.mrb[0].mxu0
      %v2333 = vadd.f32 0.0, %v2332
      %v2334 = vpop.f32.mrb[0].mxu0
      %2335 = vmatprep.mubr.f32.mxu0 0.0
      %2336 = vmatmul.mubr.f32.gmra.mrb[0].mxu0 %v883
      %v2337 = vpop.f32.mrb[0].mxu0
      %v2338 = vadd.f32 0.0, %v2337
      %v2339 = vpop.f32.mrb[0].mxu0
      %2340 = vmatprep.mubr.f32.mxu0 0.0
      %2341 = vmatmul.mubr.f32.gmra.mrb[0].mxu0 %v885
      %v2342 = vpop.f32.mrb[0].mxu0
      %v2343 = vadd.f32 0.0, %v2342
      %v2344 = vpop.f32.mrb[0].mxu0
      %2345 = vmatprep.mubr.f32.mxu0 0.0
      %2346 = vmatmul.mubr.f32.gmra.mrb[0].mxu0 %v887
      %v2347 = vpop.f32.mrb[0].mxu0
      %v2348 = vadd.f32 0.0, %v2347
      %v2349 = vpop.f32.mrb[0].mxu0
      %2350 = vmatprep.mubr.f32.mxu0 0.0
      %2351 = vmatmul.mubr.f32.gmra.mrb[0].mxu0 %v889
      %v2352 = vpop.f32.mrb[0].mxu0
      %v2353 = vadd.f32 0.0, %v2352
      %v2354 = vpop.f32.mrb[0].mxu0
      %2355 = vmatprep.mubr.f32.mxu0 0.0
      %2356 = vmatmul.mubr.f32.gmra.mrb[0].mxu0 %v891
      %v2357 = vpop.f32.mrb[0].mxu0
      %v2358 = vadd.f32 0.0, %v2357
      %v2359 = vpop.f32.mrb[0].mxu0
      %2360 = vmatprep.mubr.f32.mxu0 0.0
      %2361 = vmatmul.mubr.f32.gmra.mrb[0].mxu0 %v893
      %v2362 = vpop.f32.mrb[0].mxu0
      %v2363 = vadd.f32 0.0, %v2362
      %v2364 = vpop.f32.mrb[0].mxu0
      %2365 = vmatprep.mubr.f32.mxu0 0.0
      %2366 = vmatmul.mubr.f32.gmra.mrb[0].mxu0 %v895
      %v2367 = vpop.f32.mrb[0].mxu0
      %v2368 = vadd.f32 0.0, %v2367
      %v2369 = vpop.f32.mrb[0].mxu0
      %2370 = vmatprep.mubr.f32.mxu0 0.0
      %2371 = vmatmul.mubr.f32.gmra.mrb[0].mxu0 %v897
      %v2372 = vpop.f32.mrb[0].mxu0
      %v2373 = vadd.f32 0.0, %v2372
      %v2374 = vpop.f32.mrb[0].mxu0
      %2375 = vmatprep.mubr.f32.mxu0 0.0
      %2376 = vmatmul.mubr.f32.gmra.mrb[0].mxu0 %v899
      %v2377 = vpop.f32.mrb[0].mxu0
      %v2378 = vadd.f32 0.0, %v2377
      %v2379 = vpop.f32.mrb[0].mxu0
      %2380 = vmatprep.mubr.f32.mxu0 0.0
      %2381 = vmatmul.mubr.f32.gmra.mrb[0].mxu0 %v901
      %v2382 = vpop.f32.mrb[0].mxu0
      %v2383 = vadd.f32 0.0, %v2382
      %v2384 = vpop.f32.mrb[0].mxu0
      %2385 = vmatprep.mubr.f32.mxu0 0.0
      %2386 = vmatmul.mubr.f32.gmra.mrb[0].mxu0 %v903
      %v2387 = vpop.f32.mrb[0].mxu0
      %v2388 = vadd.f32 0.0, %v2387
      %v2389 = vpop.f32.mrb[0].mxu0
      %2390 = vmatprep.mubr.f32.mxu0 0.0
      %2391 = vmatmul.mubr.f32.gmra.mrb[0].mxu0 %v905
      %v2392 = vpop.f32.mrb[0].mxu0
      %v2393 = vadd.f32 0.0, %v2392
      %v2394 = vpop.f32.mrb[0].mxu0
      %2395 = vmatprep.mubr.f32.mxu0 0.0
      %2396 = vmatmul.mubr.f32.gmra.mrb[0].mxu0 %v907
      %v2397 = vpop.f32.mrb[0].mxu0
      %v2398 = vadd.f32 0.0, %v2397
      %v2399 = vpop.f32.mrb[0].mxu0
      %2400 = vmatprep.mubr.f32.mxu0 0.0
      %2401 = vmatmul.mubr.f32.gmra.mrb[0].mxu0 %v909
      %v2402 = vpop.f32.mrb[0].mxu0
      %v2403 = vadd.f32 0.0, %v2402
      %v2404 = vpop.f32.mrb[0].mxu0
      %2405 = vmatprep.mubr.f32.mxu0 0.0
      %2406 = vmatmul.mubr.f32.gmra.mrb[0].mxu0 %v911
      %v2407 = vpop.f32.mrb[0].mxu0
      %v2408 = vadd.f32 0.0, %v2407
      %v2409 = vpop.f32.mrb[0].mxu0
      %2410 = vmatprep.mubr.f32.mxu0 0.0
      %2411 = vmatmul.mubr.f32.gmra.mrb[0].mxu0 %v913
      %v2412 = vpop.f32.mrb[0].mxu0
      %v2413 = vadd.f32 0.0, %v2412
      %v2414 = vpop.f32.mrb[0].mxu0
      %2415 = vmatprep.mubr.f32.mxu0 0.0
      %2416 = vmatmul.mubr.f32.gmra.mrb[0].mxu0 %v915
      %v2417 = vpop.f32.mrb[0].mxu0
      %v2418 = vadd.f32 0.0, %v2417
      %v2419 = vpop.f32.mrb[0].mxu0
      %2420 = vmatprep.mubr.f32.mxu0 0.0
      %2421 = vmatmul.mubr.f32.gmra.mrb[0].mxu0 %v917
      %v2422 = vpop.f32.mrb[0].mxu0
      %v2423 = vadd.f32 0.0, %v2422
      %v2424 = vpop.f32.mrb[0].mxu0
      %2425 = vmatprep.mubr.f32.mxu0 0.0
      %2426 = vmatmul.mubr.f32.gmra.mrb[0].mxu0 %v919
      %v2427 = vpop.f32.mrb[0].mxu0
      %v2428 = vadd.f32 0.0, %v2427
      %v2429 = vpop.f32.mrb[0].mxu0
      %2430 = vmatprep.mubr.f32.mxu0 0.0
      %2431 = vmatmul.mubr.f32.gmra.mrb[0].mxu0 %v921
      %v2432 = vpop.f32.mrb[0].mxu0
      %v2433 = vadd.f32 0.0, %v2432
      %v2434 = vpop.f32.mrb[0].mxu0
      %2435 = vmatprep.mubr.f32.mxu0 0.0
      %2436 = vmatmul.mubr.f32.gmra.mrb[0].mxu0 %v923
      %v2437 = vpop.f32.mrb[0].mxu0
      %v2438 = vadd.f32 0.0, %v2437
      %v2439 = vpop.f32.mrb[0].mxu0
      %2440 = vmatprep.mubr.f32.mxu0 0.0
      %2441 = vmatmul.mubr.f32.gmra.mrb[0].mxu0 %v925
      %v2442 = vpop.f32.mrb[0].mxu0
      %v2443 = vadd.f32 0.0, %v2442
      %v2444 = vpop.f32.mrb[0].mxu0
      %2445 = vmatprep.mubr.f32.mxu0 0.0
      %2446 = vmatmul.mubr.f32.gmra.mrb[0].mxu0 %v927
      %v2447 = vpop.f32.mrb[0].mxu0
      %v2448 = vadd.f32 0.0, %v2447
      %v2449 = vpop.f32.mrb[0].mxu0
      %2450 = vmatprep.mubr.f32.mxu0 0.0
      %2451 = vmatmul.mubr.f32.gmra.mrb[0].mxu0 %v929
      %v2452 = vpop.f32.mrb[0].mxu0
      %v2453 = vadd.f32 0.0, %v2452
      %v2454 = vpop.f32.mrb[0].mxu0
      %2455 = vmatprep.mubr.f32.mxu0 0.0
      %2456 = vmatmul.mubr.f32.gmra.mrb[0].mxu0 %v931
      %v2457 = vpop.f32.mrb[0].mxu0
      %v2458 = vadd.f32 0.0, %v2457
      %v2459 = vpop.f32.mrb[0].mxu0
      %2460 = vmatprep.mubr.f32.mxu0 0.0
      %2461 = vmatmul.mubr.f32.gmra.mrb[0].mxu0 %v933
      %v2462 = vpop.f32.mrb[0].mxu0
      %v2463 = vadd.f32 0.0, %v2462
      %v2464 = vpop.f32.mrb[0].mxu0
      %2465 = vmatprep.mubr.f32.mxu0 0.0
      %2466 = vmatmul.mubr.f32.gmra.mrb[0].mxu0 %v935
      %v2467 = vpop.f32.mrb[0].mxu0
      %v2468 = vadd.f32 0.0, %v2467
      %v2469 = vpop.f32.mrb[0].mxu0
      %2470 = vmatprep.mubr.f32.mxu0 0.0
      %2471 = vmatmul.mubr.f32.gmra.mrb[0].mxu0 %v937
      %v2472 = vpop.f32.mrb[0].mxu0
      %v2473 = vadd.f32 0.0, %v2472
      %v2474 = vpop.f32.mrb[0].mxu0
      %2475 = vmatprep.mubr.f32.mxu0 0.0
      %2476 = vmatmul.mubr.f32.gmra.mrb[0].mxu0 %v939
      %v2477 = vpop.f32.mrb[0].mxu0
      %v2478 = vadd.f32 0.0, %v2477
      %v2479 = vpop.f32.mrb[0].mxu0
      %2480 = vmatprep.mubr.f32.mxu0 0.0
      %2481 = vmatmul.mubr.f32.gmra.mrb[0].mxu0 %v941
      %v2482 = vpop.f32.mrb[0].mxu0
      %v2483 = vadd.f32 0.0, %v2482
      %v2484 = vpop.f32.mrb[0].mxu0
      %2485 = vmatprep.mubr.f32.mxu0 0.0
      %2486 = vmatmul.mubr.f32.gmra.mrb[0].mxu0 %v943
      %v2487 = vpop.f32.mrb[0].mxu0
      %v2488 = vadd.f32 0.0, %v2487
      %v2489 = vpop.f32.mrb[0].mxu0
      %2490 = vmatprep.mubr.f32.mxu0 0.0
      %2491 = vmatmul.mubr.f32.gmra.mrb[0].mxu0 %v945
      %v2492 = vpop.f32.mrb[0].mxu0
      %v2493 = vadd.f32 0.0, %v2492
      %v2494 = vpop.f32.mrb[0].mxu0
      %2495 = vmatprep.mubr.f32.mxu0 0.0
      %2496 = vmatmul.mubr.f32.gmra.mrb[0].mxu0 %v947
      %v2497 = vpop.f32.mrb[0].mxu0
      %v2498 = vadd.f32 0.0, %v2497
      %v2499 = vpop.f32.mrb[0].mxu0
      %2500 = vmatprep.mubr.f32.mxu0 0.0
      %2501 = vmatmul.mubr.f32.gmra.mrb[0].mxu0 %v949
      %v2502 = vpop.f32.mrb[0].mxu0
      %v2503 = vadd.f32 0.0, %v2502
      %v2504 = vpop.f32.mrb[0].mxu0
      %2505 = vmatprep.mubr.f32.mxu0 0.0
      %2506 = vmatmul.mubr.f32.gmra.mrb[0].mxu0 %v951
      %v2507 = vpop.f32.mrb[0].mxu0
      %v2508 = vadd.f32 0.0, %v2507
      %v2509 = vpop.f32.mrb[0].mxu0
      %2510 = vmatprep.mubr.f32.mxu0 0.0
      %2511 = vmatmul.mubr.f32.gmra.mrb[0].mxu0 %v953
      %v2512 = vpop.f32.mrb[0].mxu0
      %v2513 = vadd.f32 0.0, %v2512
      %v2514 = vpop.f32.mrb[0].mxu0
      %2515 = vmatprep.mubr.f32.mxu0 0.0
      %2516 = vmatmul.mubr.f32.gmra.mrb[0].mxu0 %v955
      %v2517 = vpop.f32.mrb[0].mxu0
      %v2518 = vadd.f32 0.0, %v2517
      %v2519 = vpop.f32.mrb[0].mxu0
      %2520 = vmatprep.mubr.f32.mxu0 0.0
      %2521 = vmatmul.mubr.f32.gmra.mrb[0].mxu0 %v957
      %v2522 = vpop.f32.mrb[0].mxu0
      %v2523 = vadd.f32 0.0, %v2522
      %v2524 = vpop.f32.mrb[0].mxu0
      %2525 = vmatprep.mubr.f32.mxu0 0.0
      %2526 = vmatmul.mubr.f32.gmra.mrb[0].mxu0 %v959
      %v2527 = vpop.f32.mrb[0].mxu0
      %v2528 = vadd.f32 0.0, %v2527
      %v2529 = vpop.f32.mrb[0].mxu0
      %2530 = vmatprep.mubr.f32.mxu0 0.0
      %2531 = vmatmul.mubr.f32.gmra.mrb[0].mxu0 %v961
      %v2532 = vpop.f32.mrb[0].mxu0
      %v2533 = vadd.f32 0.0, %v2532
      %v2534 = vpop.f32.mrb[0].mxu0
      %2535 = vmatprep.mubr.f32.mxu0 0.0
      %2536 = vmatmul.mubr.f32.gmra.mrb[0].mxu0 %v963
      %v2537 = vpop.f32.mrb[0].mxu0
      %v2538 = vadd.f32 0.0, %v2537
      %v2539 = vpop.f32.mrb[0].mxu0
      %2540 = vmatprep.mubr.f32.mxu0 0.0
      %2541 = vmatmul.mubr.f32.gmra.mrb[0].mxu0 %v965
      %v2542 = vpop.f32.mrb[0].mxu0
      %v2543 = vadd.f32 0.0, %v2542
      %v2544 = vpop.f32.mrb[0].mxu0
      %2545 = vmatprep.mubr.f32.mxu0 0.0
      %2546 = vmatmul.mubr.f32.gmra.mrb[0].mxu0 %v967
      %v2547 = vpop.f32.mrb[0].mxu0
      %v2548 = vadd.f32 0.0, %v2547
      %v2549 = vpop.f32.mrb[0].mxu0
      %2550 = vmatprep.mubr.f32.mxu0 0.0
      %2551 = vmatmul.mubr.f32.gmra.mrb[0].mxu0 %v969
      %v2552 = vpop.f32.mrb[0].mxu0
      %v2553 = vadd.f32 0.0, %v2552
      %v2554 = vpop.f32.mrb[0].mxu0
      %2555 = vmatprep.mubr.f32.mxu0 0.0
      %2556 = vmatmul.mubr.f32.gmra.mrb[0].mxu0 %v2257
      %v2557 = vpop.f32.mrb[0].mxu0
      %v2558 = vadd.f32 0.0, %v2557
      %v2559 = vpop.f32.mrb[0].mxu0
      %2560 = vmatprep.mubr.f32.mxu0 0.0
      %2561 = vmatmul.mubr.f32.gmra.mrb[0].mxu0 %v2259
      %v2562 = vpop.f32.mrb[0].mxu0
      %v2563 = vadd.f32 0.0, %v2562
      %v2564 = vpop.f32.mrb[0].mxu0
      %2565 = vmatprep.mubr.f32.mxu0 0.0
      %2566 = vmatmul.mubr.f32.gmra.mrb[0].mxu0 %v2261
      %v2567 = vpop.f32.mrb[0].mxu0
      %v2568 = vadd.f32 0.0, %v2567
      %v2569 = vpop.f32.mrb[0].mxu0
      %2570 = vdwg.mxu0
      %v2571 = vadd.f32 %v2199, %v2333
      %v2572 = vadd.f32 %v2200, %v2338
      %v2573 = vadd.f32 %v2201, %v2343
      %v2574 = vadd.f32 %v2202, %v2348
      %v2575 = vadd.f32 %v2203, %v2353
      %v2576 = vadd.f32 %v2204, %v2358
      %v2577 = vadd.f32 %v2205, %v2363
      %v2578 = vadd.f32 %v2206, %v2368
      %v2579 = vadd.f32 %v2207, %v2373
      %v2580 = vadd.f32 %v2208, %v2378
      %v2581 = vadd.f32 %v2209, %v2383
      %v2582 = vadd.f32 %v2210, %v2388
      %v2583 = vadd.f32 %v2211, %v2393
      %v2584 = vadd.f32 %v2212, %v2398
      %v2585 = vadd.f32 %v2213, %v2403
      %v2586 = vadd.f32 %v2214, %v2408
      %v2587 = vadd.f32 %v2215, %v2413
      %v2588 = vadd.f32 %v2216, %v2418
      %v2589 = vadd.f32 %v2217, %v2423
      %v2590 = vadd.f32 %v2218, %v2428
      %v2591 = vadd.f32 %v2219, %v2433
      %v2592 = vadd.f32 %v2220, %v2438
      %v2593 = vadd.f32 %v2221, %v2443
      %v2594 = vadd.f32 %v2222, %v2448
      %v2595 = vadd.f32 %v2223, %v2453
      %v2596 = vadd.f32 %v2224, %v2458
      %v2597 = vadd.f32 %v2225, %v2463
      %v2598 = vadd.f32 %v2226, %v2468
      %v2599 = vadd.f32 %v2227, %v2473
      %v2600 = vadd.f32 %v2228, %v2478
      %v2601 = vadd.f32 %v2229, %v2483
      %v2602 = vadd.f32 %v2230, %v2488
      %v2603 = vadd.f32 %v2231, %v2493
      %v2604 = vadd.f32 %v2232, %v2498
      %v2605 = vadd.f32 %v2233, %v2503
      %v2606 = vadd.f32 %v2234, %v2508
      %v2607 = vadd.f32 %v2235, %v2513
      %v2608 = vadd.f32 %v2236, %v2518
      %v2609 = vadd.f32 %v2237, %v2523
      %v2610 = vadd.f32 %v2238, %v2528
      %v2611 = vadd.f32 %v2239, %v2533
      %v2612 = vadd.f32 %v2240, %v2538
      %v2613 = vadd.f32 %v2241, %v2543
      %v2614 = vadd.f32 %v2242, %v2548
      %v2615 = vadd.f32 %v2243, %v2553
      %v2616 = vadd.f32 %v2244, %v2558
      %v2617 = vadd.f32 %v2245, %v2563
      %v2618 = vadd.f32 %v2246, %v2568
      %s2619 = scalar_lea.vmem %s1, 80
      %v2620 = vld [vmem:[%s2619] sm:$0xff]
      %v2621 = vld [vmem:[%s2619 + $0x8] sm:$0x3]
      %v2622 = vrot.slane %v256, 2
      %v2623 = vsel %vm1330, %v1426, %v2622
      %v2624 = vrot.slane %v257, 2
      %v2625 = vsel %vm1330, %v2622, %v2624
      %v2626 = vrot.slane %v258, 2
      %v2627 = vsel %vm1330, %v2624, %v2626
      %v2628 = vsel %vm265, %v2623, 0
      %v2630 = vsel %vm265, %v2625, 0
      %v2632 = vsel %vm265, %v2627, 0
      %v2635 = vsel %vm410, %v2621, 0
      %2637 = vmatprep.subr.mxu0 0.0
      %2638 = vmatpush1.msra.mxu0 %v2620
      %2639 = vmatprep.subr.mxu0 0.0
      %2640 = vmatpush1.msra.mxu0 %v2635
      %2641 = vmatprep.subr.mxu0 0.0
      %2642 = vmatpush1.msra.mxu0 0.0
      %2643 = vmatprep.subr.mxu0 0.0
      %2644 = vmatpush1.msra.mxu0 0.0
      %2645 = vmatprep.subr.mxu0 0.0
      %2646 = vmatpush1.msra.mxu0 0.0
      %2647 = vmatprep.subr.mxu0 0.0
      %2648 = vmatpush1.msra.mxu0 0.0
      %2649 = vmatprep.subr.mxu0 0.0
      %2650 = vmatpush1.msra.mxu0 0.0
      %2651 = vmatprep.subr.mxu0 0.0
      %2652 = vmatpush1.msra.mxu0 0.0
      %2653 = vmatprep.subr.mxu0 0.0
      %2654 = vmatpush1.msra.mxu0 0.0
      %2655 = vmatprep.subr.mxu0 0.0
      %2656 = vmatpush1.msra.mxu0 0.0
      %2657 = vmatprep.subr.mxu0 0.0
      %2658 = vmatpush1.msra.mxu0 0.0
      %2659 = vmatprep.subr.mxu0 0.0
      %2660 = vmatpush1.msra.mxu0 0.0
      %2661 = vmatprep.subr.mxu0 0.0
      %2662 = vmatpush1.msra.mxu0 0.0
      %2663 = vmatprep.subr.mxu0 0.0
      %2664 = vmatpush1.msra.mxu0 0.0
      %2665 = vmatprep.subr.mxu0 0.0
      %2666 = vmatpush1.msra.mxu0 0.0
      %2667 = vmatprep.subr.mxu0 0.0
      %2668 = vmatpush1.msra.mxu0 0.0
      %2669 = vmatprep.subr.mxu0 0.0
      %2670 = vmatpush1.msra.mxu0 0.0
      %2671 = vmatprep.subr.mxu0 0.0
      %2672 = vmatpush1.msra.mxu0 0.0
      %2673 = vmatprep.subr.mxu0 0.0
      %2674 = vmatpush1.msra.mxu0 0.0
      %2675 = vmatprep.subr.mxu0 0.0
      %2676 = vmatpush1.msra.mxu0 0.0
      %2677 = vmatprep.subr.mxu0 0.0
      %2678 = vmatpush1.msra.mxu0 0.0
      %2679 = vmatprep.subr.mxu0 0.0
      %2680 = vmatpush1.msra.mxu0 0.0
      %2681 = vmatprep.subr.mxu0 0.0
      %2682 = vmatpush1.msra.mxu0 0.0
      %2683 = vmatprep.subr.mxu0 0.0
      %2684 = vmatpush1.msra.mxu0 0.0
      %2685 = vmatprep.subr.mxu0 0.0
      %2686 = vmatpush1.msra.mxu0 0.0
      %2687 = vmatprep.subr.mxu0 0.0
      %2688 = vmatpush1.msra.mxu0 0.0
      %2689 = vmatprep.subr.mxu0 0.0
      %2690 = vmatpush1.msra.mxu0 0.0
      %2691 = vmatprep.subr.mxu0 0.0
      %2692 = vmatpush1.msra.mxu0 0.0
      %2693 = vmatprep.subr.mxu0 0.0
      %2694 = vmatpush1.msra.mxu0 0.0
      %2695 = vmatprep.subr.mxu0 0.0
      %2696 = vmatpush1.msra.mxu0 0.0
      %2697 = vmatprep.subr.mxu0 0.0
      %2698 = vmatpush1.msra.mxu0 0.0
      %2699 = vmatprep.subr.mxu0 0.0
      %2700 = vmatpush1.msra.mxu0 0.0
      %2701 = vmatprep.mubr.f32.mxu0 0.0
      %2702 = vmatmul.mubr.f32.gmra.mrb[0].mxu0 %v1434
      %v2703 = vpop.f32.mrb[0].mxu0
      %v2704 = vadd.f32 0.0, %v2703
      %v2705 = vpop.f32.mrb[0].mxu0
      %2706 = vmatprep.mubr.f32.mxu0 0.0
      %2707 = vmatmul.mubr.f32.gmra.mrb[0].mxu0 %v1436
      %v2708 = vpop.f32.mrb[0].mxu0
      %v2709 = vadd.f32 0.0, %v2708
      %v2710 = vpop.f32.mrb[0].mxu0
      %2711 = vmatprep.mubr.f32.mxu0 0.0
      %2712 = vmatmul.mubr.f32.gmra.mrb[0].mxu0 %v1438
      %v2713 = vpop.f32.mrb[0].mxu0
      %v2714 = vadd.f32 0.0, %v2713
      %v2715 = vpop.f32.mrb[0].mxu0
      %2716 = vmatprep.mubr.f32.mxu0 0.0
      %2717 = vmatmul.mubr.f32.gmra.mrb[0].mxu0 %v1440
      %v2718 = vpop.f32.mrb[0].mxu0
      %v2719 = vadd.f32 0.0, %v2718
      %v2720 = vpop.f32.mrb[0].mxu0
      %2721 = vmatprep.mubr.f32.mxu0 0.0
      %2722 = vmatmul.mubr.f32.gmra.mrb[0].mxu0 %v1442
      %v2723 = vpop.f32.mrb[0].mxu0
      %v2724 = vadd.f32 0.0, %v2723
      %v2725 = vpop.f32.mrb[0].mxu0
      %2726 = vmatprep.mubr.f32.mxu0 0.0
      %2727 = vmatmul.mubr.f32.gmra.mrb[0].mxu0 %v1444
      %v2728 = vpop.f32.mrb[0].mxu0
      %v2729 = vadd.f32 0.0, %v2728
      %v2730 = vpop.f32.mrb[0].mxu0
      %2731 = vmatprep.mubr.f32.mxu0 0.0
      %2732 = vmatmul.mubr.f32.gmra.mrb[0].mxu0 %v1446
      %v2733 = vpop.f32.mrb[0].mxu0
      %v2734 = vadd.f32 0.0, %v2733
      %v2735 = vpop.f32.mrb[0].mxu0
      %2736 = vmatprep.mubr.f32.mxu0 0.0
      %2737 = vmatmul.mubr.f32.gmra.mrb[0].mxu0 %v1448
      %v2738 = vpop.f32.mrb[0].mxu0
      %v2739 = vadd.f32 0.0, %v2738
      %v2740 = vpop.f32.mrb[0].mxu0
      %2741 = vmatprep.mubr.f32.mxu0 0.0
      %2742 = vmatmul.mubr.f32.gmra.mrb[0].mxu0 %v1450
      %v2743 = vpop.f32.mrb[0].mxu0
      %v2744 = vadd.f32 0.0, %v2743
      %v2745 = vpop.f32.mrb[0].mxu0
      %2746 = vmatprep.mubr.f32.mxu0 0.0
      %2747 = vmatmul.mubr.f32.gmra.mrb[0].mxu0 %v1452
      %v2748 = vpop.f32.mrb[0].mxu0
      %v2749 = vadd.f32 0.0, %v2748
      %v2750 = vpop.f32.mrb[0].mxu0
      %2751 = vmatprep.mubr.f32.mxu0 0.0
      %2752 = vmatmul.mubr.f32.gmra.mrb[0].mxu0 %v1454
      %v2753 = vpop.f32.mrb[0].mxu0
      %v2754 = vadd.f32 0.0, %v2753
      %v2755 = vpop.f32.mrb[0].mxu0
      %2756 = vmatprep.mubr.f32.mxu0 0.0
      %2757 = vmatmul.mubr.f32.gmra.mrb[0].mxu0 %v1456
      %v2758 = vpop.f32.mrb[0].mxu0
      %v2759 = vadd.f32 0.0, %v2758
      %v2760 = vpop.f32.mrb[0].mxu0
      %2761 = vmatprep.mubr.f32.mxu0 0.0
      %2762 = vmatmul.mubr.f32.gmra.mrb[0].mxu0 %v1458
      %v2763 = vpop.f32.mrb[0].mxu0
      %v2764 = vadd.f32 0.0, %v2763
      %v2765 = vpop.f32.mrb[0].mxu0
      %2766 = vmatprep.mubr.f32.mxu0 0.0
      %2767 = vmatmul.mubr.f32.gmra.mrb[0].mxu0 %v1460
      %v2768 = vpop.f32.mrb[0].mxu0
      %v2769 = vadd.f32 0.0, %v2768
      %v2770 = vpop.f32.mrb[0].mxu0
      %2771 = vmatprep.mubr.f32.mxu0 0.0
      %2772 = vmatmul.mubr.f32.gmra.mrb[0].mxu0 %v1462
      %v2773 = vpop.f32.mrb[0].mxu0
      %v2774 = vadd.f32 0.0, %v2773
      %v2775 = vpop.f32.mrb[0].mxu0
      %2776 = vmatprep.mubr.f32.mxu0 0.0
      %2777 = vmatmul.mubr.f32.gmra.mrb[0].mxu0 %v1464
      %v2778 = vpop.f32.mrb[0].mxu0
      %v2779 = vadd.f32 0.0, %v2778
      %v2780 = vpop.f32.mrb[0].mxu0
      %2781 = vmatprep.mubr.f32.mxu0 0.0
      %2782 = vmatmul.mubr.f32.gmra.mrb[0].mxu0 %v1466
      %v2783 = vpop.f32.mrb[0].mxu0
      %v2784 = vadd.f32 0.0, %v2783
      %v2785 = vpop.f32.mrb[0].mxu0
      %2786 = vmatprep.mubr.f32.mxu0 0.0
      %2787 = vmatmul.mubr.f32.gmra.mrb[0].mxu0 %v1468
      %v2788 = vpop.f32.mrb[0].mxu0
      %v2789 = vadd.f32 0.0, %v2788
      %v2790 = vpop.f32.mrb[0].mxu0
      %2791 = vmatprep.mubr.f32.mxu0 0.0
      %2792 = vmatmul.mubr.f32.gmra.mrb[0].mxu0 %v1470
      %v2793 = vpop.f32.mrb[0].mxu0
      %v2794 = vadd.f32 0.0, %v2793
      %v2795 = vpop.f32.mrb[0].mxu0
      %2796 = vmatprep.mubr.f32.mxu0 0.0
      %2797 = vmatmul.mubr.f32.gmra.mrb[0].mxu0 %v1472
      %v2798 = vpop.f32.mrb[0].mxu0
      %v2799 = vadd.f32 0.0, %v2798
      %v2800 = vpop.f32.mrb[0].mxu0
      %2801 = vmatprep.mubr.f32.mxu0 0.0
      %2802 = vmatmul.mubr.f32.gmra.mrb[0].mxu0 %v1474
      %v2803 = vpop.f32.mrb[0].mxu0
      %v2804 = vadd.f32 0.0, %v2803
      %v2805 = vpop.f32.mrb[0].mxu0
      %2806 = vmatprep.mubr.f32.mxu0 0.0
      %2807 = vmatmul.mubr.f32.gmra.mrb[0].mxu0 %v1476
      %v2808 = vpop.f32.mrb[0].mxu0
      %v2809 = vadd.f32 0.0, %v2808
      %v2810 = vpop.f32.mrb[0].mxu0
      %2811 = vmatprep.mubr.f32.mxu0 0.0
      %2812 = vmatmul.mubr.f32.gmra.mrb[0].mxu0 %v1478
      %v2813 = vpop.f32.mrb[0].mxu0
      %v2814 = vadd.f32 0.0, %v2813
      %v2815 = vpop.f32.mrb[0].mxu0
      %2816 = vmatprep.mubr.f32.mxu0 0.0
      %2817 = vmatmul.mubr.f32.gmra.mrb[0].mxu0 %v1480
      %v2818 = vpop.f32.mrb[0].mxu0
      %v2819 = vadd.f32 0.0, %v2818
      %v2820 = vpop.f32.mrb[0].mxu0
      %2821 = vmatprep.mubr.f32.mxu0 0.0
      %2822 = vmatmul.mubr.f32.gmra.mrb[0].mxu0 %v1482
      %v2823 = vpop.f32.mrb[0].mxu0
      %v2824 = vadd.f32 0.0, %v2823
      %v2825 = vpop.f32.mrb[0].mxu0
      %2826 = vmatprep.mubr.f32.mxu0 0.0
      %2827 = vmatmul.mubr.f32.gmra.mrb[0].mxu0 %v1484
      %v2828 = vpop.f32.mrb[0].mxu0
      %v2829 = vadd.f32 0.0, %v2828
      %v2830 = vpop.f32.mrb[0].mxu0
      %2831 = vmatprep.mubr.f32.mxu0 0.0
      %2832 = vmatmul.mubr.f32.gmra.mrb[0].mxu0 %v1486
      %v2833 = vpop.f32.mrb[0].mxu0
      %v2834 = vadd.f32 0.0, %v2833
      %v2835 = vpop.f32.mrb[0].mxu0
      %2836 = vmatprep.mubr.f32.mxu0 0.0
      %2837 = vmatmul.mubr.f32.gmra.mrb[0].mxu0 %v1488
      %v2838 = vpop.f32.mrb[0].mxu0
      %v2839 = vadd.f32 0.0, %v2838
      %v2840 = vpop.f32.mrb[0].mxu0
      %2841 = vmatprep.mubr.f32.mxu0 0.0
      %2842 = vmatmul.mubr.f32.gmra.mrb[0].mxu0 %v1490
      %v2843 = vpop.f32.mrb[0].mxu0
      %v2844 = vadd.f32 0.0, %v2843
      %v2845 = vpop.f32.mrb[0].mxu0
      %2846 = vmatprep.mubr.f32.mxu0 0.0
      %2847 = vmatmul.mubr.f32.gmra.mrb[0].mxu0 %v1492
      %v2848 = vpop.f32.mrb[0].mxu0
      %v2849 = vadd.f32 0.0, %v2848
      %v2850 = vpop.f32.mrb[0].mxu0
      %2851 = vmatprep.mubr.f32.mxu0 0.0
      %2852 = vmatmul.mubr.f32.gmra.mrb[0].mxu0 %v1494
      %v2853 = vpop.f32.mrb[0].mxu0
      %v2854 = vadd.f32 0.0, %v2853
      %v2855 = vpop.f32.mrb[0].mxu0
      %2856 = vmatprep.mubr.f32.mxu0 0.0
      %2857 = vmatmul.mubr.f32.gmra.mrb[0].mxu0 %v1496
      %v2858 = vpop.f32.mrb[0].mxu0
      %v2859 = vadd.f32 0.0, %v2858
      %v2860 = vpop.f32.mrb[0].mxu0
      %2861 = vmatprep.mubr.f32.mxu0 0.0
      %2862 = vmatmul.mubr.f32.gmra.mrb[0].mxu0 %v1498
      %v2863 = vpop.f32.mrb[0].mxu0
      %v2864 = vadd.f32 0.0, %v2863
      %v2865 = vpop.f32.mrb[0].mxu0
      %2866 = vmatprep.mubr.f32.mxu0 0.0
      %2867 = vmatmul.mubr.f32.gmra.mrb[0].mxu0 %v1500
      %v2868 = vpop.f32.mrb[0].mxu0
      %v2869 = vadd.f32 0.0, %v2868
      %v2870 = vpop.f32.mrb[0].mxu0
      %2871 = vmatprep.mubr.f32.mxu0 0.0
      %2872 = vmatmul.mubr.f32.gmra.mrb[0].mxu0 %v1502
      %v2873 = vpop.f32.mrb[0].mxu0
      %v2874 = vadd.f32 0.0, %v2873
      %v2875 = vpop.f32.mrb[0].mxu0
      %2876 = vmatprep.mubr.f32.mxu0 0.0
      %2877 = vmatmul.mubr.f32.gmra.mrb[0].mxu0 %v1504
      %v2878 = vpop.f32.mrb[0].mxu0
      %v2879 = vadd.f32 0.0, %v2878
      %v2880 = vpop.f32.mrb[0].mxu0
      %2881 = vmatprep.mubr.f32.mxu0 0.0
      %2882 = vmatmul.mubr.f32.gmra.mrb[0].mxu0 %v1506
      %v2883 = vpop.f32.mrb[0].mxu0
      %v2884 = vadd.f32 0.0, %v2883
      %v2885 = vpop.f32.mrb[0].mxu0
      %2886 = vmatprep.mubr.f32.mxu0 0.0
      %2887 = vmatmul.mubr.f32.gmra.mrb[0].mxu0 %v1508
      %v2888 = vpop.f32.mrb[0].mxu0
      %v2889 = vadd.f32 0.0, %v2888
      %v2890 = vpop.f32.mrb[0].mxu0
      %2891 = vmatprep.mubr.f32.mxu0 0.0
      %2892 = vmatmul.mubr.f32.gmra.mrb[0].mxu0 %v1510
      %v2893 = vpop.f32.mrb[0].mxu0
      %v2894 = vadd.f32 0.0, %v2893
      %v2895 = vpop.f32.mrb[0].mxu0
      %2896 = vmatprep.mubr.f32.mxu0 0.0
      %2897 = vmatmul.mubr.f32.gmra.mrb[0].mxu0 %v1512
      %v2898 = vpop.f32.mrb[0].mxu0
      %v2899 = vadd.f32 0.0, %v2898
      %v2900 = vpop.f32.mrb[0].mxu0
      %2901 = vmatprep.mubr.f32.mxu0 0.0
      %2902 = vmatmul.mubr.f32.gmra.mrb[0].mxu0 %v1514
      %v2903 = vpop.f32.mrb[0].mxu0
      %v2904 = vadd.f32 0.0, %v2903
      %v2905 = vpop.f32.mrb[0].mxu0
      %2906 = vmatprep.mubr.f32.mxu0 0.0
      %2907 = vmatmul.mubr.f32.gmra.mrb[0].mxu0 %v1516
      %v2908 = vpop.f32.mrb[0].mxu0
      %v2909 = vadd.f32 0.0, %v2908
      %v2910 = vpop.f32.mrb[0].mxu0
      %2911 = vmatprep.mubr.f32.mxu0 0.0
      %2912 = vmatmul.mubr.f32.gmra.mrb[0].mxu0 %v1518
      %v2913 = vpop.f32.mrb[0].mxu0
      %v2914 = vadd.f32 0.0, %v2913
      %v2915 = vpop.f32.mrb[0].mxu0
      %2916 = vmatprep.mubr.f32.mxu0 0.0
      %2917 = vmatmul.mubr.f32.gmra.mrb[0].mxu0 %v1520
      %v2918 = vpop.f32.mrb[0].mxu0
      %v2919 = vadd.f32 0.0, %v2918
      %v2920 = vpop.f32.mrb[0].mxu0
      %2921 = vmatprep.mubr.f32.mxu0 0.0
      %2922 = vmatmul.mubr.f32.gmra.mrb[0].mxu0 %v1522
      %v2923 = vpop.f32.mrb[0].mxu0
      %v2924 = vadd.f32 0.0, %v2923
      %v2925 = vpop.f32.mrb[0].mxu0
      %2926 = vmatprep.mubr.f32.mxu0 0.0
      %2927 = vmatmul.mubr.f32.gmra.mrb[0].mxu0 %v2628
      %v2928 = vpop.f32.mrb[0].mxu0
      %v2929 = vadd.f32 0.0, %v2928
      %v2930 = vpop.f32.mrb[0].mxu0
      %2931 = vmatprep.mubr.f32.mxu0 0.0
      %2932 = vmatmul.mubr.f32.gmra.mrb[0].mxu0 %v2630
      %v2933 = vpop.f32.mrb[0].mxu0
      %v2934 = vadd.f32 0.0, %v2933
      %v2935 = vpop.f32.mrb[0].mxu0
      %2936 = vmatprep.mubr.f32.mxu0 0.0
      %2937 = vmatmul.mubr.f32.gmra.mrb[0].mxu0 %v2632
      %v2938 = vpop.f32.mrb[0].mxu0
      %v2939 = vadd.f32 0.0, %v2938
      %v2940 = vpop.f32.mrb[0].mxu0
      %2941 = vdwg.mxu0
      %v2942 = vadd.f32 %v2571, %v2704
      %v2943 = vadd.f32 %v2572, %v2709
      %v2944 = vadd.f32 %v2573, %v2714
      %v2945 = vadd.f32 %v2574, %v2719
      %v2946 = vadd.f32 %v2575, %v2724
      %v2947 = vadd.f32 %v2576, %v2729
      %v2948 = vadd.f32 %v2577, %v2734
      %v2949 = vadd.f32 %v2578, %v2739
      %v2950 = vadd.f32 %v2579, %v2744
      %v2951 = vadd.f32 %v2580, %v2749
      %v2952 = vadd.f32 %v2581, %v2754
      %v2953 = vadd.f32 %v2582, %v2759
      %v2954 = vadd.f32 %v2583, %v2764
      %v2955 = vadd.f32 %v2584, %v2769
      %v2956 = vadd.f32 %v2585, %v2774
      %v2957 = vadd.f32 %v2586, %v2779
      %v2958 = vadd.f32 %v2587, %v2784
      %v2959 = vadd.f32 %v2588, %v2789
      %v2960 = vadd.f32 %v2589, %v2794
      %v2961 = vadd.f32 %v2590, %v2799
      %v2962 = vadd.f32 %v2591, %v2804
      %v2963 = vadd.f32 %v2592, %v2809
      %v2964 = vadd.f32 %v2593, %v2814
      %v2965 = vadd.f32 %v2594, %v2819
      %v2966 = vadd.f32 %v2595, %v2824
      %v2967 = vadd.f32 %v2596, %v2829
      %v2968 = vadd.f32 %v2597, %v2834
      %v2969 = vadd.f32 %v2598, %v2839
      %v2970 = vadd.f32 %v2599, %v2844
      %v2971 = vadd.f32 %v2600, %v2849
      %v2972 = vadd.f32 %v2601, %v2854
      %v2973 = vadd.f32 %v2602, %v2859
      %v2974 = vadd.f32 %v2603, %v2864
      %v2975 = vadd.f32 %v2604, %v2869
      %v2976 = vadd.f32 %v2605, %v2874
      %v2977 = vadd.f32 %v2606, %v2879
      %v2978 = vadd.f32 %v2607, %v2884
      %v2979 = vadd.f32 %v2608, %v2889
      %v2980 = vadd.f32 %v2609, %v2894
      %v2981 = vadd.f32 %v2610, %v2899
      %v2982 = vadd.f32 %v2611, %v2904
      %v2983 = vadd.f32 %v2612, %v2909
      %v2984 = vadd.f32 %v2613, %v2914
      %v2985 = vadd.f32 %v2614, %v2919
      %v2986 = vadd.f32 %v2615, %v2924
      %v2987 = vadd.f32 %v2616, %v2929
      %v2988 = vadd.f32 %v2617, %v2934
      %v2989 = vadd.f32 %v2618, %v2939
      %s2990 = scalar_lea.vmem %s1, 96
      %v2991 = vld [vmem:[%s2990] sm:$0xff]
      %v2992 = vld [vmem:[%s2990 + $0x8] sm:$0x3]
      %v2993 = vsel %vm265, %v258, 0
      %v2996 = vsel %vm265, %v259, 0
      %v2999 = vsel %vm265, %v260, 0
      %v3002 = vsel %vm410, %v2992, 0
      %3004 = vmatprep.subr.mxu0 0.0
      %3005 = vmatpush1.msra.mxu0 %v2991
      %3006 = vmatprep.subr.mxu0 0.0
      %3007 = vmatpush1.msra.mxu0 %v3002
      %3008 = vmatprep.subr.mxu0 0.0
      %3009 = vmatpush1.msra.mxu0 0.0
      %3010 = vmatprep.subr.mxu0 0.0
      %3011 = vmatpush1.msra.mxu0 0.0
      %3012 = vmatprep.subr.mxu0 0.0
      %3013 = vmatpush1.msra.mxu0 0.0
      %3014 = vmatprep.subr.mxu0 0.0
      %3015 = vmatpush1.msra.mxu0 0.0
      %3016 = vmatprep.subr.mxu0 0.0
      %3017 = vmatpush1.msra.mxu0 0.0
      %3018 = vmatprep.subr.mxu0 0.0
      %3019 = vmatpush1.msra.mxu0 0.0
      %3020 = vmatprep.subr.mxu0 0.0
      %3021 = vmatpush1.msra.mxu0 0.0
      %3022 = vmatprep.subr.mxu0 0.0
      %3023 = vmatpush1.msra.mxu0 0.0
      %3024 = vmatprep.subr.mxu0 0.0
      %3025 = vmatpush1.msra.mxu0 0.0
      %3026 = vmatprep.subr.mxu0 0.0
      %3027 = vmatpush1.msra.mxu0 0.0
      %3028 = vmatprep.subr.mxu0 0.0
      %3029 = vmatpush1.msra.mxu0 0.0
      %3030 = vmatprep.subr.mxu0 0.0
      %3031 = vmatpush1.msra.mxu0 0.0
      %3032 = vmatprep.subr.mxu0 0.0
      %3033 = vmatpush1.msra.mxu0 0.0
      %3034 = vmatprep.subr.mxu0 0.0
      %3035 = vmatpush1.msra.mxu0 0.0
      %3036 = vmatprep.subr.mxu0 0.0
      %3037 = vmatpush1.msra.mxu0 0.0
      %3038 = vmatprep.subr.mxu0 0.0
      %3039 = vmatpush1.msra.mxu0 0.0
      %3040 = vmatprep.subr.mxu0 0.0
      %3041 = vmatpush1.msra.mxu0 0.0
      %3042 = vmatprep.subr.mxu0 0.0
      %3043 = vmatpush1.msra.mxu0 0.0
      %3044 = vmatprep.subr.mxu0 0.0
      %3045 = vmatpush1.msra.mxu0 0.0
      %3046 = vmatprep.subr.mxu0 0.0
      %3047 = vmatpush1.msra.mxu0 0.0
      %3048 = vmatprep.subr.mxu0 0.0
      %3049 = vmatpush1.msra.mxu0 0.0
      %3050 = vmatprep.subr.mxu0 0.0
      %3051 = vmatpush1.msra.mxu0 0.0
      %3052 = vmatprep.subr.mxu0 0.0
      %3053 = vmatpush1.msra.mxu0 0.0
      %3054 = vmatprep.subr.mxu0 0.0
      %3055 = vmatpush1.msra.mxu0 0.0
      %3056 = vmatprep.subr.mxu0 0.0
      %3057 = vmatpush1.msra.mxu0 0.0
      %3058 = vmatprep.subr.mxu0 0.0
      %3059 = vmatpush1.msra.mxu0 0.0
      %3060 = vmatprep.subr.mxu0 0.0
      %3061 = vmatpush1.msra.mxu0 0.0
      %3062 = vmatprep.subr.mxu0 0.0
      %3063 = vmatpush1.msra.mxu0 0.0
      %3064 = vmatprep.subr.mxu0 0.0
      %3065 = vmatpush1.msra.mxu0 0.0
      %3066 = vmatprep.subr.mxu0 0.0
      %3067 = vmatpush1.msra.mxu0 0.0
      %3068 = vmatprep.mubr.f32.mxu0 0.0
      %3069 = vmatmul.mubr.f32.gmra.mrb[0].mxu0 %v285
      %v3070 = vpop.f32.mrb[0].mxu0
      %v3071 = vadd.f32 0.0, %v3070
      %v3072 = vpop.f32.mrb[0].mxu0
      %3073 = vmatprep.mubr.f32.mxu0 0.0
      %3074 = vmatmul.mubr.f32.gmra.mrb[0].mxu0 %v288
      %v3075 = vpop.f32.mrb[0].mxu0
      %v3076 = vadd.f32 0.0, %v3075
      %v3077 = vpop.f32.mrb[0].mxu0
      %3078 = vmatprep.mubr.f32.mxu0 0.0
      %3079 = vmatmul.mubr.f32.gmra.mrb[0].mxu0 %v291
      %v3080 = vpop.f32.mrb[0].mxu0
      %v3081 = vadd.f32 0.0, %v3080
      %v3082 = vpop.f32.mrb[0].mxu0
      %3083 = vmatprep.mubr.f32.mxu0 0.0
      %3084 = vmatmul.mubr.f32.gmra.mrb[0].mxu0 %v294
      %v3085 = vpop.f32.mrb[0].mxu0
      %v3086 = vadd.f32 0.0, %v3085
      %v3087 = vpop.f32.mrb[0].mxu0
      %3088 = vmatprep.mubr.f32.mxu0 0.0
      %3089 = vmatmul.mubr.f32.gmra.mrb[0].mxu0 %v297
      %v3090 = vpop.f32.mrb[0].mxu0
      %v3091 = vadd.f32 0.0, %v3090
      %v3092 = vpop.f32.mrb[0].mxu0
      %3093 = vmatprep.mubr.f32.mxu0 0.0
      %3094 = vmatmul.mubr.f32.gmra.mrb[0].mxu0 %v300
      %v3095 = vpop.f32.mrb[0].mxu0
      %v3096 = vadd.f32 0.0, %v3095
      %v3097 = vpop.f32.mrb[0].mxu0
      %3098 = vmatprep.mubr.f32.mxu0 0.0
      %3099 = vmatmul.mubr.f32.gmra.mrb[0].mxu0 %v303
      %v3100 = vpop.f32.mrb[0].mxu0
      %v3101 = vadd.f32 0.0, %v3100
      %v3102 = vpop.f32.mrb[0].mxu0
      %3103 = vmatprep.mubr.f32.mxu0 0.0
      %3104 = vmatmul.mubr.f32.gmra.mrb[0].mxu0 %v306
      %v3105 = vpop.f32.mrb[0].mxu0
      %v3106 = vadd.f32 0.0, %v3105
      %v3107 = vpop.f32.mrb[0].mxu0
      %3108 = vmatprep.mubr.f32.mxu0 0.0
      %3109 = vmatmul.mubr.f32.gmra.mrb[0].mxu0 %v309
      %v3110 = vpop.f32.mrb[0].mxu0
      %v3111 = vadd.f32 0.0, %v3110
      %v3112 = vpop.f32.mrb[0].mxu0
      %3113 = vmatprep.mubr.f32.mxu0 0.0
      %3114 = vmatmul.mubr.f32.gmra.mrb[0].mxu0 %v312
      %v3115 = vpop.f32.mrb[0].mxu0
      %v3116 = vadd.f32 0.0, %v3115
      %v3117 = vpop.f32.mrb[0].mxu0
      %3118 = vmatprep.mubr.f32.mxu0 0.0
      %3119 = vmatmul.mubr.f32.gmra.mrb[0].mxu0 %v315
      %v3120 = vpop.f32.mrb[0].mxu0
      %v3121 = vadd.f32 0.0, %v3120
      %v3122 = vpop.f32.mrb[0].mxu0
      %3123 = vmatprep.mubr.f32.mxu0 0.0
      %3124 = vmatmul.mubr.f32.gmra.mrb[0].mxu0 %v318
      %v3125 = vpop.f32.mrb[0].mxu0
      %v3126 = vadd.f32 0.0, %v3125
      %v3127 = vpop.f32.mrb[0].mxu0
      %3128 = vmatprep.mubr.f32.mxu0 0.0
      %3129 = vmatmul.mubr.f32.gmra.mrb[0].mxu0 %v321
      %v3130 = vpop.f32.mrb[0].mxu0
      %v3131 = vadd.f32 0.0, %v3130
      %v3132 = vpop.f32.mrb[0].mxu0
      %3133 = vmatprep.mubr.f32.mxu0 0.0
      %3134 = vmatmul.mubr.f32.gmra.mrb[0].mxu0 %v324
      %v3135 = vpop.f32.mrb[0].mxu0
      %v3136 = vadd.f32 0.0, %v3135
      %v3137 = vpop.f32.mrb[0].mxu0
      %3138 = vmatprep.mubr.f32.mxu0 0.0
      %3139 = vmatmul.mubr.f32.gmra.mrb[0].mxu0 %v327
      %v3140 = vpop.f32.mrb[0].mxu0
      %v3141 = vadd.f32 0.0, %v3140
      %v3142 = vpop.f32.mrb[0].mxu0
      %3143 = vmatprep.mubr.f32.mxu0 0.0
      %3144 = vmatmul.mubr.f32.gmra.mrb[0].mxu0 %v330
      %v3145 = vpop.f32.mrb[0].mxu0
      %v3146 = vadd.f32 0.0, %v3145
      %v3147 = vpop.f32.mrb[0].mxu0
      %3148 = vmatprep.mubr.f32.mxu0 0.0
      %3149 = vmatmul.mubr.f32.gmra.mrb[0].mxu0 %v333
      %v3150 = vpop.f32.mrb[0].mxu0
      %v3151 = vadd.f32 0.0, %v3150
      %v3152 = vpop.f32.mrb[0].mxu0
      %3153 = vmatprep.mubr.f32.mxu0 0.0
      %3154 = vmatmul.mubr.f32.gmra.mrb[0].mxu0 %v336
      %v3155 = vpop.f32.mrb[0].mxu0
      %v3156 = vadd.f32 0.0, %v3155
      %v3157 = vpop.f32.mrb[0].mxu0
      %3158 = vmatprep.mubr.f32.mxu0 0.0
      %3159 = vmatmul.mubr.f32.gmra.mrb[0].mxu0 %v339
      %v3160 = vpop.f32.mrb[0].mxu0
      %v3161 = vadd.f32 0.0, %v3160
      %v3162 = vpop.f32.mrb[0].mxu0
      %3163 = vmatprep.mubr.f32.mxu0 0.0
      %3164 = vmatmul.mubr.f32.gmra.mrb[0].mxu0 %v342
      %v3165 = vpop.f32.mrb[0].mxu0
      %v3166 = vadd.f32 0.0, %v3165
      %v3167 = vpop.f32.mrb[0].mxu0
      %3168 = vmatprep.mubr.f32.mxu0 0.0
      %3169 = vmatmul.mubr.f32.gmra.mrb[0].mxu0 %v345
      %v3170 = vpop.f32.mrb[0].mxu0
      %v3171 = vadd.f32 0.0, %v3170
      %v3172 = vpop.f32.mrb[0].mxu0
      %3173 = vmatprep.mubr.f32.mxu0 0.0
      %3174 = vmatmul.mubr.f32.gmra.mrb[0].mxu0 %v348
      %v3175 = vpop.f32.mrb[0].mxu0
      %v3176 = vadd.f32 0.0, %v3175
      %v3177 = vpop.f32.mrb[0].mxu0
      %3178 = vmatprep.mubr.f32.mxu0 0.0
      %3179 = vmatmul.mubr.f32.gmra.mrb[0].mxu0 %v351
      %v3180 = vpop.f32.mrb[0].mxu0
      %v3181 = vadd.f32 0.0, %v3180
      %v3182 = vpop.f32.mrb[0].mxu0
      %3183 = vmatprep.mubr.f32.mxu0 0.0
      %3184 = vmatmul.mubr.f32.gmra.mrb[0].mxu0 %v354
      %v3185 = vpop.f32.mrb[0].mxu0
      %v3186 = vadd.f32 0.0, %v3185
      %v3187 = vpop.f32.mrb[0].mxu0
      %3188 = vmatprep.mubr.f32.mxu0 0.0
      %3189 = vmatmul.mubr.f32.gmra.mrb[0].mxu0 %v357
      %v3190 = vpop.f32.mrb[0].mxu0
      %v3191 = vadd.f32 0.0, %v3190
      %v3192 = vpop.f32.mrb[0].mxu0
      %3193 = vmatprep.mubr.f32.mxu0 0.0
      %3194 = vmatmul.mubr.f32.gmra.mrb[0].mxu0 %v360
      %v3195 = vpop.f32.mrb[0].mxu0
      %v3196 = vadd.f32 0.0, %v3195
      %v3197 = vpop.f32.mrb[0].mxu0
      %3198 = vmatprep.mubr.f32.mxu0 0.0
      %3199 = vmatmul.mubr.f32.gmra.mrb[0].mxu0 %v363
      %v3200 = vpop.f32.mrb[0].mxu0
      %v3201 = vadd.f32 0.0, %v3200
      %v3202 = vpop.f32.mrb[0].mxu0
      %3203 = vmatprep.mubr.f32.mxu0 0.0
      %3204 = vmatmul.mubr.f32.gmra.mrb[0].mxu0 %v366
      %v3205 = vpop.f32.mrb[0].mxu0
      %v3206 = vadd.f32 0.0, %v3205
      %v3207 = vpop.f32.mrb[0].mxu0
      %3208 = vmatprep.mubr.f32.mxu0 0.0
      %3209 = vmatmul.mubr.f32.gmra.mrb[0].mxu0 %v369
      %v3210 = vpop.f32.mrb[0].mxu0
      %v3211 = vadd.f32 0.0, %v3210
      %v3212 = vpop.f32.mrb[0].mxu0
      %3213 = vmatprep.mubr.f32.mxu0 0.0
      %3214 = vmatmul.mubr.f32.gmra.mrb[0].mxu0 %v372
      %v3215 = vpop.f32.mrb[0].mxu0
      %v3216 = vadd.f32 0.0, %v3215
      %v3217 = vpop.f32.mrb[0].mxu0
      %3218 = vmatprep.mubr.f32.mxu0 0.0
      %3219 = vmatmul.mubr.f32.gmra.mrb[0].mxu0 %v375
      %v3220 = vpop.f32.mrb[0].mxu0
      %v3221 = vadd.f32 0.0, %v3220
      %v3222 = vpop.f32.mrb[0].mxu0
      %3223 = vmatprep.mubr.f32.mxu0 0.0
      %3224 = vmatmul.mubr.f32.gmra.mrb[0].mxu0 %v378
      %v3225 = vpop.f32.mrb[0].mxu0
      %v3226 = vadd.f32 0.0, %v3225
      %v3227 = vpop.f32.mrb[0].mxu0
      %3228 = vmatprep.mubr.f32.mxu0 0.0
      %3229 = vmatmul.mubr.f32.gmra.mrb[0].mxu0 %v381
      %v3230 = vpop.f32.mrb[0].mxu0
      %v3231 = vadd.f32 0.0, %v3230
      %v3232 = vpop.f32.mrb[0].mxu0
      %3233 = vmatprep.mubr.f32.mxu0 0.0
      %3234 = vmatmul.mubr.f32.gmra.mrb[0].mxu0 %v384
      %v3235 = vpop.f32.mrb[0].mxu0
      %v3236 = vadd.f32 0.0, %v3235
      %v3237 = vpop.f32.mrb[0].mxu0
      %3238 = vmatprep.mubr.f32.mxu0 0.0
      %3239 = vmatmul.mubr.f32.gmra.mrb[0].mxu0 %v387
      %v3240 = vpop.f32.mrb[0].mxu0
      %v3241 = vadd.f32 0.0, %v3240
      %v3242 = vpop.f32.mrb[0].mxu0
      %3243 = vmatprep.mubr.f32.mxu0 0.0
      %3244 = vmatmul.mubr.f32.gmra.mrb[0].mxu0 %v390
      %v3245 = vpop.f32.mrb[0].mxu0
      %v3246 = vadd.f32 0.0, %v3245
      %v3247 = vpop.f32.mrb[0].mxu0
      %3248 = vmatprep.mubr.f32.mxu0 0.0
      %3249 = vmatmul.mubr.f32.gmra.mrb[0].mxu0 %v393
      %v3250 = vpop.f32.mrb[0].mxu0
      %v3251 = vadd.f32 0.0, %v3250
      %v3252 = vpop.f32.mrb[0].mxu0
      %3253 = vmatprep.mubr.f32.mxu0 0.0
      %3254 = vmatmul.mubr.f32.gmra.mrb[0].mxu0 %v396
      %v3255 = vpop.f32.mrb[0].mxu0
      %v3256 = vadd.f32 0.0, %v3255
      %v3257 = vpop.f32.mrb[0].mxu0
      %3258 = vmatprep.mubr.f32.mxu0 0.0
      %3259 = vmatmul.mubr.f32.gmra.mrb[0].mxu0 %v399
      %v3260 = vpop.f32.mrb[0].mxu0
      %v3261 = vadd.f32 0.0, %v3260
      %v3262 = vpop.f32.mrb[0].mxu0
      %3263 = vmatprep.mubr.f32.mxu0 0.0
      %3264 = vmatmul.mubr.f32.gmra.mrb[0].mxu0 %v402
      %v3265 = vpop.f32.mrb[0].mxu0
      %v3266 = vadd.f32 0.0, %v3265
      %v3267 = vpop.f32.mrb[0].mxu0
      %3268 = vmatprep.mubr.f32.mxu0 0.0
      %3269 = vmatmul.mubr.f32.gmra.mrb[0].mxu0 %v405
      %v3270 = vpop.f32.mrb[0].mxu0
      %v3271 = vadd.f32 0.0, %v3270
      %v3272 = vpop.f32.mrb[0].mxu0
      %3273 = vmatprep.mubr.f32.mxu0 0.0
      %3274 = vmatmul.mubr.f32.gmra.mrb[0].mxu0 %v408
      %v3275 = vpop.f32.mrb[0].mxu0
      %v3276 = vadd.f32 0.0, %v3275
      %v3277 = vpop.f32.mrb[0].mxu0
      %3278 = vmatprep.mubr.f32.mxu0 0.0
      %3279 = vmatmul.mubr.f32.gmra.mrb[0].mxu0 %v1883
      %v3280 = vpop.f32.mrb[0].mxu0
      %v3281 = vadd.f32 0.0, %v3280
      %v3282 = vpop.f32.mrb[0].mxu0
      %3283 = vmatprep.mubr.f32.mxu0 0.0
      %3284 = vmatmul.mubr.f32.gmra.mrb[0].mxu0 %v1886
      %v3285 = vpop.f32.mrb[0].mxu0
      %v3286 = vadd.f32 0.0, %v3285
      %v3287 = vpop.f32.mrb[0].mxu0
      %3288 = vmatprep.mubr.f32.mxu0 0.0
      %3289 = vmatmul.mubr.f32.gmra.mrb[0].mxu0 %v1889
      %v3290 = vpop.f32.mrb[0].mxu0
      %v3291 = vadd.f32 0.0, %v3290
      %v3292 = vpop.f32.mrb[0].mxu0
      %3293 = vmatprep.mubr.f32.mxu0 0.0
      %3294 = vmatmul.mubr.f32.gmra.mrb[0].mxu0 %v2993
      %v3295 = vpop.f32.mrb[0].mxu0
      %v3296 = vadd.f32 0.0, %v3295
      %v3297 = vpop.f32.mrb[0].mxu0
      %3298 = vmatprep.mubr.f32.mxu0 0.0
      %3299 = vmatmul.mubr.f32.gmra.mrb[0].mxu0 %v2996
      %v3300 = vpop.f32.mrb[0].mxu0
      %v3301 = vadd.f32 0.0, %v3300
      %v3302 = vpop.f32.mrb[0].mxu0
      %3303 = vmatprep.mubr.f32.mxu0 0.0
      %3304 = vmatmul.mubr.f32.gmra.mrb[0].mxu0 %v2999
      %v3305 = vpop.f32.mrb[0].mxu0
      %v3306 = vadd.f32 0.0, %v3305
      %v3307 = vpop.f32.mrb[0].mxu0
      %3308 = vdwg.mxu0
      %v3309 = vadd.f32 %v2942, %v3071
      %v3310 = vadd.f32 %v2943, %v3076
      %v3311 = vadd.f32 %v2944, %v3081
      %v3312 = vadd.f32 %v2945, %v3086
      %v3313 = vadd.f32 %v2946, %v3091
      %v3314 = vadd.f32 %v2947, %v3096
      %v3315 = vadd.f32 %v2948, %v3101
      %v3316 = vadd.f32 %v2949, %v3106
      %v3317 = vadd.f32 %v2950, %v3111
      %v3318 = vadd.f32 %v2951, %v3116
      %v3319 = vadd.f32 %v2952, %v3121
      %v3320 = vadd.f32 %v2953, %v3126
      %v3321 = vadd.f32 %v2954, %v3131
      %v3322 = vadd.f32 %v2955, %v3136
      %v3323 = vadd.f32 %v2956, %v3141
      %v3324 = vadd.f32 %v2957, %v3146
      %v3325 = vadd.f32 %v2958, %v3151
      %v3326 = vadd.f32 %v2959, %v3156
      %v3327 = vadd.f32 %v2960, %v3161
      %v3328 = vadd.f32 %v2961, %v3166
      %v3329 = vadd.f32 %v2962, %v3171
      %v3330 = vadd.f32 %v2963, %v3176
      %v3331 = vadd.f32 %v2964, %v3181
      %v3332 = vadd.f32 %v2965, %v3186
      %v3333 = vadd.f32 %v2966, %v3191
      %v3334 = vadd.f32 %v2967, %v3196
      %v3335 = vadd.f32 %v2968, %v3201
      %v3336 = vadd.f32 %v2969, %v3206
      %v3337 = vadd.f32 %v2970, %v3211
      %v3338 = vadd.f32 %v2971, %v3216
      %v3339 = vadd.f32 %v2972, %v3221
      %v3340 = vadd.f32 %v2973, %v3226
      %v3341 = vadd.f32 %v2974, %v3231
      %v3342 = vadd.f32 %v2975, %v3236
      %v3343 = vadd.f32 %v2976, %v3241
      %v3344 = vadd.f32 %v2977, %v3246
      %v3345 = vadd.f32 %v2978, %v3251
      %v3346 = vadd.f32 %v2979, %v3256
      %v3347 = vadd.f32 %v2980, %v3261
      %v3348 = vadd.f32 %v2981, %v3266
      %v3349 = vadd.f32 %v2982, %v3271
      %v3350 = vadd.f32 %v2983, %v3276
      %v3351 = vadd.f32 %v2984, %v3281
      %v3352 = vadd.f32 %v2985, %v3286
      %v3353 = vadd.f32 %v2986, %v3291
      %v3354 = vadd.f32 %v2987, %v3296
      %v3355 = vadd.f32 %v2988, %v3301
      %v3356 = vadd.f32 %v2989, %v3306
      %s3357 = scalar_lea.vmem %s1, 112
      %v3358 = vld [vmem:[%s3357] sm:$0xff]
      %v3359 = vld [vmem:[%s3357 + $0x8] sm:$0x3]
      %v3361 = vrot.slane %v259, 1
      %v3362 = vsel %vm777, %v2255, %v3361
      %v3363 = vrot.slane %v260, 1
      %v3364 = vsel %vm777, %v3361, %v3363
      %v3365 = vrot.slane %v261, 1
      %v3366 = vsel %vm777, %v3363, %v3365
      %v3367 = vsel %vm265, %v3362, 0
      %v3369 = vsel %vm265, %v3364, 0
      %v3371 = vsel %vm265, %v3366, 0
      %v3374 = vsel %vm410, %v3359, 0
      %3376 = vmatprep.subr.mxu0 0.0
      %3377 = vmatpush1.msra.mxu0 %v3358
      %3378 = vmatprep.subr.mxu0 0.0
      %3379 = vmatpush1.msra.mxu0 %v3374
      %3380 = vmatprep.subr.mxu0 0.0
      %3381 = vmatpush1.msra.mxu0 0.0
      %3382 = vmatprep.subr.mxu0 0.0
      %3383 = vmatpush1.msra.mxu0 0.0
      %3384 = vmatprep.subr.mxu0 0.0
      %3385 = vmatpush1.msra.mxu0 0.0
      %3386 = vmatprep.subr.mxu0 0.0
      %3387 = vmatpush1.msra.mxu0 0.0
      %3388 = vmatprep.subr.mxu0 0.0
      %3389 = vmatpush1.msra.mxu0 0.0
      %3390 = vmatprep.subr.mxu0 0.0
      %3391 = vmatpush1.msra.mxu0 0.0
      %3392 = vmatprep.subr.mxu0 0.0
      %3393 = vmatpush1.msra.mxu0 0.0
      %3394 = vmatprep.subr.mxu0 0.0
      %3395 = vmatpush1.msra.mxu0 0.0
      %3396 = vmatprep.subr.mxu0 0.0
      %3397 = vmatpush1.msra.mxu0 0.0
      %3398 = vmatprep.subr.mxu0 0.0
      %3399 = vmatpush1.msra.mxu0 0.0
      %3400 = vmatprep.subr.mxu0 0.0
      %3401 = vmatpush1.msra.mxu0 0.0
      %3402 = vmatprep.subr.mxu0 0.0
      %3403 = vmatpush1.msra.mxu0 0.0
      %3404 = vmatprep.subr.mxu0 0.0
      %3405 = vmatpush1.msra.mxu0 0.0
      %3406 = vmatprep.subr.mxu0 0.0
      %3407 = vmatpush1.msra.mxu0 0.0
      %3408 = vmatprep.subr.mxu0 0.0
      %3409 = vmatpush1.msra.mxu0 0.0
      %3410 = vmatprep.subr.mxu0 0.0
      %3411 = vmatpush1.msra.mxu0 0.0
      %3412 = vmatprep.subr.mxu0 0.0
      %3413 = vmatpush1.msra.mxu0 0.0
      %3414 = vmatprep.subr.mxu0 0.0
      %3415 = vmatpush1.msra.mxu0 0.0
      %3416 = vmatprep.subr.mxu0 0.0
      %3417 = vmatpush1.msra.mxu0 0.0
      %3418 = vmatprep.subr.mxu0 0.0
      %3419 = vmatpush1.msra.mxu0 0.0
      %3420 = vmatprep.subr.mxu0 0.0
      %3421 = vmatpush1.msra.mxu0 0.0
      %3422 = vmatprep.subr.mxu0 0.0
      %3423 = vmatpush1.msra.mxu0 0.0
      %3424 = vmatprep.subr.mxu0 0.0
      %3425 = vmatpush1.msra.mxu0 0.0
      %3426 = vmatprep.subr.mxu0 0.0
      %3427 = vmatpush1.msra.mxu0 0.0
      %3428 = vmatprep.subr.mxu0 0.0
      %3429 = vmatpush1.msra.mxu0 0.0
      %3430 = vmatprep.subr.mxu0 0.0
      %3431 = vmatpush1.msra.mxu0 0.0
      %3432 = vmatprep.subr.mxu0 0.0
      %3433 = vmatpush1.msra.mxu0 0.0
      %3434 = vmatprep.subr.mxu0 0.0
      %3435 = vmatpush1.msra.mxu0 0.0
      %3436 = vmatprep.subr.mxu0 0.0
      %3437 = vmatpush1.msra.mxu0 0.0
      %3438 = vmatprep.subr.mxu0 0.0
      %3439 = vmatpush1.msra.mxu0 0.0
      %3440 = vmatprep.mubr.f32.mxu0 0.0
      %3441 = vmatmul.mubr.f32.gmra.mrb[0].mxu0 %v887
      %v3442 = vpop.f32.mrb[0].mxu0
      %v3443 = vadd.f32 0.0, %v3442
      %v3444 = vpop.f32.mrb[0].mxu0
      %3445 = vmatprep.mubr.f32.mxu0 0.0
      %3446 = vmatmul.mubr.f32.gmra.mrb[0].mxu0 %v889
      %v3447 = vpop.f32.mrb[0].mxu0
      %v3448 = vadd.f32 0.0, %v3447
      %v3449 = vpop.f32.mrb[0].mxu0
      %3450 = vmatprep.mubr.f32.mxu0 0.0
      %3451 = vmatmul.mubr.f32.gmra.mrb[0].mxu0 %v891
      %v3452 = vpop.f32.mrb[0].mxu0
      %v3453 = vadd.f32 0.0, %v3452
      %v3454 = vpop.f32.mrb[0].mxu0
      %3455 = vmatprep.mubr.f32.mxu0 0.0
      %3456 = vmatmul.mubr.f32.gmra.mrb[0].mxu0 %v893
      %v3457 = vpop.f32.mrb[0].mxu0
      %v3458 = vadd.f32 0.0, %v3457
      %v3459 = vpop.f32.mrb[0].mxu0
      %3460 = vmatprep.mubr.f32.mxu0 0.0
      %3461 = vmatmul.mubr.f32.gmra.mrb[0].mxu0 %v895
      %v3462 = vpop.f32.mrb[0].mxu0
      %v3463 = vadd.f32 0.0, %v3462
      %v3464 = vpop.f32.mrb[0].mxu0
      %3465 = vmatprep.mubr.f32.mxu0 0.0
      %3466 = vmatmul.mubr.f32.gmra.mrb[0].mxu0 %v897
      %v3467 = vpop.f32.mrb[0].mxu0
      %v3468 = vadd.f32 0.0, %v3467
      %v3469 = vpop.f32.mrb[0].mxu0
      %3470 = vmatprep.mubr.f32.mxu0 0.0
      %3471 = vmatmul.mubr.f32.gmra.mrb[0].mxu0 %v899
      %v3472 = vpop.f32.mrb[0].mxu0
      %v3473 = vadd.f32 0.0, %v3472
      %v3474 = vpop.f32.mrb[0].mxu0
      %3475 = vmatprep.mubr.f32.mxu0 0.0
      %3476 = vmatmul.mubr.f32.gmra.mrb[0].mxu0 %v901
      %v3477 = vpop.f32.mrb[0].mxu0
      %v3478 = vadd.f32 0.0, %v3477
      %v3479 = vpop.f32.mrb[0].mxu0
      %3480 = vmatprep.mubr.f32.mxu0 0.0
      %3481 = vmatmul.mubr.f32.gmra.mrb[0].mxu0 %v903
      %v3482 = vpop.f32.mrb[0].mxu0
      %v3483 = vadd.f32 0.0, %v3482
      %v3484 = vpop.f32.mrb[0].mxu0
      %3485 = vmatprep.mubr.f32.mxu0 0.0
      %3486 = vmatmul.mubr.f32.gmra.mrb[0].mxu0 %v905
      %v3487 = vpop.f32.mrb[0].mxu0
      %v3488 = vadd.f32 0.0, %v3487
      %v3489 = vpop.f32.mrb[0].mxu0
      %3490 = vmatprep.mubr.f32.mxu0 0.0
      %3491 = vmatmul.mubr.f32.gmra.mrb[0].mxu0 %v907
      %v3492 = vpop.f32.mrb[0].mxu0
      %v3493 = vadd.f32 0.0, %v3492
      %v3494 = vpop.f32.mrb[0].mxu0
      %3495 = vmatprep.mubr.f32.mxu0 0.0
      %3496 = vmatmul.mubr.f32.gmra.mrb[0].mxu0 %v909
      %v3497 = vpop.f32.mrb[0].mxu0
      %v3498 = vadd.f32 0.0, %v3497
      %v3499 = vpop.f32.mrb[0].mxu0
      %3500 = vmatprep.mubr.f32.mxu0 0.0
      %3501 = vmatmul.mubr.f32.gmra.mrb[0].mxu0 %v911
      %v3502 = vpop.f32.mrb[0].mxu0
      %v3503 = vadd.f32 0.0, %v3502
      %v3504 = vpop.f32.mrb[0].mxu0
      %3505 = vmatprep.mubr.f32.mxu0 0.0
      %3506 = vmatmul.mubr.f32.gmra.mrb[0].mxu0 %v913
      %v3507 = vpop.f32.mrb[0].mxu0
      %v3508 = vadd.f32 0.0, %v3507
      %v3509 = vpop.f32.mrb[0].mxu0
      %3510 = vmatprep.mubr.f32.mxu0 0.0
      %3511 = vmatmul.mubr.f32.gmra.mrb[0].mxu0 %v915
      %v3512 = vpop.f32.mrb[0].mxu0
      %v3513 = vadd.f32 0.0, %v3512
      %v3514 = vpop.f32.mrb[0].mxu0
      %3515 = vmatprep.mubr.f32.mxu0 0.0
      %3516 = vmatmul.mubr.f32.gmra.mrb[0].mxu0 %v917
      %v3517 = vpop.f32.mrb[0].mxu0
      %v3518 = vadd.f32 0.0, %v3517
      %v3519 = vpop.f32.mrb[0].mxu0
      %3520 = vmatprep.mubr.f32.mxu0 0.0
      %3521 = vmatmul.mubr.f32.gmra.mrb[0].mxu0 %v919
      %v3522 = vpop.f32.mrb[0].mxu0
      %v3523 = vadd.f32 0.0, %v3522
      %v3524 = vpop.f32.mrb[0].mxu0
      %3525 = vmatprep.mubr.f32.mxu0 0.0
      %3526 = vmatmul.mubr.f32.gmra.mrb[0].mxu0 %v921
      %v3527 = vpop.f32.mrb[0].mxu0
      %v3528 = vadd.f32 0.0, %v3527
      %v3529 = vpop.f32.mrb[0].mxu0
      %3530 = vmatprep.mubr.f32.mxu0 0.0
      %3531 = vmatmul.mubr.f32.gmra.mrb[0].mxu0 %v923
      %v3532 = vpop.f32.mrb[0].mxu0
      %v3533 = vadd.f32 0.0, %v3532
      %v3534 = vpop.f32.mrb[0].mxu0
      %3535 = vmatprep.mubr.f32.mxu0 0.0
      %3536 = vmatmul.mubr.f32.gmra.mrb[0].mxu0 %v925
      %v3537 = vpop.f32.mrb[0].mxu0
      %v3538 = vadd.f32 0.0, %v3537
      %v3539 = vpop.f32.mrb[0].mxu0
      %3540 = vmatprep.mubr.f32.mxu0 0.0
      %3541 = vmatmul.mubr.f32.gmra.mrb[0].mxu0 %v927
      %v3542 = vpop.f32.mrb[0].mxu0
      %v3543 = vadd.f32 0.0, %v3542
      %v3544 = vpop.f32.mrb[0].mxu0
      %3545 = vmatprep.mubr.f32.mxu0 0.0
      %3546 = vmatmul.mubr.f32.gmra.mrb[0].mxu0 %v929
      %v3547 = vpop.f32.mrb[0].mxu0
      %v3548 = vadd.f32 0.0, %v3547
      %v3549 = vpop.f32.mrb[0].mxu0
      %3550 = vmatprep.mubr.f32.mxu0 0.0
      %3551 = vmatmul.mubr.f32.gmra.mrb[0].mxu0 %v931
      %v3552 = vpop.f32.mrb[0].mxu0
      %v3553 = vadd.f32 0.0, %v3552
      %v3554 = vpop.f32.mrb[0].mxu0
      %3555 = vmatprep.mubr.f32.mxu0 0.0
      %3556 = vmatmul.mubr.f32.gmra.mrb[0].mxu0 %v933
      %v3557 = vpop.f32.mrb[0].mxu0
      %v3558 = vadd.f32 0.0, %v3557
      %v3559 = vpop.f32.mrb[0].mxu0
      %3560 = vmatprep.mubr.f32.mxu0 0.0
      %3561 = vmatmul.mubr.f32.gmra.mrb[0].mxu0 %v935
      %v3562 = vpop.f32.mrb[0].mxu0
      %v3563 = vadd.f32 0.0, %v3562
      %v3564 = vpop.f32.mrb[0].mxu0
      %3565 = vmatprep.mubr.f32.mxu0 0.0
      %3566 = vmatmul.mubr.f32.gmra.mrb[0].mxu0 %v937
      %v3567 = vpop.f32.mrb[0].mxu0
      %v3568 = vadd.f32 0.0, %v3567
      %v3569 = vpop.f32.mrb[0].mxu0
      %3570 = vmatprep.mubr.f32.mxu0 0.0
      %3571 = vmatmul.mubr.f32.gmra.mrb[0].mxu0 %v939
      %v3572 = vpop.f32.mrb[0].mxu0
      %v3573 = vadd.f32 0.0, %v3572
      %v3574 = vpop.f32.mrb[0].mxu0
      %3575 = vmatprep.mubr.f32.mxu0 0.0
      %3576 = vmatmul.mubr.f32.gmra.mrb[0].mxu0 %v941
      %v3577 = vpop.f32.mrb[0].mxu0
      %v3578 = vadd.f32 0.0, %v3577
      %v3579 = vpop.f32.mrb[0].mxu0
      %3580 = vmatprep.mubr.f32.mxu0 0.0
      %3581 = vmatmul.mubr.f32.gmra.mrb[0].mxu0 %v943
      %v3582 = vpop.f32.mrb[0].mxu0
      %v3583 = vadd.f32 0.0, %v3582
      %v3584 = vpop.f32.mrb[0].mxu0
      %3585 = vmatprep.mubr.f32.mxu0 0.0
      %3586 = vmatmul.mubr.f32.gmra.mrb[0].mxu0 %v945
      %v3587 = vpop.f32.mrb[0].mxu0
      %v3588 = vadd.f32 0.0, %v3587
      %v3589 = vpop.f32.mrb[0].mxu0
      %3590 = vmatprep.mubr.f32.mxu0 0.0
      %3591 = vmatmul.mubr.f32.gmra.mrb[0].mxu0 %v947
      %v3592 = vpop.f32.mrb[0].mxu0
      %v3593 = vadd.f32 0.0, %v3592
      %v3594 = vpop.f32.mrb[0].mxu0
      %3595 = vmatprep.mubr.f32.mxu0 0.0
      %3596 = vmatmul.mubr.f32.gmra.mrb[0].mxu0 %v949
      %v3597 = vpop.f32.mrb[0].mxu0
      %v3598 = vadd.f32 0.0, %v3597
      %v3599 = vpop.f32.mrb[0].mxu0
      %3600 = vmatprep.mubr.f32.mxu0 0.0
      %3601 = vmatmul.mubr.f32.gmra.mrb[0].mxu0 %v951
      %v3602 = vpop.f32.mrb[0].mxu0
      %v3603 = vadd.f32 0.0, %v3602
      %v3604 = vpop.f32.mrb[0].mxu0
      %3605 = vmatprep.mubr.f32.mxu0 0.0
      %3606 = vmatmul.mubr.f32.gmra.mrb[0].mxu0 %v953
      %v3607 = vpop.f32.mrb[0].mxu0
      %v3608 = vadd.f32 0.0, %v3607
      %v3609 = vpop.f32.mrb[0].mxu0
      %3610 = vmatprep.mubr.f32.mxu0 0.0
      %3611 = vmatmul.mubr.f32.gmra.mrb[0].mxu0 %v955
      %v3612 = vpop.f32.mrb[0].mxu0
      %v3613 = vadd.f32 0.0, %v3612
      %v3614 = vpop.f32.mrb[0].mxu0
      %3615 = vmatprep.mubr.f32.mxu0 0.0
      %3616 = vmatmul.mubr.f32.gmra.mrb[0].mxu0 %v957
      %v3617 = vpop.f32.mrb[0].mxu0
      %v3618 = vadd.f32 0.0, %v3617
      %v3619 = vpop.f32.mrb[0].mxu0
      %3620 = vmatprep.mubr.f32.mxu0 0.0
      %3621 = vmatmul.mubr.f32.gmra.mrb[0].mxu0 %v959
      %v3622 = vpop.f32.mrb[0].mxu0
      %v3623 = vadd.f32 0.0, %v3622
      %v3624 = vpop.f32.mrb[0].mxu0
      %3625 = vmatprep.mubr.f32.mxu0 0.0
      %3626 = vmatmul.mubr.f32.gmra.mrb[0].mxu0 %v961
      %v3627 = vpop.f32.mrb[0].mxu0
      %v3628 = vadd.f32 0.0, %v3627
      %v3629 = vpop.f32.mrb[0].mxu0
      %3630 = vmatprep.mubr.f32.mxu0 0.0
      %3631 = vmatmul.mubr.f32.gmra.mrb[0].mxu0 %v963
      %v3632 = vpop.f32.mrb[0].mxu0
      %v3633 = vadd.f32 0.0, %v3632
      %v3634 = vpop.f32.mrb[0].mxu0
      %3635 = vmatprep.mubr.f32.mxu0 0.0
      %3636 = vmatmul.mubr.f32.gmra.mrb[0].mxu0 %v965
      %v3637 = vpop.f32.mrb[0].mxu0
      %v3638 = vadd.f32 0.0, %v3637
      %v3639 = vpop.f32.mrb[0].mxu0
      %3640 = vmatprep.mubr.f32.mxu0 0.0
      %3641 = vmatmul.mubr.f32.gmra.mrb[0].mxu0 %v967
      %v3642 = vpop.f32.mrb[0].mxu0
      %v3643 = vadd.f32 0.0, %v3642
      %v3644 = vpop.f32.mrb[0].mxu0
      %3645 = vmatprep.mubr.f32.mxu0 0.0
      %3646 = vmatmul.mubr.f32.gmra.mrb[0].mxu0 %v969
      %v3647 = vpop.f32.mrb[0].mxu0
      %v3648 = vadd.f32 0.0, %v3647
      %v3649 = vpop.f32.mrb[0].mxu0
      %3650 = vmatprep.mubr.f32.mxu0 0.0
      %3651 = vmatmul.mubr.f32.gmra.mrb[0].mxu0 %v2257
      %v3652 = vpop.f32.mrb[0].mxu0
      %v3653 = vadd.f32 0.0, %v3652
      %v3654 = vpop.f32.mrb[0].mxu0
      %3655 = vmatprep.mubr.f32.mxu0 0.0
      %3656 = vmatmul.mubr.f32.gmra.mrb[0].mxu0 %v2259
      %v3657 = vpop.f32.mrb[0].mxu0
      %v3658 = vadd.f32 0.0, %v3657
      %v3659 = vpop.f32.mrb[0].mxu0
      %3660 = vmatprep.mubr.f32.mxu0 0.0
      %3661 = vmatmul.mubr.f32.gmra.mrb[0].mxu0 %v2261
      %v3662 = vpop.f32.mrb[0].mxu0
      %v3663 = vadd.f32 0.0, %v3662
      %v3664 = vpop.f32.mrb[0].mxu0
      %3665 = vmatprep.mubr.f32.mxu0 0.0
      %3666 = vmatmul.mubr.f32.gmra.mrb[0].mxu0 %v3367
      %v3667 = vpop.f32.mrb[0].mxu0
      %v3668 = vadd.f32 0.0, %v3667
      %v3669 = vpop.f32.mrb[0].mxu0
      %3670 = vmatprep.mubr.f32.mxu0 0.0
      %3671 = vmatmul.mubr.f32.gmra.mrb[0].mxu0 %v3369
      %v3672 = vpop.f32.mrb[0].mxu0
      %v3673 = vadd.f32 0.0, %v3672
      %v3674 = vpop.f32.mrb[0].mxu0
      %3675 = vmatprep.mubr.f32.mxu0 0.0
      %3676 = vmatmul.mubr.f32.gmra.mrb[0].mxu0 %v3371
      %v3677 = vpop.f32.mrb[0].mxu0
      %v3678 = vadd.f32 0.0, %v3677
      %v3679 = vpop.f32.mrb[0].mxu0
      %3680 = vdwg.mxu0
      %v3681 = vadd.f32 %v3309, %v3443
      %v3682 = vadd.f32 %v3310, %v3448
      %v3683 = vadd.f32 %v3311, %v3453
      %v3684 = vadd.f32 %v3312, %v3458
      %v3685 = vadd.f32 %v3313, %v3463
      %v3686 = vadd.f32 %v3314, %v3468
      %v3687 = vadd.f32 %v3315, %v3473
      %v3688 = vadd.f32 %v3316, %v3478
      %v3689 = vadd.f32 %v3317, %v3483
      %v3690 = vadd.f32 %v3318, %v3488
      %v3691 = vadd.f32 %v3319, %v3493
      %v3692 = vadd.f32 %v3320, %v3498
      %v3693 = vadd.f32 %v3321, %v3503
      %v3694 = vadd.f32 %v3322, %v3508
      %v3695 = vadd.f32 %v3323, %v3513
      %v3696 = vadd.f32 %v3324, %v3518
      %v3697 = vadd.f32 %v3325, %v3523
      %v3698 = vadd.f32 %v3326, %v3528
      %v3699 = vadd.f32 %v3327, %v3533
      %v3700 = vadd.f32 %v3328, %v3538
      %v3701 = vadd.f32 %v3329, %v3543
      %v3702 = vadd.f32 %v3330, %v3548
      %v3703 = vadd.f32 %v3331, %v3553
      %v3704 = vadd.f32 %v3332, %v3558
      %v3705 = vadd.f32 %v3333, %v3563
      %v3706 = vadd.f32 %v3334, %v3568
      %v3707 = vadd.f32 %v3335, %v3573
      %v3708 = vadd.f32 %v3336, %v3578
      %v3709 = vadd.f32 %v3337, %v3583
      %v3710 = vadd.f32 %v3338, %v3588
      %v3711 = vadd.f32 %v3339, %v3593
      %v3712 = vadd.f32 %v3340, %v3598
      %v3713 = vadd.f32 %v3341, %v3603
      %v3714 = vadd.f32 %v3342, %v3608
      %v3715 = vadd.f32 %v3343, %v3613
      %v3716 = vadd.f32 %v3344, %v3618
      %v3717 = vadd.f32 %v3345, %v3623
      %v3718 = vadd.f32 %v3346, %v3628
      %v3719 = vadd.f32 %v3347, %v3633
      %v3720 = vadd.f32 %v3348, %v3638
      %v3721 = vadd.f32 %v3349, %v3643
      %v3722 = vadd.f32 %v3350, %v3648
      %v3723 = vadd.f32 %v3351, %v3653
      %v3724 = vadd.f32 %v3352, %v3658
      %v3725 = vadd.f32 %v3353, %v3663
      %v3726 = vadd.f32 %v3354, %v3668
      %v3727 = vadd.f32 %v3355, %v3673
      %v3728 = vadd.f32 %v3356, %v3678
      %s3729 = scalar_lea.vmem %s1, 128
      %v3730 = vld [vmem:[%s3729] sm:$0xff]
      %v3731 = vld [vmem:[%s3729 + $0x8] sm:$0x3]
      %v3732 = vrot.slane %v259, 2
      %v3733 = vsel %vm1330, %v2626, %v3732
      %v3734 = vrot.slane %v260, 2
      %v3735 = vsel %vm1330, %v3732, %v3734
      %v3736 = vrot.slane %v261, 2
      %v3737 = vsel %vm1330, %v3734, %v3736
      %v3738 = vsel %vm265, %v3733, 0
      %v3740 = vsel %vm265, %v3735, 0
      %v3742 = vsel %vm265, %v3737, 0
      %v3745 = vsel %vm410, %v3731, 0
      %3747 = vmatprep.subr.mxu0 0.0
      %3748 = vmatpush1.msra.mxu0 %v3730
      %3749 = vmatprep.subr.mxu0 0.0
      %3750 = vmatpush1.msra.mxu0 %v3745
      %3751 = vmatprep.subr.mxu0 0.0
      %3752 = vmatpush1.msra.mxu0 0.0
      %3753 = vmatprep.subr.mxu0 0.0
      %3754 = vmatpush1.msra.mxu0 0.0
      %3755 = vmatprep.subr.mxu0 0.0
      %3756 = vmatpush1.msra.mxu0 0.0
      %3757 = vmatprep.subr.mxu0 0.0
      %3758 = vmatpush1.msra.mxu0 0.0
      %3759 = vmatprep.subr.mxu0 0.0
      %3760 = vmatpush1.msra.mxu0 0.0
      %3761 = vmatprep.subr.mxu0 0.0
      %3762 = vmatpush1.msra.mxu0 0.0
      %3763 = vmatprep.subr.mxu0 0.0
      %3764 = vmatpush1.msra.mxu0 0.0
      %3765 = vmatprep.subr.mxu0 0.0
      %3766 = vmatpush1.msra.mxu0 0.0
      %3767 = vmatprep.subr.mxu0 0.0
      %3768 = vmatpush1.msra.mxu0 0.0
      %3769 = vmatprep.subr.mxu0 0.0
      %3770 = vmatpush1.msra.mxu0 0.0
      %3771 = vmatprep.subr.mxu0 0.0
      %3772 = vmatpush1.msra.mxu0 0.0
      %3773 = vmatprep.subr.mxu0 0.0
      %3774 = vmatpush1.msra.mxu0 0.0
      %3775 = vmatprep.subr.mxu0 0.0
      %3776 = vmatpush1.msra.mxu0 0.0
      %3777 = vmatprep.subr.mxu0 0.0
      %3778 = vmatpush1.msra.mxu0 0.0
      %3779 = vmatprep.subr.mxu0 0.0
      %3780 = vmatpush1.msra.mxu0 0.0
      %3781 = vmatprep.subr.mxu0 0.0
      %3782 = vmatpush1.msra.mxu0 0.0
      %3783 = vmatprep.subr.mxu0 0.0
      %3784 = vmatpush1.msra.mxu0 0.0
      %3785 = vmatprep.subr.mxu0 0.0
      %3786 = vmatpush1.msra.mxu0 0.0
      %3787 = vmatprep.subr.mxu0 0.0
      %3788 = vmatpush1.msra.mxu0 0.0
      %3789 = vmatprep.subr.mxu0 0.0
      %3790 = vmatpush1.msra.mxu0 0.0
      %3791 = vmatprep.subr.mxu0 0.0
      %3792 = vmatpush1.msra.mxu0 0.0
      %3793 = vmatprep.subr.mxu0 0.0
      %3794 = vmatpush1.msra.mxu0 0.0
      %3795 = vmatprep.subr.mxu0 0.0
      %3796 = vmatpush1.msra.mxu0 0.0
      %3797 = vmatprep.subr.mxu0 0.0
      %3798 = vmatpush1.msra.mxu0 0.0
      %3799 = vmatprep.subr.mxu0 0.0
      %3800 = vmatpush1.msra.mxu0 0.0
      %3801 = vmatprep.subr.mxu0 0.0
      %3802 = vmatpush1.msra.mxu0 0.0
      %3803 = vmatprep.subr.mxu0 0.0
      %3804 = vmatpush1.msra.mxu0 0.0
      %3805 = vmatprep.subr.mxu0 0.0
      %3806 = vmatpush1.msra.mxu0 0.0
      %3807 = vmatprep.subr.mxu0 0.0
      %3808 = vmatpush1.msra.mxu0 0.0
      %3809 = vmatprep.subr.mxu0 0.0
      %3810 = vmatpush1.msra.mxu0 0.0
      %3811 = vmatprep.mubr.f32.mxu0 0.0
      %3812 = vmatmul.mubr.f32.gmra.mrb[0].mxu0 %v1440
      %v3813 = vpop.f32.mrb[0].mxu0
      %v3814 = vadd.f32 0.0, %v3813
      %v3815 = vpop.f32.mrb[0].mxu0
      %3816 = vmatprep.mubr.f32.mxu0 0.0
      %3817 = vmatmul.mubr.f32.gmra.mrb[0].mxu0 %v1442
      %v3818 = vpop.f32.mrb[0].mxu0
      %v3819 = vadd.f32 0.0, %v3818
      %v3820 = vpop.f32.mrb[0].mxu0
      %3821 = vmatprep.mubr.f32.mxu0 0.0
      %3822 = vmatmul.mubr.f32.gmra.mrb[0].mxu0 %v1444
      %v3823 = vpop.f32.mrb[0].mxu0
      %v3824 = vadd.f32 0.0, %v3823
      %v3825 = vpop.f32.mrb[0].mxu0
      %3826 = vmatprep.mubr.f32.mxu0 0.0
      %3827 = vmatmul.mubr.f32.gmra.mrb[0].mxu0 %v1446
      %v3828 = vpop.f32.mrb[0].mxu0
      %v3829 = vadd.f32 0.0, %v3828
      %v3830 = vpop.f32.mrb[0].mxu0
      %3831 = vmatprep.mubr.f32.mxu0 0.0
      %3832 = vmatmul.mubr.f32.gmra.mrb[0].mxu0 %v1448
      %v3833 = vpop.f32.mrb[0].mxu0
      %v3834 = vadd.f32 0.0, %v3833
      %v3835 = vpop.f32.mrb[0].mxu0
      %3836 = vmatprep.mubr.f32.mxu0 0.0
      %3837 = vmatmul.mubr.f32.gmra.mrb[0].mxu0 %v1450
      %v3838 = vpop.f32.mrb[0].mxu0
      %v3839 = vadd.f32 0.0, %v3838
      %v3840 = vpop.f32.mrb[0].mxu0
      %3841 = vmatprep.mubr.f32.mxu0 0.0
      %3842 = vmatmul.mubr.f32.gmra.mrb[0].mxu0 %v1452
      %v3843 = vpop.f32.mrb[0].mxu0
      %v3844 = vadd.f32 0.0, %v3843
      %v3845 = vpop.f32.mrb[0].mxu0
      %3846 = vmatprep.mubr.f32.mxu0 0.0
      %3847 = vmatmul.mubr.f32.gmra.mrb[0].mxu0 %v1454
      %v3848 = vpop.f32.mrb[0].mxu0
      %v3849 = vadd.f32 0.0, %v3848
      %v3850 = vpop.f32.mrb[0].mxu0
      %3851 = vmatprep.mubr.f32.mxu0 0.0
      %3852 = vmatmul.mubr.f32.gmra.mrb[0].mxu0 %v1456
      %v3853 = vpop.f32.mrb[0].mxu0
      %v3854 = vadd.f32 0.0, %v3853
      %v3855 = vpop.f32.mrb[0].mxu0
      %3856 = vmatprep.mubr.f32.mxu0 0.0
      %3857 = vmatmul.mubr.f32.gmra.mrb[0].mxu0 %v1458
      %v3858 = vpop.f32.mrb[0].mxu0
      %v3859 = vadd.f32 0.0, %v3858
      %v3860 = vpop.f32.mrb[0].mxu0
      %3861 = vmatprep.mubr.f32.mxu0 0.0
      %3862 = vmatmul.mubr.f32.gmra.mrb[0].mxu0 %v1460
      %v3863 = vpop.f32.mrb[0].mxu0
      %v3864 = vadd.f32 0.0, %v3863
      %v3865 = vpop.f32.mrb[0].mxu0
      %3866 = vmatprep.mubr.f32.mxu0 0.0
      %3867 = vmatmul.mubr.f32.gmra.mrb[0].mxu0 %v1462
      %v3868 = vpop.f32.mrb[0].mxu0
      %v3869 = vadd.f32 0.0, %v3868
      %v3870 = vpop.f32.mrb[0].mxu0
      %3871 = vmatprep.mubr.f32.mxu0 0.0
      %3872 = vmatmul.mubr.f32.gmra.mrb[0].mxu0 %v1464
      %v3873 = vpop.f32.mrb[0].mxu0
      %v3874 = vadd.f32 0.0, %v3873
      %v3875 = vpop.f32.mrb[0].mxu0
      %3876 = vmatprep.mubr.f32.mxu0 0.0
      %3877 = vmatmul.mubr.f32.gmra.mrb[0].mxu0 %v1466
      %v3878 = vpop.f32.mrb[0].mxu0
      %v3879 = vadd.f32 0.0, %v3878
      %v3880 = vpop.f32.mrb[0].mxu0
      %3881 = vmatprep.mubr.f32.mxu0 0.0
      %3882 = vmatmul.mubr.f32.gmra.mrb[0].mxu0 %v1468
      %v3883 = vpop.f32.mrb[0].mxu0
      %v3884 = vadd.f32 0.0, %v3883
      %v3885 = vpop.f32.mrb[0].mxu0
      %3886 = vmatprep.mubr.f32.mxu0 0.0
      %3887 = vmatmul.mubr.f32.gmra.mrb[0].mxu0 %v1470
      %v3888 = vpop.f32.mrb[0].mxu0
      %v3889 = vadd.f32 0.0, %v3888
      %v3890 = vpop.f32.mrb[0].mxu0
      %3891 = vmatprep.mubr.f32.mxu0 0.0
      %3892 = vmatmul.mubr.f32.gmra.mrb[0].mxu0 %v1472
      %v3893 = vpop.f32.mrb[0].mxu0
      %v3894 = vadd.f32 0.0, %v3893
      %v3895 = vpop.f32.mrb[0].mxu0
      %3896 = vmatprep.mubr.f32.mxu0 0.0
      %3897 = vmatmul.mubr.f32.gmra.mrb[0].mxu0 %v1474
      %v3898 = vpop.f32.mrb[0].mxu0
      %v3899 = vadd.f32 0.0, %v3898
      %v3900 = vpop.f32.mrb[0].mxu0
      %3901 = vmatprep.mubr.f32.mxu0 0.0
      %3902 = vmatmul.mubr.f32.gmra.mrb[0].mxu0 %v1476
      %v3903 = vpop.f32.mrb[0].mxu0
      %v3904 = vadd.f32 0.0, %v3903
      %v3905 = vpop.f32.mrb[0].mxu0
      %3906 = vmatprep.mubr.f32.mxu0 0.0
      %3907 = vmatmul.mubr.f32.gmra.mrb[0].mxu0 %v1478
      %v3908 = vpop.f32.mrb[0].mxu0
      %v3909 = vadd.f32 0.0, %v3908
      %v3910 = vpop.f32.mrb[0].mxu0
      %3911 = vmatprep.mubr.f32.mxu0 0.0
      %3912 = vmatmul.mubr.f32.gmra.mrb[0].mxu0 %v1480
      %v3913 = vpop.f32.mrb[0].mxu0
      %v3914 = vadd.f32 0.0, %v3913
      %v3915 = vpop.f32.mrb[0].mxu0
      %3916 = vmatprep.mubr.f32.mxu0 0.0
      %3917 = vmatmul.mubr.f32.gmra.mrb[0].mxu0 %v1482
      %v3918 = vpop.f32.mrb[0].mxu0
      %v3919 = vadd.f32 0.0, %v3918
      %v3920 = vpop.f32.mrb[0].mxu0
      %3921 = vmatprep.mubr.f32.mxu0 0.0
      %3922 = vmatmul.mubr.f32.gmra.mrb[0].mxu0 %v1484
      %v3923 = vpop.f32.mrb[0].mxu0
      %v3924 = vadd.f32 0.0, %v3923
      %v3925 = vpop.f32.mrb[0].mxu0
      %3926 = vmatprep.mubr.f32.mxu0 0.0
      %3927 = vmatmul.mubr.f32.gmra.mrb[0].mxu0 %v1486
      %v3928 = vpop.f32.mrb[0].mxu0
      %v3929 = vadd.f32 0.0, %v3928
      %v3930 = vpop.f32.mrb[0].mxu0
      %3931 = vmatprep.mubr.f32.mxu0 0.0
      %3932 = vmatmul.mubr.f32.gmra.mrb[0].mxu0 %v1488
      %v3933 = vpop.f32.mrb[0].mxu0
      %v3934 = vadd.f32 0.0, %v3933
      %v3935 = vpop.f32.mrb[0].mxu0
      %3936 = vmatprep.mubr.f32.mxu0 0.0
      %3937 = vmatmul.mubr.f32.gmra.mrb[0].mxu0 %v1490
      %v3938 = vpop.f32.mrb[0].mxu0
      %v3939 = vadd.f32 0.0, %v3938
      %v3940 = vpop.f32.mrb[0].mxu0
      %3941 = vmatprep.mubr.f32.mxu0 0.0
      %3942 = vmatmul.mubr.f32.gmra.mrb[0].mxu0 %v1492
      %v3943 = vpop.f32.mrb[0].mxu0
      %v3944 = vadd.f32 0.0, %v3943
      %v3945 = vpop.f32.mrb[0].mxu0
      %3946 = vmatprep.mubr.f32.mxu0 0.0
      %3947 = vmatmul.mubr.f32.gmra.mrb[0].mxu0 %v1494
      %v3948 = vpop.f32.mrb[0].mxu0
      %v3949 = vadd.f32 0.0, %v3948
      %v3950 = vpop.f32.mrb[0].mxu0
      %3951 = vmatprep.mubr.f32.mxu0 0.0
      %3952 = vmatmul.mubr.f32.gmra.mrb[0].mxu0 %v1496
      %v3953 = vpop.f32.mrb[0].mxu0
      %v3954 = vadd.f32 0.0, %v3953
      %v3955 = vpop.f32.mrb[0].mxu0
      %3956 = vmatprep.mubr.f32.mxu0 0.0
      %3957 = vmatmul.mubr.f32.gmra.mrb[0].mxu0 %v1498
      %v3958 = vpop.f32.mrb[0].mxu0
      %v3959 = vadd.f32 0.0, %v3958
      %v3960 = vpop.f32.mrb[0].mxu0
      %3961 = vmatprep.mubr.f32.mxu0 0.0
      %3962 = vmatmul.mubr.f32.gmra.mrb[0].mxu0 %v1500
      %v3963 = vpop.f32.mrb[0].mxu0
      %v3964 = vadd.f32 0.0, %v3963
      %v3965 = vpop.f32.mrb[0].mxu0
      %3966 = vmatprep.mubr.f32.mxu0 0.0
      %3967 = vmatmul.mubr.f32.gmra.mrb[0].mxu0 %v1502
      %v3968 = vpop.f32.mrb[0].mxu0
      %v3969 = vadd.f32 0.0, %v3968
      %v3970 = vpop.f32.mrb[0].mxu0
      %3971 = vmatprep.mubr.f32.mxu0 0.0
      %3972 = vmatmul.mubr.f32.gmra.mrb[0].mxu0 %v1504
      %v3973 = vpop.f32.mrb[0].mxu0
      %v3974 = vadd.f32 0.0, %v3973
      %v3975 = vpop.f32.mrb[0].mxu0
      %3976 = vmatprep.mubr.f32.mxu0 0.0
      %3977 = vmatmul.mubr.f32.gmra.mrb[0].mxu0 %v1506
      %v3978 = vpop.f32.mrb[0].mxu0
      %v3979 = vadd.f32 0.0, %v3978
      %v3980 = vpop.f32.mrb[0].mxu0
      %3981 = vmatprep.mubr.f32.mxu0 0.0
      %3982 = vmatmul.mubr.f32.gmra.mrb[0].mxu0 %v1508
      %v3983 = vpop.f32.mrb[0].mxu0
      %v3984 = vadd.f32 0.0, %v3983
      %v3985 = vpop.f32.mrb[0].mxu0
      %3986 = vmatprep.mubr.f32.mxu0 0.0
      %3987 = vmatmul.mubr.f32.gmra.mrb[0].mxu0 %v1510
      %v3988 = vpop.f32.mrb[0].mxu0
      %v3989 = vadd.f32 0.0, %v3988
      %v3990 = vpop.f32.mrb[0].mxu0
      %3991 = vmatprep.mubr.f32.mxu0 0.0
      %3992 = vmatmul.mubr.f32.gmra.mrb[0].mxu0 %v1512
      %v3993 = vpop.f32.mrb[0].mxu0
      %v3994 = vadd.f32 0.0, %v3993
      %v3995 = vpop.f32.mrb[0].mxu0
      %3996 = vmatprep.mubr.f32.mxu0 0.0
      %3997 = vmatmul.mubr.f32.gmra.mrb[0].mxu0 %v1514
      %v3998 = vpop.f32.mrb[0].mxu0
      %v3999 = vadd.f32 0.0, %v3998
      %v4000 = vpop.f32.mrb[0].mxu0
      %4001 = vmatprep.mubr.f32.mxu0 0.0
      %4002 = vmatmul.mubr.f32.gmra.mrb[0].mxu0 %v1516
      %v4003 = vpop.f32.mrb[0].mxu0
      %v4004 = vadd.f32 0.0, %v4003
      %v4005 = vpop.f32.mrb[0].mxu0
      %4006 = vmatprep.mubr.f32.mxu0 0.0
      %4007 = vmatmul.mubr.f32.gmra.mrb[0].mxu0 %v1518
      %v4008 = vpop.f32.mrb[0].mxu0
      %v4009 = vadd.f32 0.0, %v4008
      %v4010 = vpop.f32.mrb[0].mxu0
      %4011 = vmatprep.mubr.f32.mxu0 0.0
      %4012 = vmatmul.mubr.f32.gmra.mrb[0].mxu0 %v1520
      %v4013 = vpop.f32.mrb[0].mxu0
      %v4014 = vadd.f32 0.0, %v4013
      %v4015 = vpop.f32.mrb[0].mxu0
      %4016 = vmatprep.mubr.f32.mxu0 0.0
      %4017 = vmatmul.mubr.f32.gmra.mrb[0].mxu0 %v1522
      %v4018 = vpop.f32.mrb[0].mxu0
      %v4019 = vadd.f32 0.0, %v4018
      %v4020 = vpop.f32.mrb[0].mxu0
      %4021 = vmatprep.mubr.f32.mxu0 0.0
      %4022 = vmatmul.mubr.f32.gmra.mrb[0].mxu0 %v2628
      %v4023 = vpop.f32.mrb[0].mxu0
      %v4024 = vadd.f32 0.0, %v4023
      %v4025 = vpop.f32.mrb[0].mxu0
      %4026 = vmatprep.mubr.f32.mxu0 0.0
      %4027 = vmatmul.mubr.f32.gmra.mrb[0].mxu0 %v2630
      %v4028 = vpop.f32.mrb[0].mxu0
      %v4029 = vadd.f32 0.0, %v4028
      %v4030 = vpop.f32.mrb[0].mxu0
      %4031 = vmatprep.mubr.f32.mxu0 0.0
      %4032 = vmatmul.mubr.f32.gmra.mrb[0].mxu0 %v2632
      %v4033 = vpop.f32.mrb[0].mxu0
      %v4034 = vadd.f32 0.0, %v4033
      %v4035 = vpop.f32.mrb[0].mxu0
      %4036 = vmatprep.mubr.f32.mxu0 0.0
      %4037 = vmatmul.mubr.f32.gmra.mrb[0].mxu0 %v3738
      %v4038 = vpop.f32.mrb[0].mxu0
      %v4039 = vadd.f32 0.0, %v4038
      %v4040 = vpop.f32.mrb[0].mxu0
      %4041 = vmatprep.mubr.f32.mxu0 0.0
      %4042 = vmatmul.mubr.f32.gmra.mrb[0].mxu0 %v3740
      %v4043 = vpop.f32.mrb[0].mxu0
      %v4044 = vadd.f32 0.0, %v4043
      %v4045 = vpop.f32.mrb[0].mxu0
      %4046 = vmatprep.mubr.f32.mxu0 0.0
      %4047 = vmatmul.mubr.f32.gmra.mrb[0].mxu0 %v3742
      %v4048 = vpop.f32.mrb[0].mxu0
      %v4049 = vadd.f32 0.0, %v4048
      %v4050 = vpop.f32.mrb[0].mxu0
      %4051 = vdwg.mxu0
      %v4052 = vadd.f32 %v3681, %v3814
      %v4053 = vadd.f32 %v3682, %v3819
      %v4054 = vadd.f32 %v3683, %v3824
      %v4055 = vadd.f32 %v3684, %v3829
      %v4056 = vadd.f32 %v3685, %v3834
      %v4057 = vadd.f32 %v3686, %v3839
      %v4058 = vadd.f32 %v3687, %v3844
      %v4059 = vadd.f32 %v3688, %v3849
      %v4060 = vadd.f32 %v3689, %v3854
      %v4061 = vadd.f32 %v3690, %v3859
      %v4062 = vadd.f32 %v3691, %v3864
      %v4063 = vadd.f32 %v3692, %v3869
      %v4064 = vadd.f32 %v3693, %v3874
      %v4065 = vadd.f32 %v3694, %v3879
      %v4066 = vadd.f32 %v3695, %v3884
      %v4067 = vadd.f32 %v3696, %v3889
      %v4068 = vadd.f32 %v3697, %v3894
      %v4069 = vadd.f32 %v3698, %v3899
      %v4070 = vadd.f32 %v3699, %v3904
      %v4071 = vadd.f32 %v3700, %v3909
      %v4072 = vadd.f32 %v3701, %v3914
      %v4073 = vadd.f32 %v3702, %v3919
      %v4074 = vadd.f32 %v3703, %v3924
      %v4075 = vadd.f32 %v3704, %v3929
      %v4076 = vadd.f32 %v3705, %v3934
      %v4077 = vadd.f32 %v3706, %v3939
      %v4078 = vadd.f32 %v3707, %v3944
      %v4079 = vadd.f32 %v3708, %v3949
      %v4080 = vadd.f32 %v3709, %v3954
      %v4081 = vadd.f32 %v3710, %v3959
      %v4082 = vadd.f32 %v3711, %v3964
      %v4083 = vadd.f32 %v3712, %v3969
      %v4084 = vadd.f32 %v3713, %v3974
      %v4085 = vadd.f32 %v3714, %v3979
      %v4086 = vadd.f32 %v3715, %v3984
      %v4087 = vadd.f32 %v3716, %v3989
      %v4088 = vadd.f32 %v3717, %v3994
      %v4089 = vadd.f32 %v3718, %v3999
      %v4090 = vadd.f32 %v3719, %v4004
      %v4091 = vadd.f32 %v3720, %v4009
      %v4092 = vadd.f32 %v3721, %v4014
      %v4093 = vadd.f32 %v3722, %v4019
      %v4094 = vadd.f32 %v3723, %v4024
      %v4095 = vadd.f32 %v3724, %v4029
      %v4096 = vadd.f32 %v3725, %v4034
      %v4097 = vadd.f32 %v3726, %v4039
      %v4098 = vadd.f32 %v3727, %v4044
      %v4099 = vadd.f32 %v3728, %v4049
      %v4100 = vxor.u32 %v4052, 2147483648
      %v4101 = vxor.u32 %v4053, 2147483648
      %v4102 = vxor.u32 %v4054, 2147483648
      %v4103 = vxor.u32 %v4055, 2147483648
      %v4104 = vxor.u32 %v4056, 2147483648
      %v4105 = vxor.u32 %v4057, 2147483648
      %v4106 = vxor.u32 %v4058, 2147483648
      %v4107 = vxor.u32 %v4059, 2147483648
      %v4108 = vxor.u32 %v4060, 2147483648
      %v4109 = vxor.u32 %v4061, 2147483648
      %v4110 = vxor.u32 %v4062, 2147483648
      %v4111 = vxor.u32 %v4063, 2147483648
      %v4112 = vxor.u32 %v4064, 2147483648
      %v4113 = vxor.u32 %v4065, 2147483648
      %v4114 = vxor.u32 %v4066, 2147483648
      %v4115 = vxor.u32 %v4067, 2147483648
      %v4116 = vxor.u32 %v4068, 2147483648
      %v4117 = vxor.u32 %v4069, 2147483648
      %v4118 = vxor.u32 %v4070, 2147483648
      %v4119 = vxor.u32 %v4071, 2147483648
      %v4120 = vxor.u32 %v4072, 2147483648
      %v4121 = vxor.u32 %v4073, 2147483648
      %v4122 = vxor.u32 %v4074, 2147483648
      %v4123 = vxor.u32 %v4075, 2147483648
      %v4124 = vxor.u32 %v4076, 2147483648
      %v4125 = vxor.u32 %v4077, 2147483648
      %v4126 = vxor.u32 %v4078, 2147483648
      %v4127 = vxor.u32 %v4079, 2147483648
      %v4128 = vxor.u32 %v4080, 2147483648
      %v4129 = vxor.u32 %v4081, 2147483648
      %v4130 = vxor.u32 %v4082, 2147483648
      %v4131 = vxor.u32 %v4083, 2147483648
      %v4132 = vxor.u32 %v4084, 2147483648
      %v4133 = vxor.u32 %v4085, 2147483648
      %v4134 = vxor.u32 %v4086, 2147483648
      %v4135 = vxor.u32 %v4087, 2147483648
      %v4136 = vxor.u32 %v4088, 2147483648
      %v4137 = vxor.u32 %v4089, 2147483648
      %v4138 = vxor.u32 %v4090, 2147483648
      %v4139 = vxor.u32 %v4091, 2147483648
      %v4140 = vxor.u32 %v4092, 2147483648
      %v4141 = vxor.u32 %v4093, 2147483648
      %v4142 = vxor.u32 %v4094, 2147483648
      %v4143 = vxor.u32 %v4095, 2147483648
      %v4144 = vxor.u32 %v4096, 2147483648
      %v4145 = vxor.u32 %v4097, 2147483648
      %v4146 = vxor.u32 %v4098, 2147483648
      %v4147 = vxor.u32 %v4099, 2147483648
      %v4148 = vmul.f32 %v4100, 1.442695
      %v4149 = vpow.pop %v4148
      %v4150 = vmul.f32 %v4101, 1.442695
      %v4151 = vpow.pop %v4150
      %v4152 = vmul.f32 %v4102, 1.442695
      %v4153 = vpow.pop %v4152
      %v4154 = vmul.f32 %v4103, 1.442695
      %v4155 = vpow.pop %v4154
      %v4156 = vmul.f32 %v4104, 1.442695
      %v4157 = vpow.pop %v4156
      %v4158 = vmul.f32 %v4105, 1.442695
      %v4159 = vpow.pop %v4158
      %v4160 = vmul.f32 %v4106, 1.442695
      %v4161 = vpow.pop %v4160
      %v4162 = vmul.f32 %v4107, 1.442695
      %v4163 = vpow.pop %v4162
      %v4164 = vmul.f32 %v4108, 1.442695
      %v4165 = vpow.pop %v4164
      %v4166 = vmul.f32 %v4109, 1.442695
      %v4167 = vpow.pop %v4166
      %v4168 = vmul.f32 %v4110, 1.442695
      %v4169 = vpow.pop %v4168
      %v4170 = vmul.f32 %v4111, 1.442695
      %v4171 = vpow.pop %v4170
      %v4172 = vmul.f32 %v4112, 1.442695
      %v4173 = vpow.pop %v4172
      %v4174 = vmul.f32 %v4113, 1.442695
      %v4175 = vpow.pop %v4174
      %v4176 = vmul.f32 %v4114, 1.442695
      %v4177 = vpow.pop %v4176
      %v4178 = vmul.f32 %v4115, 1.442695
      %v4179 = vpow.pop %v4178
      %v4180 = vmul.f32 %v4116, 1.442695
      %v4181 = vpow.pop %v4180
      %v4182 = vmul.f32 %v4117, 1.442695
      %v4183 = vpow.pop %v4182
      %v4184 = vmul.f32 %v4118, 1.442695
      %v4185 = vpow.pop %v4184
      %v4186 = vmul.f32 %v4119, 1.442695
      %v4187 = vpow.pop %v4186
      %v4188 = vmul.f32 %v4120, 1.442695
      %v4189 = vpow.pop %v4188
      %v4190 = vmul.f32 %v4121, 1.442695
      %v4191 = vpow.pop %v4190
      %v4192 = vmul.f32 %v4122, 1.442695
      %v4193 = vpow.pop %v4192
      %v4194 = vmul.f32 %v4123, 1.442695
      %v4195 = vpow.pop %v4194
      %v4196 = vmul.f32 %v4124, 1.442695
      %v4197 = vpow.pop %v4196
      %v4198 = vmul.f32 %v4125, 1.442695
      %v4199 = vpow.pop %v4198
      %v4200 = vmul.f32 %v4126, 1.442695
      %v4201 = vpow.pop %v4200
      %v4202 = vmul.f32 %v4127, 1.442695
      %v4203 = vpow.pop %v4202
      %v4204 = vmul.f32 %v4128, 1.442695
      %v4205 = vpow.pop %v4204
      %v4206 = vmul.f32 %v4129, 1.442695
      %v4207 = vpow.pop %v4206
      %v4208 = vmul.f32 %v4130, 1.442695
      %v4209 = vpow.pop %v4208
      %v4210 = vmul.f32 %v4131, 1.442695
      %v4211 = vpow.pop %v4210
      %v4212 = vmul.f32 %v4132, 1.442695
      %v4213 = vpow.pop %v4212
      %v4214 = vmul.f32 %v4133, 1.442695
      %v4215 = vpow.pop %v4214
      %v4216 = vmul.f32 %v4134, 1.442695
      %v4217 = vpow.pop %v4216
      %v4218 = vmul.f32 %v4135, 1.442695
      %v4219 = vpow.pop %v4218
      %v4220 = vmul.f32 %v4136, 1.442695
      %v4221 = vpow.pop %v4220
      %v4222 = vmul.f32 %v4137, 1.442695
      %v4223 = vpow.pop %v4222
      %v4224 = vmul.f32 %v4138, 1.442695
      %v4225 = vpow.pop %v4224
      %v4226 = vmul.f32 %v4139, 1.442695
      %v4227 = vpow.pop %v4226
      %v4228 = vmul.f32 %v4140, 1.442695
      %v4229 = vpow.pop %v4228
      %v4230 = vmul.f32 %v4141, 1.442695
      %v4231 = vpow.pop %v4230
      %v4232 = vmul.f32 %v4142, 1.442695
      %v4233 = vpow.pop %v4232
      %v4234 = vmul.f32 %v4143, 1.442695
      %v4235 = vpow.pop %v4234
      %v4236 = vmul.f32 %v4144, 1.442695
      %v4237 = vpow.pop %v4236
      %v4238 = vmul.f32 %v4145, 1.442695
      %v4239 = vpow.pop %v4238
      %v4240 = vmul.f32 %v4146, 1.442695
      %v4241 = vpow.pop %v4240
      %v4242 = vmul.f32 %v4147, 1.442695
      %v4243 = vpow.pop %v4242
      %v4244 = vadd.f32 %v4149, 1.0
      %v4245 = vadd.f32 %v4151, 1.0
      %v4246 = vadd.f32 %v4153, 1.0
      %v4247 = vadd.f32 %v4155, 1.0
      %v4248 = vadd.f32 %v4157, 1.0
      %v4249 = vadd.f32 %v4159, 1.0
      %v4250 = vadd.f32 %v4161, 1.0
      %v4251 = vadd.f32 %v4163, 1.0
      %v4252 = vadd.f32 %v4165, 1.0
      %v4253 = vadd.f32 %v4167, 1.0
      %v4254 = vadd.f32 %v4169, 1.0
      %v4255 = vadd.f32 %v4171, 1.0
      %v4256 = vadd.f32 %v4173, 1.0
      %v4257 = vadd.f32 %v4175, 1.0
      %v4258 = vadd.f32 %v4177, 1.0
      %v4259 = vadd.f32 %v4179, 1.0
      %v4260 = vadd.f32 %v4181, 1.0
      %v4261 = vadd.f32 %v4183, 1.0
      %v4262 = vadd.f32 %v4185, 1.0
      %v4263 = vadd.f32 %v4187, 1.0
      %v4264 = vadd.f32 %v4189, 1.0
      %v4265 = vadd.f32 %v4191, 1.0
      %v4266 = vadd.f32 %v4193, 1.0
      %v4267 = vadd.f32 %v4195, 1.0
      %v4268 = vadd.f32 %v4197, 1.0
      %v4269 = vadd.f32 %v4199, 1.0
      %v4270 = vadd.f32 %v4201, 1.0
      %v4271 = vadd.f32 %v4203, 1.0
      %v4272 = vadd.f32 %v4205, 1.0
      %v4273 = vadd.f32 %v4207, 1.0
      %v4274 = vadd.f32 %v4209, 1.0
      %v4275 = vadd.f32 %v4211, 1.0
      %v4276 = vadd.f32 %v4213, 1.0
      %v4277 = vadd.f32 %v4215, 1.0
      %v4278 = vadd.f32 %v4217, 1.0
      %v4279 = vadd.f32 %v4219, 1.0
      %v4280 = vadd.f32 %v4221, 1.0
      %v4281 = vadd.f32 %v4223, 1.0
      %v4282 = vadd.f32 %v4225, 1.0
      %v4283 = vadd.f32 %v4227, 1.0
      %v4284 = vadd.f32 %v4229, 1.0
      %v4285 = vadd.f32 %v4231, 1.0
      %v4286 = vadd.f32 %v4233, 1.0
      %v4287 = vadd.f32 %v4235, 1.0
      %v4288 = vadd.f32 %v4237, 1.0
      %v4289 = vadd.f32 %v4239, 1.0
      %v4290 = vadd.f32 %v4241, 1.0
      %v4291 = vadd.f32 %v4243, 1.0
      %v4292 = vrcp.pop %v4244
      %v4293 = vmul.f32 1.0, %v4292
      %v4294 = vrcp.pop %v4245
      %v4295 = vmul.f32 1.0, %v4294
      %v4296 = vrcp.pop %v4246
      %v4297 = vmul.f32 1.0, %v4296
      %v4298 = vrcp.pop %v4247
      %v4299 = vmul.f32 1.0, %v4298
      %v4300 = vrcp.pop %v4248
      %v4301 = vmul.f32 1.0, %v4300
      %v4302 = vrcp.pop %v4249
      %v4303 = vmul.f32 1.0, %v4302
      %v4304 = vrcp.pop %v4250
      %v4305 = vmul.f32 1.0, %v4304
      %v4306 = vrcp.pop %v4251
      %v4307 = vmul.f32 1.0, %v4306
      %v4308 = vrcp.pop %v4252
      %v4309 = vmul.f32 1.0, %v4308
      %v4310 = vrcp.pop %v4253
      %v4311 = vmul.f32 1.0, %v4310
      %v4312 = vrcp.pop %v4254
      %v4313 = vmul.f32 1.0, %v4312
      %v4314 = vrcp.pop %v4255
      %v4315 = vmul.f32 1.0, %v4314
      %v4316 = vrcp.pop %v4256
      %v4317 = vmul.f32 1.0, %v4316
      %v4318 = vrcp.pop %v4257
      %v4319 = vmul.f32 1.0, %v4318
      %v4320 = vrcp.pop %v4258
      %v4321 = vmul.f32 1.0, %v4320
      %v4322 = vrcp.pop %v4259
      %v4323 = vmul.f32 1.0, %v4322
      %v4324 = vrcp.pop %v4260
      %v4325 = vmul.f32 1.0, %v4324
      %v4326 = vrcp.pop %v4261
      %v4327 = vmul.f32 1.0, %v4326
      %v4328 = vrcp.pop %v4262
      %v4329 = vmul.f32 1.0, %v4328
      %v4330 = vrcp.pop %v4263
      %v4331 = vmul.f32 1.0, %v4330
      %v4332 = vrcp.pop %v4264
      %v4333 = vmul.f32 1.0, %v4332
      %v4334 = vrcp.pop %v4265
      %v4335 = vmul.f32 1.0, %v4334
      %v4336 = vrcp.pop %v4266
      %v4337 = vmul.f32 1.0, %v4336
      %v4338 = vrcp.pop %v4267
      %v4339 = vmul.f32 1.0, %v4338
      %v4340 = vrcp.pop %v4268
      %v4341 = vmul.f32 1.0, %v4340
      %v4342 = vrcp.pop %v4269
      %v4343 = vmul.f32 1.0, %v4342
      %v4344 = vrcp.pop %v4270
      %v4345 = vmul.f32 1.0, %v4344
      %v4346 = vrcp.pop %v4271
      %v4347 = vmul.f32 1.0, %v4346
      %v4348 = vrcp.pop %v4272
      %v4349 = vmul.f32 1.0, %v4348
      %v4350 = vrcp.pop %v4273
      %v4351 = vmul.f32 1.0, %v4350
      %v4352 = vrcp.pop %v4274
      %v4353 = vmul.f32 1.0, %v4352
      %v4354 = vrcp.pop %v4275
      %v4355 = vmul.f32 1.0, %v4354
      %v4356 = vrcp.pop %v4276
      %v4357 = vmul.f32 1.0, %v4356
      %v4358 = vrcp.pop %v4277
      %v4359 = vmul.f32 1.0, %v4358
      %v4360 = vrcp.pop %v4278
      %v4361 = vmul.f32 1.0, %v4360
      %v4362 = vrcp.pop %v4279
      %v4363 = vmul.f32 1.0, %v4362
      %v4364 = vrcp.pop %v4280
      %v4365 = vmul.f32 1.0, %v4364
      %v4366 = vrcp.pop %v4281
      %v4367 = vmul.f32 1.0, %v4366
      %v4368 = vrcp.pop %v4282
      %v4369 = vmul.f32 1.0, %v4368
      %v4370 = vrcp.pop %v4283
      %v4371 = vmul.f32 1.0, %v4370
      %v4372 = vrcp.pop %v4284
      %v4373 = vmul.f32 1.0, %v4372
      %v4374 = vrcp.pop %v4285
      %v4375 = vmul.f32 1.0, %v4374
      %v4376 = vrcp.pop %v4286
      %v4377 = vmul.f32 1.0, %v4376
      %v4378 = vrcp.pop %v4287
      %v4379 = vmul.f32 1.0, %v4378
      %v4380 = vrcp.pop %v4288
      %v4381 = vmul.f32 1.0, %v4380
      %v4382 = vrcp.pop %v4289
      %v4383 = vmul.f32 1.0, %v4382
      %v4384 = vrcp.pop %v4290
      %v4385 = vmul.f32 1.0, %v4384
      %v4386 = vrcp.pop %v4291
      %v4387 = vmul.f32 1.0, %v4386
      %v4436 = vmul.f32 %v4293, %v786
      %v4437 = vmul.f32 %v4295, %v788
      %v4438 = vmul.f32 %v4297, %v790
      %v4439 = vmul.f32 %v4299, %v792
      %v4440 = vmul.f32 %v4301, %v794
      %v4441 = vmul.f32 %v4303, %v796
      %v4442 = vmul.f32 %v4305, %v798
      %v4443 = vmul.f32 %v4307, %v800
      %v4444 = vmul.f32 %v4309, %v802
      %v4445 = vmul.f32 %v4311, %v804
      %v4446 = vmul.f32 %v4313, %v806
      %v4447 = vmul.f32 %v4315, %v808
      %v4448 = vmul.f32 %v4317, %v810
      %v4449 = vmul.f32 %v4319, %v812
      %v4450 = vmul.f32 %v4321, %v814
      %v4451 = vmul.f32 %v4323, %v816
      %v4452 = vmul.f32 %v4325, %v818
      %v4453 = vmul.f32 %v4327, %v820
      %v4454 = vmul.f32 %v4329, %v822
      %v4455 = vmul.f32 %v4331, %v824
      %v4456 = vmul.f32 %v4333, %v826
      %v4457 = vmul.f32 %v4335, %v828
      %v4458 = vmul.f32 %v4337, %v830
      %v4459 = vmul.f32 %v4339, %v832
      %v4460 = vmul.f32 %v4341, %v834
      %v4461 = vmul.f32 %v4343, %v836
      %v4462 = vmul.f32 %v4345, %v838
      %v4463 = vmul.f32 %v4347, %v840
      %v4464 = vmul.f32 %v4349, %v842
      %v4465 = vmul.f32 %v4351, %v844
      %v4466 = vmul.f32 %v4353, %v846
      %v4467 = vmul.f32 %v4355, %v848
      %v4468 = vmul.f32 %v4357, %v850
      %v4469 = vmul.f32 %v4359, %v852
      %v4470 = vmul.f32 %v4361, %v854
      %v4471 = vmul.f32 %v4363, %v856
      %v4472 = vmul.f32 %v4365, %v858
      %v4473 = vmul.f32 %v4367, %v860
      %v4474 = vmul.f32 %v4369, %v862
      %v4475 = vmul.f32 %v4371, %v864
      %v4476 = vmul.f32 %v4373, %v866
      %v4477 = vmul.f32 %v4375, %v868
      %v4478 = vmul.f32 %v4377, %v870
      %v4479 = vmul.f32 %v4379, %v872
      %v4480 = vmul.f32 %v4381, %v874
      %v4481 = vmul.f32 %v4383, %v2252
      %v4482 = vmul.f32 %v4385, %v2254
      %v4483 = vmul.f32 %v4387, %v2256
      %4484 = vst.msk [vmem:[%s206] sm:$0xff] %vm265, %v4436
      %4485 = vst.msk [vmem:[%s206 + $0x8] sm:$0xff] %vm265, %v4437
      %4486 = vst.msk [vmem:[%s206 + $0x10] sm:$0xff] %vm265, %v4438
      %4487 = vst.msk [vmem:[%s206 + $0x18] sm:$0xff] %vm265, %v4439
      %4488 = vst.msk [vmem:[%s206 + $0x20] sm:$0xff] %vm265, %v4440
      %4489 = vst.msk [vmem:[%s206 + $0x28] sm:$0xff] %vm265, %v4441
      %4490 = vst.msk [vmem:[%s206 + $0x30] sm:$0xff] %vm265, %v4442
      %4491 = vst.msk [vmem:[%s206 + $0x38] sm:$0xff] %vm265, %v4443
      %4492 = vst.msk [vmem:[%s206 + $0x40] sm:$0xff] %vm265, %v4444
      %4493 = vst.msk [vmem:[%s206 + $0x48] sm:$0xff] %vm265, %v4445
      %4494 = vst.msk [vmem:[%s206 + $0x50] sm:$0xff] %vm265, %v4446
      %4495 = vst.msk [vmem:[%s206 + $0x58] sm:$0xff] %vm265, %v4447
      %4496 = vst.msk [vmem:[%s206 + $0x60] sm:$0xff] %vm265, %v4448
      %4497 = vst.msk [vmem:[%s206 + $0x68] sm:$0xff] %vm265, %v4449
      %4498 = vst.msk [vmem:[%s206 + $0x70] sm:$0xff] %vm265, %v4450
      %4499 = vst.msk [vmem:[%s206 + $0x78] sm:$0xff] %vm265, %v4451
      %4500 = vst.msk [vmem:[%s206 + $0x80] sm:$0xff] %vm265, %v4452
      %4501 = vst.msk [vmem:[%s206 + $0x88] sm:$0xff] %vm265, %v4453
      %4502 = vst.msk [vmem:[%s206 + $0x90] sm:$0xff] %vm265, %v4454
      %4503 = vst.msk [vmem:[%s206 + $0x98] sm:$0xff] %vm265, %v4455
      %4504 = vst.msk [vmem:[%s206 + $0xa0] sm:$0xff] %vm265, %v4456
      %4505 = vst.msk [vmem:[%s206 + $0xa8] sm:$0xff] %vm265, %v4457
      %4506 = vst.msk [vmem:[%s206 + $0xb0] sm:$0xff] %vm265, %v4458
      %4507 = vst.msk [vmem:[%s206 + $0xb8] sm:$0xff] %vm265, %v4459
      %4508 = vst.msk [vmem:[%s206 + $0xc0] sm:$0xff] %vm265, %v4460
      %4509 = vst.msk [vmem:[%s206 + $0xc8] sm:$0xff] %vm265, %v4461
      %4510 = vst.msk [vmem:[%s206 + $0xd0] sm:$0xff] %vm265, %v4462
      %4511 = vst.msk [vmem:[%s206 + $0xd8] sm:$0xff] %vm265, %v4463
      %4512 = vst.msk [vmem:[%s206 + $0xe0] sm:$0xff] %vm265, %v4464
      %4513 = vst.msk [vmem:[%s206 + $0xe8] sm:$0xff] %vm265, %v4465
      %4514 = vst.msk [vmem:[%s206 + $0xf0] sm:$0xff] %vm265, %v4466
      %4515 = vst.msk [vmem:[%s206 + $0xf8] sm:$0xff] %vm265, %v4467
      %4516 = vst.msk [vmem:[%s206 + $0x100] sm:$0xff] %vm265, %v4468
      %4517 = vst.msk [vmem:[%s206 + $0x108] sm:$0xff] %vm265, %v4469
      %4518 = vst.msk [vmem:[%s206 + $0x110] sm:$0xff] %vm265, %v4470
      %4519 = vst.msk [vmem:[%s206 + $0x118] sm:$0xff] %vm265, %v4471
      %4520 = vst.msk [vmem:[%s206 + $0x120] sm:$0xff] %vm265, %v4472
      %4521 = vst.msk [vmem:[%s206 + $0x128] sm:$0xff] %vm265, %v4473
      %4522 = vst.msk [vmem:[%s206 + $0x130] sm:$0xff] %vm265, %v4474
      %4523 = vst.msk [vmem:[%s206 + $0x138] sm:$0xff] %vm265, %v4475
      %4524 = vst.msk [vmem:[%s206 + $0x140] sm:$0xff] %vm265, %v4476
      %4525 = vst.msk [vmem:[%s206 + $0x148] sm:$0xff] %vm265, %v4477
      %4526 = vst.msk [vmem:[%s206 + $0x150] sm:$0xff] %vm265, %v4478
      %4527 = vst.msk [vmem:[%s206 + $0x158] sm:$0xff] %vm265, %v4479
      %4528 = vst.msk [vmem:[%s206 + $0x160] sm:$0xff] %vm265, %v4480
      %4529 = vst.msk [vmem:[%s206 + $0x168] sm:$0xff] %vm265, %v4481
      %4530 = vst.msk [vmem:[%s206 + $0x170] sm:$0xff] %vm265, %v4482
      %4531 = vst.msk [vmem:[%s206 + $0x178] sm:$0xff] %vm265, %v4483
      %p4532 = scmp.lt.s32.totalorder %s18, 1
      %s4533 = scalar_select %p4532, %s18, 1
      %p4534 = scmp.lt.s32.totalorder %s19, 0
      %s4535 = scalar_select %p4534, %s19, 0
      %s4536 = smul.addr %s4535, 48
      %s4537 = smul.addr %s4533, 48
      %s4538 = sadd.s32 %s4536, %s4537
      %s4539 = smul.addr %s4538, 8
      %s4540 = scalar_lea.vmem %s3, %s4539
      // Predicated region
      $region33: #{tpu_custom_call.1} parent=31 // pred_check
        %p4541 = pneg %p116
      $region34: #{tpu_custom_call.1} parent=31 // pred_check_branch
        %4543 = sbr.rel (%p4541) target = $region36
      $region35: #{tpu_custom_call.1} parent=31 // pred_region
        _
      $region36: #{tpu_custom_call.1} parent=31 // pred_fallthru
        _
    $region32: #{tpu_custom_call.1} parent=5 // pred_fallthru
      _
    %p4544 = scmp.le.s32.totalorder 2, %s9
    // Predicated region
    $region37: #{tpu_custom_call.1} parent=5 // pred_check
      %p4545 = pneg %p4544
    $region38: #{tpu_custom_call.1} parent=5 // pred_check_branch
      %4547 = sbr.rel (%p4545) target = $region40
    $region39: #{tpu_custom_call.1} parent=5 // pred_region
      %s4548 = ssub.s32 %s9, 2
      // Predicated region
      $region41: #{tpu_custom_call.1} parent=39 // pred_check
        %p4549 = pneg %p122
      $region42: #{tpu_custom_call.1} parent=39 // pred_check_branch
        %4551 = sbr.rel (%p4549) target = $region44
      $region43: #{tpu_custom_call.1} parent=39 // pred_region
        %p4552 = scmp.lt.s32.totalorder %s20, 1
        %s4553 = scalar_select %p4552, %s20, 1
        %p4554 = scmp.lt.s32.totalorder %s21, 0
        %s4555 = scalar_select %p4554, %s21, 0
        %s4556 = smul.addr %s4555, 48
        %s4557 = smul.addr %s4553, 48
        %s4558 = sadd.s32 %s4556, %s4557
        %s4559 = smul.addr %s4558, 8
        %s4560 = scalar_lea.vmem %s3, %s4559
      $region44: #{tpu_custom_call.1} parent=39 // pred_fallthru
        _
    $region40: #{tpu_custom_call.1} parent=5 // pred_fallthru
      _
  $region6: #{tpu_custom_call.1} parent=0 // loop_footer
    %s13 = sadd.s32 1, %s9
  $region7: #{tpu_custom_call.1} parent=0 // loop_footer_branch
    %8 = sbr.rel target = $region3
  $region8: #{tpu_custom_call.1} parent=0 // loop_exit
    _

</llo_original>
